<compile_context>
chip_gen: v5e
topology: v5e:2x2
jax: 0.10.0
libtpu: 0.0.40
codegen_flags: <defaults>
</compile_context>

<pallas_src>
import math
import functools

import jax
import jax.numpy as jnp
from jax import lax
from jax.experimental import pallas as pl
from jax.experimental.pallas import tpu as pltpu


def transformer_layer_kernel(
    q_ref, k_ref, v_ref,
    maskf_ref, pos_ref, upper_ref,
    wk_ref, bk_ref, wv_ref, bv_ref, wo_ref, bo_ref, gam_ref,
    w1_ref, b1_ref, w2_ref, b2_ref,
    ln1w_ref, ln1b_ref, ln2w_ref, ln2b_ref,
    out_ref,
    *, n_heads, d_k, mask_k, apply_pos, use_einshape,
):
    TB, S, D = q_ref.shape
    R = TB * S                # token rows in this block
    N = n_heads * TB          # batched (head, batch) attention problems, n = h*TB + b
    f32 = jnp.float32
    bf16 = jnp.bfloat16

    # ---- load activations (bf16), keep one f32 copy of q for the residual ----
    q_bf = q_ref[...].reshape(R, D)
    k_bf = k_ref[...].reshape(R, D)
    v_bf = v_ref[...].reshape(R, D)
    q_f32 = q_bf.astype(f32)

    # ---- fused projections (kq_same=True: query uses the k projection) ----
    qk_in = jnp.concatenate([q_bf, k_bf], axis=0)                          # (2R, D) bf16
    qk_p = jnp.dot(qk_in, wk_ref[...], preferred_element_type=f32) + bk_ref[...]
    vp = jnp.dot(v_bf, wv_ref[...], preferred_element_type=f32) + bv_ref[...]

    # ---- head plumbing: one transpose per direction (feedback item #1) ----
    def split_heads(x):                                   # (R, D) f32 -> (N, S, d_k) bf16
        if use_einshape:
            x3 = x.astype(bf16).reshape(R, n_heads, d_k)
            x3 = pltpu.einshape("mhd->hmd", x3)           # (H, R, d_k)
        else:
            x3 = jnp.stack([x[:, h * d_k:(h + 1) * d_k] for h in range(n_heads)],
                           axis=0).astype(bf16)           # (H, R, d_k)
        return x3.reshape(N, S, d_k)                      # leading regroup (free)

    def merge_heads(x):                                   # (N, S, d_k) f32 -> (R, D) bf16
        x3 = x.reshape(n_heads, R, d_k).astype(bf16)      # leading regroup (free)
        if use_einshape:
            return pltpu.einshape("hmd->mhd", x3).reshape(R, D)
        return jnp.concatenate([x3[h] for h in range(n_heads)], axis=-1)

    qh = split_heads(qk_p[:R])
    kh = split_heads(qk_p[R:])
    vh = split_heads(vp)

    # ---- resident (S,S) constants (computed once in the wrapper) ----
    allow = maskf_ref[...] > 0.5                          # True = allowed position
    pos_eff = pos_ref[...]                                # |x1 - x2|  (f32)
    neg_inf = f32(-1e32)
    inv_sqrt_dk = f32(1.0 / math.sqrt(d_k))

    scores = jnp.einsum('nqd,nkd->nqk', qh, kh,
                        preferred_element_type=f32) * inv_sqrt_dk          # (N,S,S) f32

    # ---- distance-decay term (the torch.no_grad() block), f32 + exact division ----
    sm = jnp.where(allow, scores, neg_inf)
    m0 = jnp.max(sm, axis=-1, keepdims=True)
    e0 = jnp.exp(sm - m0)
    p0 = e0 / jnp.sum(e0, axis=-1, keepdims=True)
    if mask_k == 0:
        # only load-bearing when a whole query row is masked (zero_pad config)
        p0 = p0 * maskf_ref[...]
    # (disttotal - distcum)[i, j] == sum_{k > j} p0[i, k] == (p0 @ U)[i, j]   (f32 MXU)
    rest = jnp.dot(p0.reshape(N * S, S), upper_ref[...],
                   preferred_element_type=f32).reshape(N, S, S)
    dist_scores = jnp.sqrt(jnp.maximum(rest * pos_eff, 0.0))

    # gamma = -softplus(gammas); numerically stable softplus, per head
    g = gam_ref[...]                                                       # (H,1,1,1) f32
    neg_sp = -(jnp.maximum(g, 0.0) + jnp.log1p(jnp.exp(-jnp.abs(g))))
    te = jnp.exp(dist_scores.reshape(n_heads, TB, S, S) * neg_sp)
    total_effect = jnp.clip(te, 1e-5, 1e5).reshape(N, S, S)

    # ---- decayed attention (approx reciprocal only on the final normalization) ----
    scores = jnp.where(allow, scores * total_effect, neg_inf)
    m1 = jnp.max(scores, axis=-1, keepdims=True)
    e1 = jnp.exp(scores - m1)
    attn = e1 * pl.reciprocal(jnp.sum(e1, axis=-1, keepdims=True), approx=True)
    if mask_k == 0:                                       # zero_pad=True: zero query row 0
        row = lax.broadcasted_iota(jnp.int32, (S, S), 0)
        attn = jnp.where(row == 0, 0.0, attn)
    # TODO(synk): attention/FFN dropout are identity (inference mode), no RNG applied.

    ctx = jnp.einsum('nqk,nkd->nqd', attn.astype(bf16), vh,
                     preferred_element_type=f32)                           # (N,S,d_k)

    # ---- merge heads + single out_proj matmul ----
    concat = merge_heads(ctx)                                              # (R, D) bf16
    attn_out = jnp.dot(concat, wo_ref[...],
                       preferred_element_type=f32) + bo_ref[...]

    # ---- residual + LayerNorm1 ----
    x = q_f32 + attn_out
    mu = jnp.mean(x, axis=-1, keepdims=True)
    xc = x - mu
    var = jnp.mean(xc * xc, axis=-1, keepdims=True)
    x = xc * lax.rsqrt(var + 1e-5) * ln1w_ref[...] + ln1b_ref[...]

    if apply_pos:
        # ---- position-wise FFN + residual + LayerNorm2 ----
        h1 = jnp.maximum(
            jnp.dot(x.astype(bf16), w1_ref[...], preferred_element_type=f32)
            + b1_ref[...], 0.0)
        ff = jnp.dot(h1.astype(bf16), w2_ref[...],
                     preferred_element_type=f32) + b2_ref[...]
        y = x + ff
        mu2 = jnp.mean(y, axis=-1, keepdims=True)
        yc = y - mu2
        var2 = jnp.mean(yc * yc, axis=-1, keepdims=True)
        y = yc * lax.rsqrt(var2 + 1e-5) * ln2w_ref[...] + ln2b_ref[...]
    else:
        y = x

    out_ref[...] = y.reshape(TB, S, D).astype(out_ref.dtype)


def _vmem_capacity_bytes():
    try:
        cap = int(getattr(pltpu.get_tpu_info(), "vmem_capacity_bytes", 0))
        if cap > 0:
            return cap
    except Exception:
        pass
    return 64 * 1024 * 1024       # conservative default (v7x per-TensorCore VMEM)


def _pick_tb(B, S, D, d_ff, n_heads, budget):
    # bytes that do not scale with TB: double-buffered bf16 weights, f32 biases/LN,
    # resident (S,S) constants
    fixed = (2 * 2 * (3 * D * D + 2 * D * d_ff)
             + 2 * 4 * (6 * D + 2 * d_ff + 8 * n_heads)
             + 2 * 3 * S * S * 4)

    def block_bytes(tb):
        rows, n = tb * S, n_heads * tb
        attn_tmp = 8 * n * S * S * 4              # ~8 live (N,S,S) f32 temporaries
        heads = 3 * rows * D * 2                  # bf16 qh/kh/vh
        dense = rows * (8 * D + d_ff) * 4         # f32 row temporaries + FFN hidden
        io = 2 * rows * D * (3 * 2 + 4)           # double-buffered activation blocks
        return attn_tmp + heads + dense + io

    cap = B if B < 2 else max(1, B // 2)          # grid >= 2 -> both v7x TCs get work
    for cand in range(cap, 0, -1):
        if B % cand == 0 and fixed + block_bytes(cand) <= budget:
            return cand
    return 1


def transformer_layer(mask, query, key, values, params, *,
                      n_heads, d_k, apply_pos=True, tb=None, head_layout=None):
    B, S, D = query.shape
    d_ff = params["w1"].shape[1]
    f32, bf16 = jnp.float32, jnp.bfloat16

    vmem_cap = _vmem_capacity_bytes()
    vmem_limit = int(max(32 * 1024 * 1024, min(vmem_cap * 0.85, 120 * 1024 * 1024)))

    if tb is None:
        TB = _pick_tb(B, S, D, d_ff, n_heads, int(vmem_cap * 0.45))
    else:
        TB = max(1, min(int(tb), B))
        while B % TB:
            TB -= 1

    # TODO(synk): for very long sequences (S >~ 512) the (N,S,S) decay temporaries should
    # be key-chunked (online softmax) rather than only shrinking TB; not needed here.

    # ---- (S,S) constants computed once, resident across the whole grid ----
    idx = jnp.arange(S, dtype=jnp.int32)
    row, col = idx[:, None], idx[None, :]
    allow_f = ((col - row) < int(mask)).astype(f32)        # 1.0 where attention allowed
    pos_eff = jnp.abs(col - row).astype(f32)               # |x1 - x2|
    upper = (row > col).astype(f32)                        # U[k, j] = 1 if k > j

    gam = params["gammas"].reshape(n_heads, 1, 1, 1).astype(f32)

    consts = [allow_f, pos_eff, upper]
    weights = [
        params["wk"].astype(bf16), params["bk"],
        params["wv"].astype(bf16), params["bv"],
        params["wo"].astype(bf16), params["bo"],
        gam,
        params["w1"].astype(bf16), params["b1"],
        params["w2"].astype(bf16), params["b2"],
        params["ln1w"], params["ln1b"], params["ln2w"], params["ln2b"],
    ]

    act_spec = pl.BlockSpec((TB, S, D), lambda b: (b, 0, 0))

    def full_spec(shape):
        return pl.BlockSpec(shape, lambda b, _r=len(shape): (0,) * _r)

    in_specs = ([act_spec] * 3
                + [full_spec(c.shape) for c in consts]
                + [full_spec(w.shape) for w in weights])

    flops_per_b = (8 * S * D * D + 4 * S * D * d_ff
                   + 4 * S * S * D + 2 * n_heads * S ** 3)
    cost = pl.CostEstimate(
        flops=B * flops_per_b,
        transcendentals=B * (4 * n_heads * S * S + 4 * S),   # 3 exp + sqrt per (h,i,j)
        bytes_accessed=(B * S * D * (3 * 2 + 4)              # bf16 q,k,v in + f32 out
                        + 2 * (3 * D * D + 2 * D * d_ff)     # bf16 weight matrices
                        + 4 * 3 * S * S                      # (S,S) constants
                        + 4 * (6 * D + 2 * d_ff + n_heads)),
    )

    args = (query.astype(bf16), key.astype(bf16), values.astype(bf16),
            *consts, *weights)

    def build(use_einshape):
        kernel = functools.partial(
            transformer_layer_kernel,
            n_heads=n_heads, d_k=d_k, mask_k=int(mask), apply_pos=apply_pos,
            use_einshape=use_einshape,
        )
        return pl.pallas_call(
            kernel,
            out_shape=jax.ShapeDtypeStruct((B, S, D), jnp.float32),
            grid=(B // TB,),
            in_specs=in_specs,
            out_specs=act_spec,
            compiler_params=pltpu.CompilerParams(
                dimension_semantics=("parallel",),
                vmem_limit_bytes=vmem_limit),
            cost_estimate=cost,
        )

    if head_layout == "stack":
        return build(False)(*args)
    if head_layout == "einshape":
        return build(True)(*args)
    try:
        return build(True)(*args)
    except Exception:
        # fall back to the slower but proven per-head slice/stack head plumbing
        return build(False)(*args)


def init_params(rng, d_model, d_ff, n_heads):
    def xavier(k, shape):
        fan_in, fan_out = shape
        lim = math.sqrt(6.0 / (fan_in + fan_out))
        return jax.random.uniform(k, shape, jnp.float32, -lim, lim)

    ks = jax.random.split(rng, 6)
    zeros = lambda *s: jnp.zeros(s, jnp.float32)
    ones = lambda *s: jnp.ones(s, jnp.float32)
    return {
        "wk": xavier(ks[0], (d_model, d_model)),
        "bk": zeros(1, d_model),
        "wv": xavier(ks[1], (d_model, d_model)),
        "bv": zeros(1, d_model),
        "wo": xavier(ks[2], (d_model, d_model)),
        "bo": zeros(1, d_model),
        "gammas": 0.1 * jax.random.normal(ks[3], (1, n_heads), jnp.float32),
        "w1": xavier(ks[4], (d_model, d_ff)),
        "b1": zeros(1, d_ff),
        "w2": xavier(ks[5], (d_ff, d_model)),
        "b2": zeros(1, d_model),
        "ln1w": ones(1, d_model),
        "ln1b": zeros(1, d_model),
        "ln2w": ones(1, d_model),
        "ln2b": zeros(1, d_model),
    }


if __name__ == "__main__":
    B, S, D, H, D_FF = 2, 8, 32, 4, 64
    d_k = D // H

    root = jax.random.PRNGKey(0)
    kq, kk, kv, kp = jax.random.split(root, 4)
    query = jax.random.normal(kq, (B, S, D), jnp.float32)
    key_in = jax.random.normal(kk, (B, S, D), jnp.float32)
    values = jax.random.normal(kv, (B, S, D), jnp.float32)
    params = init_params(kp, D, D_FF, H)

    # mask=1 -> peek current + past (lower-triangular incl. diagonal), zero_pad=False
    out = transformer_layer(1, query, key_in, values, params,
                            n_heads=H, d_k=d_k, apply_pos=True)
    out = jax.block_until_ready(out)

    assert out.shape == (B, S, D)
    assert bool(jnp.all(jnp.isfinite(out)))
    print("KERNEL_OK")
</pallas_src>

<mosaic_0001>
module attributes {stable_mosaic.version = 11 : i64} {
  func.func @transformer_layer_kernel(%arg0: i32, %arg1: memref<1x8x32xbf16, #tpu.memory_space<vmem>>, %arg2: memref<1x8x32xbf16, #tpu.memory_space<vmem>>, %arg3: memref<1x8x32xbf16, #tpu.memory_space<vmem>>, %arg4: memref<8x8xf32, #tpu.memory_space<vmem>>, %arg5: memref<8x8xf32, #tpu.memory_space<vmem>>, %arg6: memref<8x8xf32, #tpu.memory_space<vmem>>, %arg7: memref<32x32xbf16, #tpu.memory_space<vmem>>, %arg8: memref<1x32xf32, #tpu.memory_space<vmem>>, %arg9: memref<32x32xbf16, #tpu.memory_space<vmem>>, %arg10: memref<1x32xf32, #tpu.memory_space<vmem>>, %arg11: memref<32x32xbf16, #tpu.memory_space<vmem>>, %arg12: memref<1x32xf32, #tpu.memory_space<vmem>>, %arg13: memref<4x1x1x1xf32, #tpu.memory_space<vmem>>, %arg14: memref<32x64xbf16, #tpu.memory_space<vmem>>, %arg15: memref<1x64xf32, #tpu.memory_space<vmem>>, %arg16: memref<64x32xbf16, #tpu.memory_space<vmem>>, %arg17: memref<1x32xf32, #tpu.memory_space<vmem>>, %arg18: memref<1x32xf32, #tpu.memory_space<vmem>>, %arg19: memref<1x32xf32, #tpu.memory_space<vmem>>, %arg20: memref<1x32xf32, #tpu.memory_space<vmem>>, %arg21: memref<1x32xf32, #tpu.memory_space<vmem>>, %arg22: memref<1x8x32xf32, #tpu.memory_space<vmem>>) attributes {dimension_semantics = [#tpu.dimension_semantics<parallel>], iteration_bounds = array<i64: 2>, scalar_prefetch = 0 : i64, scratch_operands = 0 : i64, tpu.core_type = #tpu.core_type<tc>, window_params = [{transform_indices = @transform_0, window_bounds = array<i64: 1, 8, 32>}, {transform_indices = @transform_1, window_bounds = array<i64: 1, 8, 32>}, {transform_indices = @transform_2, window_bounds = array<i64: 1, 8, 32>}, {pipeline_mode = #tpu.pipeline_mode<synchronous>, transform_indices = @transform_3, window_bounds = array<i64: 8, 8>}, {pipeline_mode = #tpu.pipeline_mode<synchronous>, transform_indices = @transform_4, window_bounds = array<i64: 8, 8>}, {pipeline_mode = #tpu.pipeline_mode<synchronous>, transform_indices = @transform_5, window_bounds = array<i64: 8, 8>}, {pipeline_mode = #tpu.pipeline_mode<synchronous>, transform_indices = @transform_6, window_bounds = array<i64: 32, 32>}, {pipeline_mode = #tpu.pipeline_mode<synchronous>, transform_indices = @transform_7, window_bounds = array<i64: 1, 32>}, {pipeline_mode = #tpu.pipeline_mode<synchronous>, transform_indices = @transform_8, window_bounds = array<i64: 32, 32>}, {pipeline_mode = #tpu.pipeline_mode<synchronous>, transform_indices = @transform_9, window_bounds = array<i64: 1, 32>}, {pipeline_mode = #tpu.pipeline_mode<synchronous>, transform_indices = @transform_10, window_bounds = array<i64: 32, 32>}, {pipeline_mode = #tpu.pipeline_mode<synchronous>, transform_indices = @transform_11, window_bounds = array<i64: 1, 32>}, {pipeline_mode = #tpu.pipeline_mode<synchronous>, transform_indices = @transform_12, window_bounds = array<i64: 4, 1, 1, 1>}, {pipeline_mode = #tpu.pipeline_mode<synchronous>, transform_indices = @transform_13, window_bounds = array<i64: 32, 64>}, {pipeline_mode = #tpu.pipeline_mode<synchronous>, transform_indices = @transform_14, window_bounds = array<i64: 1, 64>}, {pipeline_mode = #tpu.pipeline_mode<synchronous>, transform_indices = @transform_15, window_bounds = array<i64: 64, 32>}, {pipeline_mode = #tpu.pipeline_mode<synchronous>, transform_indices = @transform_16, window_bounds = array<i64: 1, 32>}, {pipeline_mode = #tpu.pipeline_mode<synchronous>, transform_indices = @transform_17, window_bounds = array<i64: 1, 32>}, {pipeline_mode = #tpu.pipeline_mode<synchronous>, transform_indices = @transform_18, window_bounds = array<i64: 1, 32>}, {pipeline_mode = #tpu.pipeline_mode<synchronous>, transform_indices = @transform_19, window_bounds = array<i64: 1, 32>}, {pipeline_mode = #tpu.pipeline_mode<synchronous>, transform_indices = @transform_20, window_bounds = array<i64: 1, 32>}, {transform_indices = @transform_21, window_bounds = array<i64: 1, 8, 32>}]} {
    %c0 = arith.constant 0 : index
    %c0_0 = arith.constant 0 : index
    %c0_1 = arith.constant 0 : index
    %0 = vector.load %arg1[%c0, %c0_0, %c0_1] : memref<1x8x32xbf16, #tpu.memory_space<vmem>>, vector<1x8x32xbf16>
    %1 = vector.shape_cast %0 : vector<1x8x32xbf16> to vector<8x32xbf16>
    %c0_2 = arith.constant 0 : index
    %c0_3 = arith.constant 0 : index
    %c0_4 = arith.constant 0 : index
    %2 = vector.load %arg2[%c0_2, %c0_3, %c0_4] : memref<1x8x32xbf16, #tpu.memory_space<vmem>>, vector<1x8x32xbf16>
    %3 = vector.shape_cast %2 : vector<1x8x32xbf16> to vector<8x32xbf16>
    %c0_5 = arith.constant 0 : index
    %c0_6 = arith.constant 0 : index
    %c0_7 = arith.constant 0 : index
    %4 = vector.load %arg3[%c0_5, %c0_6, %c0_7] : memref<1x8x32xbf16, #tpu.memory_space<vmem>>, vector<1x8x32xbf16>
    %5 = vector.shape_cast %4 : vector<1x8x32xbf16> to vector<8x32xbf16>
    %6 = arith.extf %1 : vector<8x32xbf16> to vector<8x32xf32>
    %7 = tpu.concatenate %1, %3 in 0 : vector<8x32xbf16>, vector<8x32xbf16> -> vector<16x32xbf16>
    %c0_8 = arith.constant 0 : index
    %c0_9 = arith.constant 0 : index
    %8 = vector.load %arg7[%c0_8, %c0_9] : memref<32x32xbf16, #tpu.memory_space<vmem>>, vector<32x32xbf16>
    %cst = arith.constant dense<0.000000e+00> : vector<16x32xf32>
    %9 = tpu.matmul %7, %8, %cst {dimension_numbers = #tpu.dot_dimension_numbers<[1], [0], [0], [1], [0, 0, 1, 1], [], []>} : vector<16x32xbf16>, vector<32x32xbf16>, vector<16x32xf32> -> vector<16x32xf32>
    %c0_10 = arith.constant 0 : index
    %c0_11 = arith.constant 0 : index
    %10 = vector.load %arg8[%c0_10, %c0_11] : memref<1x32xf32, #tpu.memory_space<vmem>>, vector<1x32xf32>
    %11 = vector.broadcast %10 : vector<1x32xf32> to vector<16x32xf32>
    %12 = arith.addf %9, %11 : vector<16x32xf32>
    %c0_12 = arith.constant 0 : index
    %c0_13 = arith.constant 0 : index
    %13 = vector.load %arg9[%c0_12, %c0_13] : memref<32x32xbf16, #tpu.memory_space<vmem>>, vector<32x32xbf16>
    %cst_14 = arith.constant dense<0.000000e+00> : vector<8x32xf32>
    %14 = tpu.matmul %5, %13, %cst_14 {dimension_numbers = #tpu.dot_dimension_numbers<[1], [0], [0], [1], [0, 0, 1, 1], [], []>} : vector<8x32xbf16>, vector<32x32xbf16>, vector<8x32xf32> -> vector<8x32xf32>
    %c0_15 = arith.constant 0 : index
    %c0_16 = arith.constant 0 : index
    %15 = vector.load %arg10[%c0_15, %c0_16] : memref<1x32xf32, #tpu.memory_space<vmem>>, vector<1x32xf32>
    %16 = vector.broadcast %15 : vector<1x32xf32> to vector<8x32xf32>
    %17 = arith.addf %14, %16 : vector<8x32xf32>
    %18 = vector.extract_strided_slice %12 {offsets = [0, 0], sizes = [8, 32], strides = [1, 1]} : vector<16x32xf32> to vector<8x32xf32>
    %19 = arith.truncf %18 : vector<8x32xf32> to vector<8x32xbf16>
    %20 = vector.shape_cast %19 : vector<8x32xbf16> to vector<8x4x8xbf16>
    %21 = tpu.transpose %20, [1, 0, 2] : vector<8x4x8xbf16> -> vector<4x8x8xbf16>
    %22 = vector.extract_strided_slice %12 {offsets = [8, 0], sizes = [8, 32], strides = [1, 1]} : vector<16x32xf32> to vector<8x32xf32>
    %23 = arith.truncf %22 : vector<8x32xf32> to vector<8x32xbf16>
    %24 = vector.shape_cast %23 : vector<8x32xbf16> to vector<8x4x8xbf16>
    %25 = tpu.transpose %24, [1, 0, 2] : vector<8x4x8xbf16> -> vector<4x8x8xbf16>
    %26 = arith.truncf %17 : vector<8x32xf32> to vector<8x32xbf16>
    %27 = vector.shape_cast %26 : vector<8x32xbf16> to vector<8x4x8xbf16>
    %28 = tpu.transpose %27, [1, 0, 2] : vector<8x4x8xbf16> -> vector<4x8x8xbf16>
    %c0_17 = arith.constant 0 : index
    %c0_18 = arith.constant 0 : index
    %29 = vector.load %arg4[%c0_17, %c0_18] : memref<8x8xf32, #tpu.memory_space<vmem>>, vector<8x8xf32>
    %cst_19 = arith.constant 5.000000e-01 : f32
    %30 = vector.broadcast %cst_19 : f32 to vector<8x8xf32>
    %31 = arith.cmpf ogt, %29, %30 : vector<8x8xf32>
    %c0_20 = arith.constant 0 : index
    %c0_21 = arith.constant 0 : index
    %32 = vector.load %arg5[%c0_20, %c0_21] : memref<8x8xf32, #tpu.memory_space<vmem>>, vector<8x8xf32>
    "tpu.trace_start"() <{level = 10 : i32, message = "nqd,nkd->nqk"}> : () -> ()
    %cst_22 = arith.constant dense<0.000000e+00> : vector<4x8x8xf32>
    %33 = tpu.matmul %21, %25, %cst_22 {dimension_numbers = #tpu.dot_dimension_numbers<[2], [2], [1], [1], [0, 0, 0, 1, 1, 1], [0], [0]>} : vector<4x8x8xbf16>, vector<4x8x8xbf16>, vector<4x8x8xf32> -> vector<4x8x8xf32>
    "tpu.trace_stop"() : () -> ()
    %cst_23 = arith.constant 0.353553385 : f32
    %34 = vector.broadcast %cst_23 : f32 to vector<4x8x8xf32>
    %35 = arith.mulf %33, %34 : vector<4x8x8xf32>
    %cst_24 = arith.constant -1.000000e+32 : f32
    %36 = vector.shape_cast %31 : vector<8x8xi1> to vector<1x8x8xi1>
    %37 = vector.broadcast %36 : vector<1x8x8xi1> to vector<4x8x8xi1>
    %38 = vector.broadcast %cst_24 : f32 to vector<4x8x8xf32>
    %39 = arith.select %37, %35, %38 : vector<4x8x8xi1>, vector<4x8x8xf32>
    %cst_25 = arith.constant dense<0xFF800000> : vector<4x8xf32>
    %40 = vector.multi_reduction <maximumf>, %39, %cst_25 [2] : vector<4x8x8xf32> to vector<4x8xf32>
    %41 = vector.shape_cast %40 : vector<4x8xf32> to vector<4x8x1xf32>
    %42 = vector.broadcast %41 : vector<4x8x1xf32> to vector<4x8x8xf32>
    %43 = arith.subf %39, %42 : vector<4x8x8xf32>
    %44 = math.exp %43 : vector<4x8x8xf32>
    %cst_26 = arith.constant dense<0.000000e+00> : vector<4x8xf32>
    %45 = vector.multi_reduction <add>, %44, %cst_26 [2] : vector<4x8x8xf32> to vector<4x8xf32>
    %46 = vector.shape_cast %45 : vector<4x8xf32> to vector<4x8x1xf32>
    %47 = vector.broadcast %46 : vector<4x8x1xf32> to vector<4x8x8xf32>
    %48 = arith.divf %44, %47 : vector<4x8x8xf32>
    %49 = vector.shape_cast %48 : vector<4x8x8xf32> to vector<32x8xf32>
    %c0_27 = arith.constant 0 : index
    %c0_28 = arith.constant 0 : index
    %50 = vector.load %arg6[%c0_27, %c0_28] : memref<8x8xf32, #tpu.memory_space<vmem>>, vector<8x8xf32>
    %cst_29 = arith.constant dense<0.000000e+00> : vector<32x8xf32>
    %51 = tpu.matmul %49, %50, %cst_29 {dimension_numbers = #tpu.dot_dimension_numbers<[1], [0], [0], [1], [0, 0, 1, 1], [], []>} : vector<32x8xf32>, vector<8x8xf32>, vector<32x8xf32> -> vector<32x8xf32>
    %52 = vector.shape_cast %51 : vector<32x8xf32> to vector<4x8x8xf32>
    %53 = vector.shape_cast %32 : vector<8x8xf32> to vector<1x8x8xf32>
    %54 = vector.broadcast %53 : vector<1x8x8xf32> to vector<4x8x8xf32>
    %55 = arith.mulf %52, %54 : vector<4x8x8xf32>
    %cst_30 = arith.constant 0.000000e+00 : f32
    %56 = vector.broadcast %cst_30 : f32 to vector<4x8x8xf32>
    %57 = arith.maximumf %55, %56 : vector<4x8x8xf32>
    %58 = math.sqrt %57 : vector<4x8x8xf32>
    %c0_31 = arith.constant 0 : index
    %c0_32 = arith.constant 0 : index
    %c0_33 = arith.constant 0 : index
    %c0_34 = arith.constant 0 : index
    %59 = vector.load %arg13[%c0_31, %c0_32, %c0_33, %c0_34] : memref<4x1x1x1xf32, #tpu.memory_space<vmem>>, vector<4x1x1x1xf32>
    %cst_35 = arith.constant 0.000000e+00 : f32
    %60 = vector.broadcast %cst_35 : f32 to vector<4x1x1x1xf32>
    %61 = arith.maximumf %59, %60 : vector<4x1x1x1xf32>
    %62 = math.absf %59 : vector<4x1x1x1xf32>
    %cst_36 = arith.constant 0.000000e+00 : f32
    %63 = vector.broadcast %cst_36 : f32 to vector<4x1x1x1xf32>
    %64 = arith.subf %63, %62 : vector<4x1x1x1xf32>
    %65 = math.exp %64 : vector<4x1x1x1xf32>
    %66 = math.log1p %65 : vector<4x1x1x1xf32>
    %67 = arith.addf %61, %66 : vector<4x1x1x1xf32>
    %cst_37 = arith.constant 0.000000e+00 : f32
    %68 = vector.broadcast %cst_37 : f32 to vector<4x1x1x1xf32>
    %69 = arith.subf %68, %67 : vector<4x1x1x1xf32>
    %70 = vector.shape_cast %58 : vector<4x8x8xf32> to vector<4x1x8x8xf32>
    %71 = vector.broadcast %69 : vector<4x1x1x1xf32> to vector<4x1x8x8xf32>
    %72 = arith.mulf %70, %71 : vector<4x1x8x8xf32>
    %73 = math.exp %72 : vector<4x1x8x8xf32>
    %cst_38 = arith.constant 9.99999974E-6 : f32
    %cst_39 = arith.constant 1.000000e+05 : f32
    %74 = vector.broadcast %cst_38 : f32 to vector<4x1x8x8xf32>
    %75 = arith.maximumf %74, %73 : vector<4x1x8x8xf32>
    %76 = vector.broadcast %cst_39 : f32 to vector<4x1x8x8xf32>
    %77 = arith.minimumf %76, %75 : vector<4x1x8x8xf32>
    %78 = vector.shape_cast %77 : vector<4x1x8x8xf32> to vector<4x8x8xf32>
    %79 = arith.mulf %35, %78 : vector<4x8x8xf32>
    %cst_40 = arith.constant -1.000000e+32 : f32
    %80 = vector.shape_cast %31 : vector<8x8xi1> to vector<1x8x8xi1>
    %81 = vector.broadcast %80 : vector<1x8x8xi1> to vector<4x8x8xi1>
    %82 = vector.broadcast %cst_40 : f32 to vector<4x8x8xf32>
    %83 = arith.select %81, %79, %82 : vector<4x8x8xi1>, vector<4x8x8xf32>
    %cst_41 = arith.constant dense<0xFF800000> : vector<4x8xf32>
    %84 = vector.multi_reduction <maximumf>, %83, %cst_41 [2] : vector<4x8x8xf32> to vector<4x8xf32>
    %85 = vector.shape_cast %84 : vector<4x8xf32> to vector<4x8x1xf32>
    %86 = vector.broadcast %85 : vector<4x8x1xf32> to vector<4x8x8xf32>
    %87 = arith.subf %83, %86 : vector<4x8x8xf32>
    %88 = math.exp %87 : vector<4x8x8xf32>
    %cst_42 = arith.constant dense<0.000000e+00> : vector<4x8xf32>
    %89 = vector.multi_reduction <add>, %88, %cst_42 [2] : vector<4x8x8xf32> to vector<4x8xf32>
    %90 = vector.shape_cast %89 : vector<4x8xf32> to vector<4x8x1xf32>
    %91 = tpu.reciprocal %90 {approx = true} : vector<4x8x1xf32> -> vector<4x8x1xf32>
    %92 = vector.broadcast %91 : vector<4x8x1xf32> to vector<4x8x8xf32>
    %93 = arith.mulf %88, %92 : vector<4x8x8xf32>
    %94 = arith.truncf %93 : vector<4x8x8xf32> to vector<4x8x8xbf16>
    "tpu.trace_start"() <{level = 10 : i32, message = "nqk,nkd->nqd"}> : () -> ()
    %cst_43 = arith.constant dense<0.000000e+00> : vector<4x8x8xf32>
    %95 = tpu.matmul %94, %28, %cst_43 {dimension_numbers = #tpu.dot_dimension_numbers<[2], [1], [1], [2], [0, 0, 0, 1, 1, 2], [0], [0]>} : vector<4x8x8xbf16>, vector<4x8x8xbf16>, vector<4x8x8xf32> -> vector<4x8x8xf32>
    "tpu.trace_stop"() : () -> ()
    %96 = arith.truncf %95 : vector<4x8x8xf32> to vector<4x8x8xbf16>
    %97 = tpu.transpose %96, [1, 0, 2] : vector<4x8x8xbf16> -> vector<8x4x8xbf16>
    %98 = vector.shape_cast %97 : vector<8x4x8xbf16> to vector<8x32xbf16>
    %c0_44 = arith.constant 0 : index
    %c0_45 = arith.constant 0 : index
    %99 = vector.load %arg11[%c0_44, %c0_45] : memref<32x32xbf16, #tpu.memory_space<vmem>>, vector<32x32xbf16>
    %cst_46 = arith.constant dense<0.000000e+00> : vector<8x32xf32>
    %100 = tpu.matmul %98, %99, %cst_46 {dimension_numbers = #tpu.dot_dimension_numbers<[1], [0], [0], [1], [0, 0, 1, 1], [], []>} : vector<8x32xbf16>, vector<32x32xbf16>, vector<8x32xf32> -> vector<8x32xf32>
    %c0_47 = arith.constant 0 : index
    %c0_48 = arith.constant 0 : index
    %101 = vector.load %arg12[%c0_47, %c0_48] : memref<1x32xf32, #tpu.memory_space<vmem>>, vector<1x32xf32>
    %102 = vector.broadcast %101 : vector<1x32xf32> to vector<8x32xf32>
    %103 = arith.addf %100, %102 : vector<8x32xf32>
    %104 = arith.addf %6, %103 : vector<8x32xf32>
    %cst_49 = arith.constant dense<0.000000e+00> : vector<8xf32>
    %105 = vector.multi_reduction <add>, %104, %cst_49 [1] : vector<8x32xf32> to vector<8xf32>
    %106 = vector.shape_cast %105 : vector<8xf32> to vector<8x1xf32>
    %cst_50 = arith.constant 3.200000e+01 : f32
    %107 = vector.broadcast %cst_50 : f32 to vector<8x1xf32>
    %108 = arith.divf %106, %107 : vector<8x1xf32>
    %109 = vector.broadcast %108 : vector<8x1xf32> to vector<8x32xf32>
    %110 = arith.subf %104, %109 : vector<8x32xf32>
    %111 = arith.mulf %110, %110 : vector<8x32xf32>
    %cst_51 = arith.constant dense<0.000000e+00> : vector<8xf32>
    %112 = vector.multi_reduction <add>, %111, %cst_51 [1] : vector<8x32xf32> to vector<8xf32>
    %113 = vector.shape_cast %112 : vector<8xf32> to vector<8x1xf32>
    %cst_52 = arith.constant 3.200000e+01 : f32
    %114 = vector.broadcast %cst_52 : f32 to vector<8x1xf32>
    %115 = arith.divf %113, %114 : vector<8x1xf32>
    %cst_53 = arith.constant 9.99999974E-6 : f32
    %116 = vector.broadcast %cst_53 : f32 to vector<8x1xf32>
    %117 = arith.addf %115, %116 : vector<8x1xf32>
    %118 = math.rsqrt %117 : vector<8x1xf32>
    %119 = vector.broadcast %118 : vector<8x1xf32> to vector<8x32xf32>
    %120 = arith.mulf %110, %119 : vector<8x32xf32>
    %c0_54 = arith.constant 0 : index
    %c0_55 = arith.constant 0 : index
    %121 = vector.load %arg18[%c0_54, %c0_55] : memref<1x32xf32, #tpu.memory_space<vmem>>, vector<1x32xf32>
    %122 = vector.broadcast %121 : vector<1x32xf32> to vector<8x32xf32>
    %123 = arith.mulf %120, %122 : vector<8x32xf32>
    %c0_56 = arith.constant 0 : index
    %c0_57 = arith.constant 0 : index
    %124 = vector.load %arg19[%c0_56, %c0_57] : memref<1x32xf32, #tpu.memory_space<vmem>>, vector<1x32xf32>
    %125 = vector.broadcast %124 : vector<1x32xf32> to vector<8x32xf32>
    %126 = arith.addf %123, %125 : vector<8x32xf32>
    %127 = arith.truncf %126 : vector<8x32xf32> to vector<8x32xbf16>
    %c0_58 = arith.constant 0 : index
    %c0_59 = arith.constant 0 : index
    %128 = vector.load %arg14[%c0_58, %c0_59] : memref<32x64xbf16, #tpu.memory_space<vmem>>, vector<32x64xbf16>
    %cst_60 = arith.constant dense<0.000000e+00> : vector<8x64xf32>
    %129 = tpu.matmul %127, %128, %cst_60 {dimension_numbers = #tpu.dot_dimension_numbers<[1], [0], [0], [1], [0, 0, 1, 1], [], []>} : vector<8x32xbf16>, vector<32x64xbf16>, vector<8x64xf32> -> vector<8x64xf32>
    %c0_61 = arith.constant 0 : index
    %c0_62 = arith.constant 0 : index
    %130 = vector.load %arg15[%c0_61, %c0_62] : memref<1x64xf32, #tpu.memory_space<vmem>>, vector<1x64xf32>
    %131 = vector.broadcast %130 : vector<1x64xf32> to vector<8x64xf32>
    %132 = arith.addf %129, %131 : vector<8x64xf32>
    %cst_63 = arith.constant 0.000000e+00 : f32
    %133 = vector.broadcast %cst_63 : f32 to vector<8x64xf32>
    %134 = arith.maximumf %132, %133 : vector<8x64xf32>
    %135 = arith.truncf %134 : vector<8x64xf32> to vector<8x64xbf16>
    %c0_64 = arith.constant 0 : index
    %c0_65 = arith.constant 0 : index
    %136 = vector.load %arg16[%c0_64, %c0_65] : memref<64x32xbf16, #tpu.memory_space<vmem>>, vector<64x32xbf16>
    %cst_66 = arith.constant dense<0.000000e+00> : vector<8x32xf32>
    %137 = tpu.matmul %135, %136, %cst_66 {dimension_numbers = #tpu.dot_dimension_numbers<[1], [0], [0], [1], [0, 0, 1, 1], [], []>} : vector<8x64xbf16>, vector<64x32xbf16>, vector<8x32xf32> -> vector<8x32xf32>
    %c0_67 = arith.constant 0 : index
    %c0_68 = arith.constant 0 : index
    %138 = vector.load %arg17[%c0_67, %c0_68] : memref<1x32xf32, #tpu.memory_space<vmem>>, vector<1x32xf32>
    %139 = vector.broadcast %138 : vector<1x32xf32> to vector<8x32xf32>
    %140 = arith.addf %137, %139 : vector<8x32xf32>
    %141 = arith.addf %126, %140 : vector<8x32xf32>
    %cst_69 = arith.constant dense<0.000000e+00> : vector<8xf32>
    %142 = vector.multi_reduction <add>, %141, %cst_69 [1] : vector<8x32xf32> to vector<8xf32>
    %143 = vector.shape_cast %142 : vector<8xf32> to vector<8x1xf32>
    %cst_70 = arith.constant 3.200000e+01 : f32
    %144 = vector.broadcast %cst_70 : f32 to vector<8x1xf32>
    %145 = arith.divf %143, %144 : vector<8x1xf32>
    %146 = vector.broadcast %145 : vector<8x1xf32> to vector<8x32xf32>
    %147 = arith.subf %141, %146 : vector<8x32xf32>
    %148 = arith.mulf %147, %147 : vector<8x32xf32>
    %cst_71 = arith.constant dense<0.000000e+00> : vector<8xf32>
    %149 = vector.multi_reduction <add>, %148, %cst_71 [1] : vector<8x32xf32> to vector<8xf32>
    %150 = vector.shape_cast %149 : vector<8xf32> to vector<8x1xf32>
    %cst_72 = arith.constant 3.200000e+01 : f32
    %151 = vector.broadcast %cst_72 : f32 to vector<8x1xf32>
    %152 = arith.divf %150, %151 : vector<8x1xf32>
    %cst_73 = arith.constant 9.99999974E-6 : f32
    %153 = vector.broadcast %cst_73 : f32 to vector<8x1xf32>
    %154 = arith.addf %152, %153 : vector<8x1xf32>
    %155 = math.rsqrt %154 : vector<8x1xf32>
    %156 = vector.broadcast %155 : vector<8x1xf32> to vector<8x32xf32>
    %157 = arith.mulf %147, %156 : vector<8x32xf32>
    %c0_74 = arith.constant 0 : index
    %c0_75 = arith.constant 0 : index
    %158 = vector.load %arg20[%c0_74, %c0_75] : memref<1x32xf32, #tpu.memory_space<vmem>>, vector<1x32xf32>
    %159 = vector.broadcast %158 : vector<1x32xf32> to vector<8x32xf32>
    %160 = arith.mulf %157, %159 : vector<8x32xf32>
    %c0_76 = arith.constant 0 : index
    %c0_77 = arith.constant 0 : index
    %161 = vector.load %arg21[%c0_76, %c0_77] : memref<1x32xf32, #tpu.memory_space<vmem>>, vector<1x32xf32>
    %162 = vector.broadcast %161 : vector<1x32xf32> to vector<8x32xf32>
    %163 = arith.addf %160, %162 : vector<8x32xf32>
    %164 = vector.shape_cast %163 : vector<8x32xf32> to vector<1x8x32xf32>
    %c0_78 = arith.constant 0 : index
    %c0_79 = arith.constant 0 : index
    %c0_80 = arith.constant 0 : index
    %165 = vector.load %arg22[%c0_78, %c0_79, %c0_80] : memref<1x8x32xf32, #tpu.memory_space<vmem>>, vector<1x8x32xf32>
    tpu.vector_store %arg22[%c0_78, %c0_79, %c0_80], %164 {strides = array<i32>} : memref<1x8x32xf32, #tpu.memory_space<vmem>>, vector<1x8x32xf32>,
    return
  }
  func.func @transform_0(%arg0: i32) -> (i32, i32, i32) {
    %c0_i32 = arith.constant 0 : i32
    %c0_i32_0 = arith.constant 0 : i32
    %c0_i32_1 = arith.constant 0 : i32
    return %arg0, %c0_i32, %c0_i32_0 : i32, i32, i32
  }
  func.func @transform_1(%arg0: i32) -> (i32, i32, i32) {
    %c0_i32 = arith.constant 0 : i32
    %c0_i32_0 = arith.constant 0 : i32
    %c0_i32_1 = arith.constant 0 : i32
    return %arg0, %c0_i32, %c0_i32_0 : i32, i32, i32
  }
  func.func @transform_2(%arg0: i32) -> (i32, i32, i32) {
    %c0_i32 = arith.constant 0 : i32
    %c0_i32_0 = arith.constant 0 : i32
    %c0_i32_1 = arith.constant 0 : i32
    return %arg0, %c0_i32, %c0_i32_0 : i32, i32, i32
  }
  func.func @transform_3(%arg0: i32) -> (i32, i32) {
    %c0_i32 = arith.constant 0 : i32
    %c0_i32_0 = arith.constant 0 : i32
    %c0_i32_1 = arith.constant 0 : i32
    return %c0_i32, %c0_i32_0 : i32, i32
  }
  func.func @transform_4(%arg0: i32) -> (i32, i32) {
    %c0_i32 = arith.constant 0 : i32
    %c0_i32_0 = arith.constant 0 : i32
    %c0_i32_1 = arith.constant 0 : i32
    return %c0_i32, %c0_i32_0 : i32, i32
  }
  func.func @transform_5(%arg0: i32) -> (i32, i32) {
    %c0_i32 = arith.constant 0 : i32
    %c0_i32_0 = arith.constant 0 : i32
    %c0_i32_1 = arith.constant 0 : i32
    return %c0_i32, %c0_i32_0 : i32, i32
  }
  func.func @transform_6(%arg0: i32) -> (i32, i32) {
    %c0_i32 = arith.constant 0 : i32
    %c0_i32_0 = arith.constant 0 : i32
    %c0_i32_1 = arith.constant 0 : i32
    return %c0_i32, %c0_i32_0 : i32, i32
  }
  func.func @transform_7(%arg0: i32) -> (i32, i32) {
    %c0_i32 = arith.constant 0 : i32
    %c0_i32_0 = arith.constant 0 : i32
    %c0_i32_1 = arith.constant 0 : i32
    return %c0_i32, %c0_i32_0 : i32, i32
  }
  func.func @transform_8(%arg0: i32) -> (i32, i32) {
    %c0_i32 = arith.constant 0 : i32
    %c0_i32_0 = arith.constant 0 : i32
    %c0_i32_1 = arith.constant 0 : i32
    return %c0_i32, %c0_i32_0 : i32, i32
  }
  func.func @transform_9(%arg0: i32) -> (i32, i32) {
    %c0_i32 = arith.constant 0 : i32
    %c0_i32_0 = arith.constant 0 : i32
    %c0_i32_1 = arith.constant 0 : i32
    return %c0_i32, %c0_i32_0 : i32, i32
  }
  func.func @transform_10(%arg0: i32) -> (i32, i32) {
    %c0_i32 = arith.constant 0 : i32
    %c0_i32_0 = arith.constant 0 : i32
    %c0_i32_1 = arith.constant 0 : i32
    return %c0_i32, %c0_i32_0 : i32, i32
  }
  func.func @transform_11(%arg0: i32) -> (i32, i32) {
    %c0_i32 = arith.constant 0 : i32
    %c0_i32_0 = arith.constant 0 : i32
    %c0_i32_1 = arith.constant 0 : i32
    return %c0_i32, %c0_i32_0 : i32, i32
  }
  func.func @transform_12(%arg0: i32) -> (i32, i32, i32, i32) {
    %c0_i32 = arith.constant 0 : i32
    %c0_i32_0 = arith.constant 0 : i32
    %c0_i32_1 = arith.constant 0 : i32
    %c0_i32_2 = arith.constant 0 : i32
    %c0_i32_3 = arith.constant 0 : i32
    return %c0_i32, %c0_i32_0, %c0_i32_1, %c0_i32_2 : i32, i32, i32, i32
  }
  func.func @transform_13(%arg0: i32) -> (i32, i32) {
    %c0_i32 = arith.constant 0 : i32
    %c0_i32_0 = arith.constant 0 : i32
    %c0_i32_1 = arith.constant 0 : i32
    return %c0_i32, %c0_i32_0 : i32, i32
  }
  func.func @transform_14(%arg0: i32) -> (i32, i32) {
    %c0_i32 = arith.constant 0 : i32
    %c0_i32_0 = arith.constant 0 : i32
    %c0_i32_1 = arith.constant 0 : i32
    return %c0_i32, %c0_i32_0 : i32, i32
  }
  func.func @transform_15(%arg0: i32) -> (i32, i32) {
    %c0_i32 = arith.constant 0 : i32
    %c0_i32_0 = arith.constant 0 : i32
    %c0_i32_1 = arith.constant 0 : i32
    return %c0_i32, %c0_i32_0 : i32, i32
  }
  func.func @transform_16(%arg0: i32) -> (i32, i32) {
    %c0_i32 = arith.constant 0 : i32
    %c0_i32_0 = arith.constant 0 : i32
    %c0_i32_1 = arith.constant 0 : i32
    return %c0_i32, %c0_i32_0 : i32, i32
  }
  func.func @transform_17(%arg0: i32) -> (i32, i32) {
    %c0_i32 = arith.constant 0 : i32
    %c0_i32_0 = arith.constant 0 : i32
    %c0_i32_1 = arith.constant 0 : i32
    return %c0_i32, %c0_i32_0 : i32, i32
  }
  func.func @transform_18(%arg0: i32) -> (i32, i32) {
    %c0_i32 = arith.constant 0 : i32
    %c0_i32_0 = arith.constant 0 : i32
    %c0_i32_1 = arith.constant 0 : i32
    return %c0_i32, %c0_i32_0 : i32, i32
  }
  func.func @transform_19(%arg0: i32) -> (i32, i32) {
    %c0_i32 = arith.constant 0 : i32
    %c0_i32_0 = arith.constant 0 : i32
    %c0_i32_1 = arith.constant 0 : i32
    return %c0_i32, %c0_i32_0 : i32, i32
  }
  func.func @transform_20(%arg0: i32) -> (i32, i32) {
    %c0_i32 = arith.constant 0 : i32
    %c0_i32_0 = arith.constant 0 : i32
    %c0_i32_1 = arith.constant 0 : i32
    return %c0_i32, %c0_i32_0 : i32, i32
  }
  func.func @transform_21(%arg0: i32) -> (i32, i32, i32) {
    %c0_i32 = arith.constant 0 : i32
    %c0_i32_0 = arith.constant 0 : i32
    %c0_i32_1 = arith.constant 0 : i32
    return %arg0, %c0_i32, %c0_i32_0 : i32, i32, i32
  }
}

module attributes {stable_mosaic.version = 11 : i64} {
  func.func @transformer_layer_kernel(%arg0: i32, %arg1: memref<1x8x32xbf16, #tpu.memory_space<vmem>>, %arg2: memref<1x8x32xbf16, #tpu.memory_space<vmem>>, %arg3: memref<1x8x32xbf16, #tpu.memory_space<vmem>>, %arg4: memref<8x8xf32, #tpu.memory_space<vmem>>, %arg5: memref<8x8xf32, #tpu.memory_space<vmem>>, %arg6: memref<8x8xf32, #tpu.memory_space<vmem>>, %arg7: memref<32x32xbf16, #tpu.memory_space<vmem>>, %arg8: memref<1x32xf32, #tpu.memory_space<vmem>>, %arg9: memref<32x32xbf16, #tpu.memory_space<vmem>>, %arg10: memref<1x32xf32, #tpu.memory_space<vmem>>, %arg11: memref<32x32xbf16, #tpu.memory_space<vmem>>, %arg12: memref<1x32xf32, #tpu.memory_space<vmem>>, %arg13: memref<4x1x1x1xf32, #tpu.memory_space<vmem>>, %arg14: memref<32x64xbf16, #tpu.memory_space<vmem>>, %arg15: memref<1x64xf32, #tpu.memory_space<vmem>>, %arg16: memref<64x32xbf16, #tpu.memory_space<vmem>>, %arg17: memref<1x32xf32, #tpu.memory_space<vmem>>, %arg18: memref<1x32xf32, #tpu.memory_space<vmem>>, %arg19: memref<1x32xf32, #tpu.memory_space<vmem>>, %arg20: memref<1x32xf32, #tpu.memory_space<vmem>>, %arg21: memref<1x32xf32, #tpu.memory_space<vmem>>, %arg22: memref<1x8x32xf32, #tpu.memory_space<vmem>>) attributes {dimension_semantics = [#tpu.dimension_semantics<parallel>], iteration_bounds = array<i64: 2>, scalar_prefetch = 0 : i64, scratch_operands = 0 : i64, tpu.core_type = #tpu.core_type<tc>, window_params = [{transform_indices = @transform_0, window_bounds = array<i64: 1, 8, 32>}, {transform_indices = @transform_1, window_bounds = array<i64: 1, 8, 32>}, {transform_indices = @transform_2, window_bounds = array<i64: 1, 8, 32>}, {pipeline_mode = #tpu.pipeline_mode<synchronous>, transform_indices = @transform_3, window_bounds = array<i64: 8, 8>}, {pipeline_mode = #tpu.pipeline_mode<synchronous>, transform_indices = @transform_4, window_bounds = array<i64: 8, 8>}, {pipeline_mode = #tpu.pipeline_mode<synchronous>, transform_indices = @transform_5, window_bounds = array<i64: 8, 8>}, {pipeline_mode = #tpu.pipeline_mode<synchronous>, transform_indices = @transform_6, window_bounds = array<i64: 32, 32>}, {pipeline_mode = #tpu.pipeline_mode<synchronous>, transform_indices = @transform_7, window_bounds = array<i64: 1, 32>}, {pipeline_mode = #tpu.pipeline_mode<synchronous>, transform_indices = @transform_8, window_bounds = array<i64: 32, 32>}, {pipeline_mode = #tpu.pipeline_mode<synchronous>, transform_indices = @transform_9, window_bounds = array<i64: 1, 32>}, {pipeline_mode = #tpu.pipeline_mode<synchronous>, transform_indices = @transform_10, window_bounds = array<i64: 32, 32>}, {pipeline_mode = #tpu.pipeline_mode<synchronous>, transform_indices = @transform_11, window_bounds = array<i64: 1, 32>}, {pipeline_mode = #tpu.pipeline_mode<synchronous>, transform_indices = @transform_12, window_bounds = array<i64: 4, 1, 1, 1>}, {pipeline_mode = #tpu.pipeline_mode<synchronous>, transform_indices = @transform_13, window_bounds = array<i64: 32, 64>}, {pipeline_mode = #tpu.pipeline_mode<synchronous>, transform_indices = @transform_14, window_bounds = array<i64: 1, 64>}, {pipeline_mode = #tpu.pipeline_mode<synchronous>, transform_indices = @transform_15, window_bounds = array<i64: 64, 32>}, {pipeline_mode = #tpu.pipeline_mode<synchronous>, transform_indices = @transform_16, window_bounds = array<i64: 1, 32>}, {pipeline_mode = #tpu.pipeline_mode<synchronous>, transform_indices = @transform_17, window_bounds = array<i64: 1, 32>}, {pipeline_mode = #tpu.pipeline_mode<synchronous>, transform_indices = @transform_18, window_bounds = array<i64: 1, 32>}, {pipeline_mode = #tpu.pipeline_mode<synchronous>, transform_indices = @transform_19, window_bounds = array<i64: 1, 32>}, {pipeline_mode = #tpu.pipeline_mode<synchronous>, transform_indices = @transform_20, window_bounds = array<i64: 1, 32>}, {transform_indices = @transform_21, window_bounds = array<i64: 1, 8, 32>}]} {
    %c0 = arith.constant 0 : index
    %c0_0 = arith.constant 0 : index
    %c0_1 = arith.constant 0 : index
    %0 = vector.load %arg1[%c0, %c0_0, %c0_1] : memref<1x8x32xbf16, #tpu.memory_space<vmem>>, vector<1x8x32xbf16>
    %1 = vector.shape_cast %0 : vector<1x8x32xbf16> to vector<8x32xbf16>
    %c0_2 = arith.constant 0 : index
    %c0_3 = arith.constant 0 : index
    %c0_4 = arith.constant 0 : index
    %2 = vector.load %arg2[%c0_2, %c0_3, %c0_4] : memref<1x8x32xbf16, #tpu.memory_space<vmem>>, vector<1x8x32xbf16>
    %3 = vector.shape_cast %2 : vector<1x8x32xbf16> to vector<8x32xbf16>
    %c0_5 = arith.constant 0 : index
    %c0_6 = arith.constant 0 : index
    %c0_7 = arith.constant 0 : index
    %4 = vector.load %arg3[%c0_5, %c0_6, %c0_7] : memref<1x8x32xbf16, #tpu.memory_space<vmem>>, vector<1x8x32xbf16>
    %5 = vector.shape_cast %4 : vector<1x8x32xbf16> to vector<8x32xbf16>
    %6 = arith.extf %1 : vector<8x32xbf16> to vector<8x32xf32>
    %7 = tpu.concatenate %1, %3 in 0 : vector<8x32xbf16>, vector<8x32xbf16> -> vector<16x32xbf16>
    %c0_8 = arith.constant 0 : index
    %c0_9 = arith.constant 0 : index
    %8 = vector.load %arg7[%c0_8, %c0_9] : memref<32x32xbf16, #tpu.memory_space<vmem>>, vector<32x32xbf16>
    %cst = arith.constant dense<0.000000e+00> : vector<16x32xf32>
    %9 = tpu.matmul %7, %8, %cst {dimension_numbers = #tpu.dot_dimension_numbers<[1], [0], [0], [1], [0, 0, 1, 1], [], []>} : vector<16x32xbf16>, vector<32x32xbf16>, vector<16x32xf32> -> vector<16x32xf32>
    %c0_10 = arith.constant 0 : index
    %c0_11 = arith.constant 0 : index
    %10 = vector.load %arg8[%c0_10, %c0_11] : memref<1x32xf32, #tpu.memory_space<vmem>>, vector<1x32xf32>
    %11 = vector.broadcast %10 : vector<1x32xf32> to vector<16x32xf32>
    %12 = arith.addf %9, %11 : vector<16x32xf32>
    %c0_12 = arith.constant 0 : index
    %c0_13 = arith.constant 0 : index
    %13 = vector.load %arg9[%c0_12, %c0_13] : memref<32x32xbf16, #tpu.memory_space<vmem>>, vector<32x32xbf16>
    %cst_14 = arith.constant dense<0.000000e+00> : vector<8x32xf32>
    %14 = tpu.matmul %5, %13, %cst_14 {dimension_numbers = #tpu.dot_dimension_numbers<[1], [0], [0], [1], [0, 0, 1, 1], [], []>} : vector<8x32xbf16>, vector<32x32xbf16>, vector<8x32xf32> -> vector<8x32xf32>
    %c0_15 = arith.constant 0 : index
    %c0_16 = arith.constant 0 : index
    %15 = vector.load %arg10[%c0_15, %c0_16] : memref<1x32xf32, #tpu.memory_space<vmem>>, vector<1x32xf32>
    %16 = vector.broadcast %15 : vector<1x32xf32> to vector<8x32xf32>
    %17 = arith.addf %14, %16 : vector<8x32xf32>
    %18 = vector.extract_strided_slice %12 {offsets = [0, 0], sizes = [8, 32], strides = [1, 1]} : vector<16x32xf32> to vector<8x32xf32>
    %19 = vector.extract_strided_slice %18 {offsets = [0, 0], sizes = [8, 8], strides = [1, 1]} : vector<8x32xf32> to vector<8x8xf32>
    %20 = vector.extract_strided_slice %18 {offsets = [0, 8], sizes = [8, 8], strides = [1, 1]} : vector<8x32xf32> to vector<8x8xf32>
    %21 = vector.extract_strided_slice %18 {offsets = [0, 16], sizes = [8, 8], strides = [1, 1]} : vector<8x32xf32> to vector<8x8xf32>
    %22 = vector.extract_strided_slice %18 {offsets = [0, 24], sizes = [8, 8], strides = [1, 1]} : vector<8x32xf32> to vector<8x8xf32>
    %23 = vector.shape_cast %19 : vector<8x8xf32> to vector<1x8x8xf32>
    %24 = vector.shape_cast %20 : vector<8x8xf32> to vector<1x8x8xf32>
    %25 = vector.shape_cast %21 : vector<8x8xf32> to vector<1x8x8xf32>
    %26 = vector.shape_cast %22 : vector<8x8xf32> to vector<1x8x8xf32>
    %27 = tpu.concatenate %23, %24, %25, %26 in 0 : vector<1x8x8xf32>, vector<1x8x8xf32>, vector<1x8x8xf32>, vector<1x8x8xf32> -> vector<4x8x8xf32>
    %28 = arith.truncf %27 : vector<4x8x8xf32> to vector<4x8x8xbf16>
    %29 = vector.extract_strided_slice %12 {offsets = [8, 0], sizes = [8, 32], strides = [1, 1]} : vector<16x32xf32> to vector<8x32xf32>
    %30 = vector.extract_strided_slice %29 {offsets = [0, 0], sizes = [8, 8], strides = [1, 1]} : vector<8x32xf32> to vector<8x8xf32>
    %31 = vector.extract_strided_slice %29 {offsets = [0, 8], sizes = [8, 8], strides = [1, 1]} : vector<8x32xf32> to vector<8x8xf32>
    %32 = vector.extract_strided_slice %29 {offsets = [0, 16], sizes = [8, 8], strides = [1, 1]} : vector<8x32xf32> to vector<8x8xf32>
    %33 = vector.extract_strided_slice %29 {offsets = [0, 24], sizes = [8, 8], strides = [1, 1]} : vector<8x32xf32> to vector<8x8xf32>
    %34 = vector.shape_cast %30 : vector<8x8xf32> to vector<1x8x8xf32>
    %35 = vector.shape_cast %31 : vector<8x8xf32> to vector<1x8x8xf32>
    %36 = vector.shape_cast %32 : vector<8x8xf32> to vector<1x8x8xf32>
    %37 = vector.shape_cast %33 : vector<8x8xf32> to vector<1x8x8xf32>
    %38 = tpu.concatenate %34, %35, %36, %37 in 0 : vector<1x8x8xf32>, vector<1x8x8xf32>, vector<1x8x8xf32>, vector<1x8x8xf32> -> vector<4x8x8xf32>
    %39 = arith.truncf %38 : vector<4x8x8xf32> to vector<4x8x8xbf16>
    %40 = vector.extract_strided_slice %17 {offsets = [0, 0], sizes = [8, 8], strides = [1, 1]} : vector<8x32xf32> to vector<8x8xf32>
    %41 = vector.extract_strided_slice %17 {offsets = [0, 8], sizes = [8, 8], strides = [1, 1]} : vector<8x32xf32> to vector<8x8xf32>
    %42 = vector.extract_strided_slice %17 {offsets = [0, 16], sizes = [8, 8], strides = [1, 1]} : vector<8x32xf32> to vector<8x8xf32>
    %43 = vector.extract_strided_slice %17 {offsets = [0, 24], sizes = [8, 8], strides = [1, 1]} : vector<8x32xf32> to vector<8x8xf32>
    %44 = vector.shape_cast %40 : vector<8x8xf32> to vector<1x8x8xf32>
    %45 = vector.shape_cast %41 : vector<8x8xf32> to vector<1x8x8xf32>
    %46 = vector.shape_cast %42 : vector<8x8xf32> to vector<1x8x8xf32>
    %47 = vector.shape_cast %43 : vector<8x8xf32> to vector<1x8x8xf32>
    %48 = tpu.concatenate %44, %45, %46, %47 in 0 : vector<1x8x8xf32>, vector<1x8x8xf32>, vector<1x8x8xf32>, vector<1x8x8xf32> -> vector<4x8x8xf32>
    %49 = arith.truncf %48 : vector<4x8x8xf32> to vector<4x8x8xbf16>
    %c0_17 = arith.constant 0 : index
    %c0_18 = arith.constant 0 : index
    %50 = vector.load %arg4[%c0_17, %c0_18] : memref<8x8xf32, #tpu.memory_space<vmem>>, vector<8x8xf32>
    %cst_19 = arith.constant 5.000000e-01 : f32
    %51 = vector.broadcast %cst_19 : f32 to vector<8x8xf32>
    %52 = arith.cmpf ogt, %50, %51 : vector<8x8xf32>
    %c0_20 = arith.constant 0 : index
    %c0_21 = arith.constant 0 : index
    %53 = vector.load %arg5[%c0_20, %c0_21] : memref<8x8xf32, #tpu.memory_space<vmem>>, vector<8x8xf32>
    "tpu.trace_start"() <{level = 10 : i32, message = "nqd,nkd->nqk"}> : () -> ()
    %cst_22 = arith.constant dense<0.000000e+00> : vector<4x8x8xf32>
    %54 = tpu.matmul %28, %39, %cst_22 {dimension_numbers = #tpu.dot_dimension_numbers<[2], [2], [1], [1], [0, 0, 0, 1, 1, 1], [0], [0]>} : vector<4x8x8xbf16>, vector<4x8x8xbf16>, vector<4x8x8xf32> -> vector<4x8x8xf32>
    "tpu.trace_stop"() : () -> ()
    %cst_23 = arith.constant 0.353553385 : f32
    %55 = vector.broadcast %cst_23 : f32 to vector<4x8x8xf32>
    %56 = arith.mulf %54, %55 : vector<4x8x8xf32>
    %cst_24 = arith.constant -1.000000e+32 : f32
    %57 = vector.shape_cast %52 : vector<8x8xi1> to vector<1x8x8xi1>
    %58 = vector.broadcast %57 : vector<1x8x8xi1> to vector<4x8x8xi1>
    %59 = vector.broadcast %cst_24 : f32 to vector<4x8x8xf32>
    %60 = arith.select %58, %56, %59 : vector<4x8x8xi1>, vector<4x8x8xf32>
    %cst_25 = arith.constant dense<0xFF800000> : vector<4x8xf32>
    %61 = vector.multi_reduction <maximumf>, %60, %cst_25 [2] : vector<4x8x8xf32> to vector<4x8xf32>
    %62 = vector.shape_cast %61 : vector<4x8xf32> to vector<4x8x1xf32>
    %63 = vector.broadcast %62 : vector<4x8x1xf32> to vector<4x8x8xf32>
    %64 = arith.subf %60, %63 : vector<4x8x8xf32>
    %65 = math.exp %64 : vector<4x8x8xf32>
    %cst_26 = arith.constant dense<0.000000e+00> : vector<4x8xf32>
    %66 = vector.multi_reduction <add>, %65, %cst_26 [2] : vector<4x8x8xf32> to vector<4x8xf32>
    %67 = vector.shape_cast %66 : vector<4x8xf32> to vector<4x8x1xf32>
    %68 = vector.broadcast %67 : vector<4x8x1xf32> to vector<4x8x8xf32>
    %69 = arith.divf %65, %68 : vector<4x8x8xf32>
    %70 = vector.shape_cast %69 : vector<4x8x8xf32> to vector<32x8xf32>
    %c0_27 = arith.constant 0 : index
    %c0_28 = arith.constant 0 : index
    %71 = vector.load %arg6[%c0_27, %c0_28] : memref<8x8xf32, #tpu.memory_space<vmem>>, vector<8x8xf32>
    %cst_29 = arith.constant dense<0.000000e+00> : vector<32x8xf32>
    %72 = tpu.matmul %70, %71, %cst_29 {dimension_numbers = #tpu.dot_dimension_numbers<[1], [0], [0], [1], [0, 0, 1, 1], [], []>} : vector<32x8xf32>, vector<8x8xf32>, vector<32x8xf32> -> vector<32x8xf32>
    %73 = vector.shape_cast %72 : vector<32x8xf32> to vector<4x8x8xf32>
    %74 = vector.shape_cast %53 : vector<8x8xf32> to vector<1x8x8xf32>
    %75 = vector.broadcast %74 : vector<1x8x8xf32> to vector<4x8x8xf32>
    %76 = arith.mulf %73, %75 : vector<4x8x8xf32>
    %cst_30 = arith.constant 0.000000e+00 : f32
    %77 = vector.broadcast %cst_30 : f32 to vector<4x8x8xf32>
    %78 = arith.maximumf %76, %77 : vector<4x8x8xf32>
    %79 = math.sqrt %78 : vector<4x8x8xf32>
    %c0_31 = arith.constant 0 : index
    %c0_32 = arith.constant 0 : index
    %c0_33 = arith.constant 0 : index
    %c0_34 = arith.constant 0 : index
    %80 = vector.load %arg13[%c0_31, %c0_32, %c0_33, %c0_34] : memref<4x1x1x1xf32, #tpu.memory_space<vmem>>, vector<4x1x1x1xf32>
    %cst_35 = arith.constant 0.000000e+00 : f32
    %81 = vector.broadcast %cst_35 : f32 to vector<4x1x1x1xf32>
    %82 = arith.maximumf %80, %81 : vector<4x1x1x1xf32>
    %83 = math.absf %80 : vector<4x1x1x1xf32>
    %cst_36 = arith.constant 0.000000e+00 : f32
    %84 = vector.broadcast %cst_36 : f32 to vector<4x1x1x1xf32>
    %85 = arith.subf %84, %83 : vector<4x1x1x1xf32>
    %86 = math.exp %85 : vector<4x1x1x1xf32>
    %87 = math.log1p %86 : vector<4x1x1x1xf32>
    %88 = arith.addf %82, %87 : vector<4x1x1x1xf32>
    %cst_37 = arith.constant 0.000000e+00 : f32
    %89 = vector.broadcast %cst_37 : f32 to vector<4x1x1x1xf32>
    %90 = arith.subf %89, %88 : vector<4x1x1x1xf32>
    %91 = vector.shape_cast %79 : vector<4x8x8xf32> to vector<4x1x8x8xf32>
    %92 = vector.broadcast %90 : vector<4x1x1x1xf32> to vector<4x1x8x8xf32>
    %93 = arith.mulf %91, %92 : vector<4x1x8x8xf32>
    %94 = math.exp %93 : vector<4x1x8x8xf32>
    %cst_38 = arith.constant 9.99999974E-6 : f32
    %cst_39 = arith.constant 1.000000e+05 : f32
    %95 = vector.broadcast %cst_38 : f32 to vector<4x1x8x8xf32>
    %96 = arith.maximumf %95, %94 : vector<4x1x8x8xf32>
    %97 = vector.broadcast %cst_39 : f32 to vector<4x1x8x8xf32>
    %98 = arith.minimumf %97, %96 : vector<4x1x8x8xf32>
    %99 = vector.shape_cast %98 : vector<4x1x8x8xf32> to vector<4x8x8xf32>
    %100 = arith.mulf %56, %99 : vector<4x8x8xf32>
    %cst_40 = arith.constant -1.000000e+32 : f32
    %101 = vector.shape_cast %52 : vector<8x8xi1> to vector<1x8x8xi1>
    %102 = vector.broadcast %101 : vector<1x8x8xi1> to vector<4x8x8xi1>
    %103 = vector.broadcast %cst_40 : f32 to vector<4x8x8xf32>
    %104 = arith.select %102, %100, %103 : vector<4x8x8xi1>, vector<4x8x8xf32>
    %cst_41 = arith.constant dense<0xFF800000> : vector<4x8xf32>
    %105 = vector.multi_reduction <maximumf>, %104, %cst_41 [2] : vector<4x8x8xf32> to vector<4x8xf32>
    %106 = vector.shape_cast %105 : vector<4x8xf32> to vector<4x8x1xf32>
    %107 = vector.broadcast %106 : vector<4x8x1xf32> to vector<4x8x8xf32>
    %108 = arith.subf %104, %107 : vector<4x8x8xf32>
    %109 = math.exp %108 : vector<4x8x8xf32>
    %cst_42 = arith.constant dense<0.000000e+00> : vector<4x8xf32>
    %110 = vector.multi_reduction <add>, %109, %cst_42 [2] : vector<4x8x8xf32> to vector<4x8xf32>
    %111 = vector.shape_cast %110 : vector<4x8xf32> to vector<4x8x1xf32>
    %112 = tpu.reciprocal %111 {approx = true} : vector<4x8x1xf32> -> vector<4x8x1xf32>
    %113 = vector.broadcast %112 : vector<4x8x1xf32> to vector<4x8x8xf32>
    %114 = arith.mulf %109, %113 : vector<4x8x8xf32>
    %115 = arith.truncf %114 : vector<4x8x8xf32> to vector<4x8x8xbf16>
    "tpu.trace_start"() <{level = 10 : i32, message = "nqk,nkd->nqd"}> : () -> ()
    %cst_43 = arith.constant dense<0.000000e+00> : vector<4x8x8xf32>
    %116 = tpu.matmul %115, %49, %cst_43 {dimension_numbers = #tpu.dot_dimension_numbers<[2], [1], [1], [2], [0, 0, 0, 1, 1, 2], [0], [0]>} : vector<4x8x8xbf16>, vector<4x8x8xbf16>, vector<4x8x8xf32> -> vector<4x8x8xf32>
    "tpu.trace_stop"() : () -> ()
    %117 = arith.truncf %116 : vector<4x8x8xf32> to vector<4x8x8xbf16>
    %118 = vector.extract_strided_slice %117 {offsets = [0, 0, 0], sizes = [1, 8, 8], strides = [1, 1, 1]} : vector<4x8x8xbf16> to vector<1x8x8xbf16>
    %119 = vector.shape_cast %118 : vector<1x8x8xbf16> to vector<8x8xbf16>
    %120 = vector.extract_strided_slice %117 {offsets = [1, 0, 0], sizes = [1, 8, 8], strides = [1, 1, 1]} : vector<4x8x8xbf16> to vector<1x8x8xbf16>
    %121 = vector.shape_cast %120 : vector<1x8x8xbf16> to vector<8x8xbf16>
    %122 = vector.extract_strided_slice %117 {offsets = [2, 0, 0], sizes = [1, 8, 8], strides = [1, 1, 1]} : vector<4x8x8xbf16> to vector<1x8x8xbf16>
    %123 = vector.shape_cast %122 : vector<1x8x8xbf16> to vector<8x8xbf16>
    %124 = vector.extract_strided_slice %117 {offsets = [3, 0, 0], sizes = [1, 8, 8], strides = [1, 1, 1]} : vector<4x8x8xbf16> to vector<1x8x8xbf16>
    %125 = vector.shape_cast %124 : vector<1x8x8xbf16> to vector<8x8xbf16>
    %126 = tpu.concatenate %119, %121, %123, %125 in 1 : vector<8x8xbf16>, vector<8x8xbf16>, vector<8x8xbf16>, vector<8x8xbf16> -> vector<8x32xbf16>
    %c0_44 = arith.constant 0 : index
    %c0_45 = arith.constant 0 : index
    %127 = vector.load %arg11[%c0_44, %c0_45] : memref<32x32xbf16, #tpu.memory_space<vmem>>, vector<32x32xbf16>
    %cst_46 = arith.constant dense<0.000000e+00> : vector<8x32xf32>
    %128 = tpu.matmul %126, %127, %cst_46 {dimension_numbers = #tpu.dot_dimension_numbers<[1], [0], [0], [1], [0, 0, 1, 1], [], []>} : vector<8x32xbf16>, vector<32x32xbf16>, vector<8x32xf32> -> vector<8x32xf32>
    %c0_47 = arith.constant 0 : index
    %c0_48 = arith.constant 0 : index
    %129 = vector.load %arg12[%c0_47, %c0_48] : memref<1x32xf32, #tpu.memory_space<vmem>>, vector<1x32xf32>
    %130 = vector.broadcast %129 : vector<1x32xf32> to vector<8x32xf32>
    %131 = arith.addf %128, %130 : vector<8x32xf32>
    %132 = arith.addf %6, %131 : vector<8x32xf32>
    %cst_49 = arith.constant dense<0.000000e+00> : vector<8xf32>
    %133 = vector.multi_reduction <add>, %132, %cst_49 [1] : vector<8x32xf32> to vector<8xf32>
    %134 = vector.shape_cast %133 : vector<8xf32> to vector<8x1xf32>
    %cst_50 = arith.constant 3.200000e+01 : f32
    %135 = vector.broadcast %cst_50 : f32 to vector<8x1xf32>
    %136 = arith.divf %134, %135 : vector<8x1xf32>
    %137 = vector.broadcast %136 : vector<8x1xf32> to vector<8x32xf32>
    %138 = arith.subf %132, %137 : vector<8x32xf32>
    %139 = arith.mulf %138, %138 : vector<8x32xf32>
    %cst_51 = arith.constant dense<0.000000e+00> : vector<8xf32>
    %140 = vector.multi_reduction <add>, %139, %cst_51 [1] : vector<8x32xf32> to vector<8xf32>
    %141 = vector.shape_cast %140 : vector<8xf32> to vector<8x1xf32>
    %cst_52 = arith.constant 3.200000e+01 : f32
    %142 = vector.broadcast %cst_52 : f32 to vector<8x1xf32>
    %143 = arith.divf %141, %142 : vector<8x1xf32>
    %cst_53 = arith.constant 9.99999974E-6 : f32
    %144 = vector.broadcast %cst_53 : f32 to vector<8x1xf32>
    %145 = arith.addf %143, %144 : vector<8x1xf32>
    %146 = math.rsqrt %145 : vector<8x1xf32>
    %147 = vector.broadcast %146 : vector<8x1xf32> to vector<8x32xf32>
    %148 = arith.mulf %138, %147 : vector<8x32xf32>
    %c0_54 = arith.constant 0 : index
    %c0_55 = arith.constant 0 : index
    %149 = vector.load %arg18[%c0_54, %c0_55] : memref<1x32xf32, #tpu.memory_space<vmem>>, vector<1x32xf32>
    %150 = vector.broadcast %149 : vector<1x32xf32> to vector<8x32xf32>
    %151 = arith.mulf %148, %150 : vector<8x32xf32>
    %c0_56 = arith.constant 0 : index
    %c0_57 = arith.constant 0 : index
    %152 = vector.load %arg19[%c0_56, %c0_57] : memref<1x32xf32, #tpu.memory_space<vmem>>, vector<1x32xf32>
    %153 = vector.broadcast %152 : vector<1x32xf32> to vector<8x32xf32>
    %154 = arith.addf %151, %153 : vector<8x32xf32>
    %155 = arith.truncf %154 : vector<8x32xf32> to vector<8x32xbf16>
    %c0_58 = arith.constant 0 : index
    %c0_59 = arith.constant 0 : index
    %156 = vector.load %arg14[%c0_58, %c0_59] : memref<32x64xbf16, #tpu.memory_space<vmem>>, vector<32x64xbf16>
    %cst_60 = arith.constant dense<0.000000e+00> : vector<8x64xf32>
    %157 = tpu.matmul %155, %156, %cst_60 {dimension_numbers = #tpu.dot_dimension_numbers<[1], [0], [0], [1], [0, 0, 1, 1], [], []>} : vector<8x32xbf16>, vector<32x64xbf16>, vector<8x64xf32> -> vector<8x64xf32>
    %c0_61 = arith.constant 0 : index
    %c0_62 = arith.constant 0 : index
    %158 = vector.load %arg15[%c0_61, %c0_62] : memref<1x64xf32, #tpu.memory_space<vmem>>, vector<1x64xf32>
    %159 = vector.broadcast %158 : vector<1x64xf32> to vector<8x64xf32>
    %160 = arith.addf %157, %159 : vector<8x64xf32>
    %cst_63 = arith.constant 0.000000e+00 : f32
    %161 = vector.broadcast %cst_63 : f32 to vector<8x64xf32>
    %162 = arith.maximumf %160, %161 : vector<8x64xf32>
    %163 = arith.truncf %162 : vector<8x64xf32> to vector<8x64xbf16>
    %c0_64 = arith.constant 0 : index
    %c0_65 = arith.constant 0 : index
    %164 = vector.load %arg16[%c0_64, %c0_65] : memref<64x32xbf16, #tpu.memory_space<vmem>>, vector<64x32xbf16>
    %cst_66 = arith.constant dense<0.000000e+00> : vector<8x32xf32>
    %165 = tpu.matmul %163, %164, %cst_66 {dimension_numbers = #tpu.dot_dimension_numbers<[1], [0], [0], [1], [0, 0, 1, 1], [], []>} : vector<8x64xbf16>, vector<64x32xbf16>, vector<8x32xf32> -> vector<8x32xf32>
    %c0_67 = arith.constant 0 : index
    %c0_68 = arith.constant 0 : index
    %166 = vector.load %arg17[%c0_67, %c0_68] : memref<1x32xf32, #tpu.memory_space<vmem>>, vector<1x32xf32>
    %167 = vector.broadcast %166 : vector<1x32xf32> to vector<8x32xf32>
    %168 = arith.addf %165, %167 : vector<8x32xf32>
    %169 = arith.addf %154, %168 : vector<8x32xf32>
    %cst_69 = arith.constant dense<0.000000e+00> : vector<8xf32>
    %170 = vector.multi_reduction <add>, %169, %cst_69 [1] : vector<8x32xf32> to vector<8xf32>
    %171 = vector.shape_cast %170 : vector<8xf32> to vector<8x1xf32>
    %cst_70 = arith.constant 3.200000e+01 : f32
    %172 = vector.broadcast %cst_70 : f32 to vector<8x1xf32>
    %173 = arith.divf %171, %172 : vector<8x1xf32>
    %174 = vector.broadcast %173 : vector<8x1xf32> to vector<8x32xf32>
    %175 = arith.subf %169, %174 : vector<8x32xf32>
    %176 = arith.mulf %175, %175 : vector<8x32xf32>
    %cst_71 = arith.constant dense<0.000000e+00> : vector<8xf32>
    %177 = vector.multi_reduction <add>, %176, %cst_71 [1] : vector<8x32xf32> to vector<8xf32>
    %178 = vector.shape_cast %177 : vector<8xf32> to vector<8x1xf32>
    %cst_72 = arith.constant 3.200000e+01 : f32
    %179 = vector.broadcast %cst_72 : f32 to vector<8x1xf32>
    %180 = arith.divf %178, %179 : vector<8x1xf32>
    %cst_73 = arith.constant 9.99999974E-6 : f32
    %181 = vector.broadcast %cst_73 : f32 to vector<8x1xf32>
    %182 = arith.addf %180, %181 : vector<8x1xf32>
    %183 = math.rsqrt %182 : vector<8x1xf32>
    %184 = vector.broadcast %183 : vector<8x1xf32> to vector<8x32xf32>
    %185 = arith.mulf %175, %184 : vector<8x32xf32>
    %c0_74 = arith.constant 0 : index
    %c0_75 = arith.constant 0 : index
    %186 = vector.load %arg20[%c0_74, %c0_75] : memref<1x32xf32, #tpu.memory_space<vmem>>, vector<1x32xf32>
    %187 = vector.broadcast %186 : vector<1x32xf32> to vector<8x32xf32>
    %188 = arith.mulf %185, %187 : vector<8x32xf32>
    %c0_76 = arith.constant 0 : index
    %c0_77 = arith.constant 0 : index
    %189 = vector.load %arg21[%c0_76, %c0_77] : memref<1x32xf32, #tpu.memory_space<vmem>>, vector<1x32xf32>
    %190 = vector.broadcast %189 : vector<1x32xf32> to vector<8x32xf32>
    %191 = arith.addf %188, %190 : vector<8x32xf32>
    %192 = vector.shape_cast %191 : vector<8x32xf32> to vector<1x8x32xf32>
    %c0_78 = arith.constant 0 : index
    %c0_79 = arith.constant 0 : index
    %c0_80 = arith.constant 0 : index
    %193 = vector.load %arg22[%c0_78, %c0_79, %c0_80] : memref<1x8x32xf32, #tpu.memory_space<vmem>>, vector<1x8x32xf32>
    tpu.vector_store %arg22[%c0_78, %c0_79, %c0_80], %192 {strides = array<i32>} : memref<1x8x32xf32, #tpu.memory_space<vmem>>, vector<1x8x32xf32>,
    return
  }
  func.func @transform_0(%arg0: i32) -> (i32, i32, i32) {
    %c0_i32 = arith.constant 0 : i32
    %c0_i32_0 = arith.constant 0 : i32
    %c0_i32_1 = arith.constant 0 : i32
    return %arg0, %c0_i32, %c0_i32_0 : i32, i32, i32
  }
  func.func @transform_1(%arg0: i32) -> (i32, i32, i32) {
    %c0_i32 = arith.constant 0 : i32
    %c0_i32_0 = arith.constant 0 : i32
    %c0_i32_1 = arith.constant 0 : i32
    return %arg0, %c0_i32, %c0_i32_0 : i32, i32, i32
  }
  func.func @transform_2(%arg0: i32) -> (i32, i32, i32) {
    %c0_i32 = arith.constant 0 : i32
    %c0_i32_0 = arith.constant 0 : i32
    %c0_i32_1 = arith.constant 0 : i32
    return %arg0, %c0_i32, %c0_i32_0 : i32, i32, i32
  }
  func.func @transform_3(%arg0: i32) -> (i32, i32) {
    %c0_i32 = arith.constant 0 : i32
    %c0_i32_0 = arith.constant 0 : i32
    %c0_i32_1 = arith.constant 0 : i32
    return %c0_i32, %c0_i32_0 : i32, i32
  }
  func.func @transform_4(%arg0: i32) -> (i32, i32) {
    %c0_i32 = arith.constant 0 : i32
    %c0_i32_0 = arith.constant 0 : i32
    %c0_i32_1 = arith.constant 0 : i32
    return %c0_i32, %c0_i32_0 : i32, i32
  }
  func.func @transform_5(%arg0: i32) -> (i32, i32) {
    %c0_i32 = arith.constant 0 : i32
    %c0_i32_0 = arith.constant 0 : i32
    %c0_i32_1 = arith.constant 0 : i32
    return %c0_i32, %c0_i32_0 : i32, i32
  }
  func.func @transform_6(%arg0: i32) -> (i32, i32) {
    %c0_i32 = arith.constant 0 : i32
    %c0_i32_0 = arith.constant 0 : i32
    %c0_i32_1 = arith.constant 0 : i32
    return %c0_i32, %c0_i32_0 : i32, i32
  }
  func.func @transform_7(%arg0: i32) -> (i32, i32) {
    %c0_i32 = arith.constant 0 : i32
    %c0_i32_0 = arith.constant 0 : i32
    %c0_i32_1 = arith.constant 0 : i32
    return %c0_i32, %c0_i32_0 : i32, i32
  }
  func.func @transform_8(%arg0: i32) -> (i32, i32) {
    %c0_i32 = arith.constant 0 : i32
    %c0_i32_0 = arith.constant 0 : i32
    %c0_i32_1 = arith.constant 0 : i32
    return %c0_i32, %c0_i32_0 : i32, i32
  }
  func.func @transform_9(%arg0: i32) -> (i32, i32) {
    %c0_i32 = arith.constant 0 : i32
    %c0_i32_0 = arith.constant 0 : i32
    %c0_i32_1 = arith.constant 0 : i32
    return %c0_i32, %c0_i32_0 : i32, i32
  }
  func.func @transform_10(%arg0: i32) -> (i32, i32) {
    %c0_i32 = arith.constant 0 : i32
    %c0_i32_0 = arith.constant 0 : i32
    %c0_i32_1 = arith.constant 0 : i32
    return %c0_i32, %c0_i32_0 : i32, i32
  }
  func.func @transform_11(%arg0: i32) -> (i32, i32) {
    %c0_i32 = arith.constant 0 : i32
    %c0_i32_0 = arith.constant 0 : i32
    %c0_i32_1 = arith.constant 0 : i32
    return %c0_i32, %c0_i32_0 : i32, i32
  }
  func.func @transform_12(%arg0: i32) -> (i32, i32, i32, i32) {
    %c0_i32 = arith.constant 0 : i32
    %c0_i32_0 = arith.constant 0 : i32
    %c0_i32_1 = arith.constant 0 : i32
    %c0_i32_2 = arith.constant 0 : i32
    %c0_i32_3 = arith.constant 0 : i32
    return %c0_i32, %c0_i32_0, %c0_i32_1, %c0_i32_2 : i32, i32, i32, i32
  }
  func.func @transform_13(%arg0: i32) -> (i32, i32) {
    %c0_i32 = arith.constant 0 : i32
    %c0_i32_0 = arith.constant 0 : i32
    %c0_i32_1 = arith.constant 0 : i32
    return %c0_i32, %c0_i32_0 : i32, i32
  }
  func.func @transform_14(%arg0: i32) -> (i32, i32) {
    %c0_i32 = arith.constant 0 : i32
    %c0_i32_0 = arith.constant 0 : i32
    %c0_i32_1 = arith.constant 0 : i32
    return %c0_i32, %c0_i32_0 : i32, i32
  }
  func.func @transform_15(%arg0: i32) -> (i32, i32) {
    %c0_i32 = arith.constant 0 : i32
    %c0_i32_0 = arith.constant 0 : i32
    %c0_i32_1 = arith.constant 0 : i32
    return %c0_i32, %c0_i32_0 : i32, i32
  }
  func.func @transform_16(%arg0: i32) -> (i32, i32) {
    %c0_i32 = arith.constant 0 : i32
    %c0_i32_0 = arith.constant 0 : i32
    %c0_i32_1 = arith.constant 0 : i32
    return %c0_i32, %c0_i32_0 : i32, i32
  }
  func.func @transform_17(%arg0: i32) -> (i32, i32) {
    %c0_i32 = arith.constant 0 : i32
    %c0_i32_0 = arith.constant 0 : i32
    %c0_i32_1 = arith.constant 0 : i32
    return %c0_i32, %c0_i32_0 : i32, i32
  }
  func.func @transform_18(%arg0: i32) -> (i32, i32) {
    %c0_i32 = arith.constant 0 : i32
    %c0_i32_0 = arith.constant 0 : i32
    %c0_i32_1 = arith.constant 0 : i32
    return %c0_i32, %c0_i32_0 : i32, i32
  }
  func.func @transform_19(%arg0: i32) -> (i32, i32) {
    %c0_i32 = arith.constant 0 : i32
    %c0_i32_0 = arith.constant 0 : i32
    %c0_i32_1 = arith.constant 0 : i32
    return %c0_i32, %c0_i32_0 : i32, i32
  }
  func.func @transform_20(%arg0: i32) -> (i32, i32) {
    %c0_i32 = arith.constant 0 : i32
    %c0_i32_0 = arith.constant 0 : i32
    %c0_i32_1 = arith.constant 0 : i32
    return %c0_i32, %c0_i32_0 : i32, i32
  }
  func.func @transform_21(%arg0: i32) -> (i32, i32, i32) {
    %c0_i32 = arith.constant 0 : i32
    %c0_i32_0 = arith.constant 0 : i32
    %c0_i32_1 = arith.constant 0 : i32
    return %arg0, %c0_i32, %c0_i32_0 : i32, i32, i32
  }
}

</mosaic_0001>

<llo_original>
// kernel: tpu_custom_call.1
$region0: #{tpu_custom_call.1}
  #allocation0 [shape = 'u32[]', space=smem, size = 0x4, offset = 0x4, fixed_abs, tag = 'smem constant byte address 0x4 - core index']
  #allocation1 [shape = 'u32[72,128]{1,0:T(1,128)}', space=vmem, size = 0x9000, scoped, tag = 'internal scratch']
  %s0 = inlined_call_operand.hbm [shape: bf16[2,8,32], index: 0, kind: input, shape index: {}]
  %s1 = inlined_call_operand.hbm [shape: bf16[2,8,32], index: 1, kind: input, shape index: {}]
  %s2 = inlined_call_operand.hbm [shape: bf16[2,8,32], index: 2, kind: input, shape index: {}]
  %s3 = inlined_call_operand.hbm [shape: f32[8,8], index: 3, kind: input, shape index: {}]
  %s4 = inlined_call_operand.hbm [shape: f32[8,8], index: 4, kind: input, shape index: {}]
  %s5 = inlined_call_operand.hbm [shape: f32[8,8], index: 5, kind: input, shape index: {}]
  %s6 = inlined_call_operand.vmem [shape: bf16[32,32], index: 6, kind: input, shape index: {}]
  %s7 = inlined_call_operand.vmem [shape: f32[1,32], index: 7, kind: input, shape index: {}]
  %s8 = inlined_call_operand.vmem [shape: bf16[32,32], index: 8, kind: input, shape index: {}]
  %s9 = inlined_call_operand.vmem [shape: f32[1,32], index: 9, kind: input, shape index: {}]
  %s10 = inlined_call_operand.vmem [shape: bf16[32,32], index: 10, kind: input, shape index: {}]
  %s11 = inlined_call_operand.vmem [shape: f32[1,32], index: 11, kind: input, shape index: {}]
  %s12 = inlined_call_operand.vmem [shape: f32[4,1,1,1], index: 12, kind: input, shape index: {}]
  %s13 = inlined_call_operand.hbm [shape: bf16[32,64], index: 13, kind: input, shape index: {}]
  %s14 = inlined_call_operand.hbm [shape: f32[1,64], index: 14, kind: input, shape index: {}]
  %s15 = inlined_call_operand.vmem [shape: bf16[64,32], index: 15, kind: input, shape index: {}]
  %s16 = inlined_call_operand.vmem [shape: f32[1,32], index: 16, kind: input, shape index: {}]
  %s17 = inlined_call_operand.vmem [shape: f32[1,32], index: 17, kind: input, shape index: {}]
  %s18 = inlined_call_operand.vmem [shape: f32[1,32], index: 18, kind: input, shape index: {}]
  %s19 = inlined_call_operand.vmem [shape: f32[1,32], index: 19, kind: input, shape index: {}]
  %s20 = inlined_call_operand.vmem [shape: f32[1,32], index: 20, kind: input, shape index: {}]
  %s21 = inlined_call_operand.hbm [shape: f32[2,8,32], index: 21, kind: output, shape index: {}]
  %s22 = sld [smem:[#allocation0]]
  $region149: #{tpu_custom_call.1} parent=0
    _
  %s24 = ssub.s32 1, %s22
  %s25 = scalar_select 0, %s24, %s22
  $region1: #{tpu_custom_call.1} parent=0
    #allocation2 [shape = 'u8[4096]{0}', space=vmem, size = 0x1000, scoped, tag = 'input window, operand 0']
    #allocation3 [shape = 's32[2]{0}', space=sflag, size = 0x8, scoped, tag = 'scoped memory for tpu_custom_call.1']
    #allocation4 [shape = 's32[2]{0}', space=sflag, size = 0x8, scoped, tag = 'scoped memory for tpu_custom_call.1']
    #allocation5 [shape = 'u8[4096]{0}', space=vmem, size = 0x1000, scoped, tag = 'input window, operand 1']
    #allocation6 [shape = 's32[2]{0}', space=sflag, size = 0x8, scoped, tag = 'scoped memory for tpu_custom_call.1']
    #allocation7 [shape = 'u8[4096]{0}', space=vmem, size = 0x1000, scoped, tag = 'input window, operand 2']
    #allocation8 [shape = 'u8[4096]{0}', space=vmem, size = 0x1000, scoped, tag = 'input window, operand 3, single buffered']
    #allocation9 [shape = 's32[1]{0}', space=sflag, size = 0x4, scoped, tag = 'scoped memory for tpu_custom_call.1']
    #allocation10 [shape = 'u8[4096]{0}', space=vmem, size = 0x1000, scoped, tag = 'input window, operand 4, single buffered']
    #allocation11 [shape = 'u8[4096]{0}', space=vmem, size = 0x1000, scoped, tag = 'input window, operand 5, single buffered']
    #allocation12 [shape = 's32[1]{0}', space=sflag, size = 0x4, scoped, tag = 'scoped memory for tpu_custom_call.1']
    #allocation13 [shape = 'u8[8192]{0}', space=vmem, size = 0x2000, scoped, tag = 'input window, operand 13, single buffered']
    #allocation14 [shape = 'u8[512]{0}', space=vmem, size = 0x400, scoped, tag = 'input window, operand 14, single buffered']
    #allocation15 [shape = 's32[1]{0}', space=sflag, size = 0x4, scoped, tag = 'scoped memory for tpu_custom_call.1']
    #allocation16 [shape = 'u8[8192]{0}', space=vmem, size = 0x2000, scoped, tag = 'output window, operand 0']
    %26 = vsyncpa [#allocation3], 0
    %s27 = scalar_lea.sflag [#allocation3], 1
    %28 = vsyncpa %s27, 0
    %29 = vsyncpa [#allocation6], 0
    %s30 = scalar_lea.sflag [#allocation6], 1
    %31 = vsyncpa %s30, 0
    %32 = vsyncpa [#allocation9], 0
    %33 = vsyncpa [#allocation12], 0
    %34 = vsyncpa [#allocation15], 0
    %35 = vsyncpa [#allocation4], 0
    %s36 = scalar_lea.sflag [#allocation4], 1
    %37 = vsyncpa %s36, 0
    loop: start=0, step=1, limit=4
    $region2: #{tpu_custom_call.1} parent=1 // loop_pre_header
      _
    $region3: #{tpu_custom_call.1} parent=1 // loop_header
      %s39 = sphi 0, %s43
      %p40 = scmp.ge.s32.totalorder %s39, 4
      %s49 = sphi 0, %s51
      %s52 = sphi 0, %s49
      %s53 = sphi 0, %s52
      %s69 = sphi 0, %s53
      %s75 = sphi 0, %s77
      %s78 = sphi 0, %s75
      %s79 = sphi 0, %s78
      %s95 = sphi 0, %s79
      %s101 = sphi 0, %s103
      %s104 = sphi 0, %s101
      %s105 = sphi 0, %s104
      %s121 = sphi 0, %s105
      %s125 = sphi 0, %s125
      %s127 = sphi 0, %s125
      %s128 = sphi 0, %s127
      %s142 = sphi 0, %s128
      %s146 = sphi 0, %s146
      %s148 = sphi 0, %s146
      %s149 = sphi 0, %s148
      %s163 = sphi 0, %s149
      %s167 = sphi 0, %s167
      %s169 = sphi 0, %s167
      %s170 = sphi 0, %s169
      %s184 = sphi 0, %s170
      %s188 = sphi 0, %s188
      %s190 = sphi 0, %s188
      %s191 = sphi 0, %s190
      %s205 = sphi 0, %s191
      %s209 = sphi 0, %s209
      %s211 = sphi 0, %s209
      %s212 = sphi 0, %s211
      %s226 = sphi 0, %s212
      %s230 = sphi 0, %s230
      %s232 = sphi 0, %s230
      %s233 = sphi 0, %s232
      %s247 = sphi 0, %s233
      %s251 = sphi 0, %s251
      %s253 = sphi 0, %s251
      %s254 = sphi 0, %s253
      %s268 = sphi 0, %s254
      %s272 = sphi 0, %s272
      %s274 = sphi 0, %s272
      %s275 = sphi 0, %s274
      %s289 = sphi 0, %s275
      %s293 = sphi 0, %s293
      %s295 = sphi 0, %s293
      %s296 = sphi 0, %s295
      %s310 = sphi 0, %s296
      %s314 = sphi 0, %s314
      %s316 = sphi 0, %s314
      %s317 = sphi 0, %s316
      %s331 = sphi 0, %s317
      %s335 = sphi 0, %s335
      %s337 = sphi 0, %s335
      %s338 = sphi 0, %s337
      %s352 = sphi 0, %s338
      %s356 = sphi 0, %s356
      %s358 = sphi 0, %s356
      %s359 = sphi 0, %s358
      %s373 = sphi 0, %s359
      %s377 = sphi 0, %s377
      %s379 = sphi 0, %s377
      %s380 = sphi 0, %s379
      %s394 = sphi 0, %s380
      %s398 = sphi 0, %s398
      %s400 = sphi 0, %s398
      %s401 = sphi 0, %s400
      %s415 = sphi 0, %s401
      %s419 = sphi 0, %s419
      %s421 = sphi 0, %s419
      %s422 = sphi 0, %s421
      %s436 = sphi 0, %s422
      %s440 = sphi 0, %s440
      %s442 = sphi 0, %s440
      %s443 = sphi 0, %s442
      %s457 = sphi 0, %s443
      %s461 = sphi 0, %s461
      %s463 = sphi 0, %s461
      %s464 = sphi 0, %s463
      %s478 = sphi 0, %s464
      %s482 = sphi 0, %s482
      %s484 = sphi 0, %s482
      %s485 = sphi 0, %s484
      %s499 = sphi 0, %s485
      %s505 = sphi 0, %s507
      %s508 = sphi 0, %s505
      %s509 = sphi 0, %s508
      %s525 = sphi 0, %s509
    $region4: #{tpu_custom_call.1} parent=1 // loop_header_branch
      %42 = sbr.rel (%p40) target = $region8
    $region5: #{tpu_custom_call.1} parent=1 // loop_body
      %s44 = ssub.s32 %s39, 1
      %s45 = ssub.s32 %s39, 2
      %s46 = sadd.s32 %s39, 1
      %s47 = ssub.s32 %s39, %s46
      %p48 = scmp.eq.s32.totalorder %s47, 0
      %s50 = sadd.s32 %s49, 1
      %s51 = scalar_select %p48, %s49, %s50
      %p54 = pneg %p48
      %p55 = scmp.eq.s32.totalorder %s39, 1
      %p56 = por %p54, %p55
      %p57 = scmp.ne.s32.totalorder %s49, %s52
      %p58 = scmp.eq.s32.totalorder %s39, 0
      %p59 = por %p57, %p58
      %p60 = scmp.ne.s32.totalorder %s49, %s52
      %p61 = scmp.eq.s32.totalorder %s44, 1
      %p62 = por %p60, %p61
      %p63 = scmp.ne.s32.totalorder %s52, %s53
      %p64 = scmp.eq.s32.totalorder %s44, 0
      %p65 = por %p63, %p64
      %p66 = scmp.ne.s32.totalorder %s52, %s53
      %p67 = scmp.eq.s32.totalorder %s45, 1
      %p68 = por %p66, %p67
      %p70 = scmp.ne.s32.totalorder %s53, %s69
      %p71 = scmp.eq.s32.totalorder %s45, 0
      %p72 = por %p70, %p71
      %s73 = ssub.s32 %s39, %s46
      %p74 = scmp.eq.s32.totalorder %s73, 0
      %s76 = sadd.s32 %s75, 1
      %s77 = scalar_select %p74, %s75, %s76
      %p80 = pneg %p74
      %p81 = scmp.eq.s32.totalorder %s39, 1
      %p82 = por %p80, %p81
      %p83 = scmp.ne.s32.totalorder %s75, %s78
      %p84 = scmp.eq.s32.totalorder %s39, 0
      %p85 = por %p83, %p84
      %p86 = scmp.ne.s32.totalorder %s75, %s78
      %p87 = scmp.eq.s32.totalorder %s44, 1
      %p88 = por %p86, %p87
      %p89 = scmp.ne.s32.totalorder %s78, %s79
      %p90 = scmp.eq.s32.totalorder %s44, 0
      %p91 = por %p89, %p90
      %p92 = scmp.ne.s32.totalorder %s78, %s79
      %p93 = scmp.eq.s32.totalorder %s45, 1
      %p94 = por %p92, %p93
      %p96 = scmp.ne.s32.totalorder %s79, %s95
      %p97 = scmp.eq.s32.totalorder %s45, 0
      %p98 = por %p96, %p97
      %s99 = ssub.s32 %s39, %s46
      %p100 = scmp.eq.s32.totalorder %s99, 0
      %s102 = sadd.s32 %s101, 1
      %s103 = scalar_select %p100, %s101, %s102
      %p106 = pneg %p100
      %p107 = scmp.eq.s32.totalorder %s39, 1
      %p108 = por %p106, %p107
      %p109 = scmp.ne.s32.totalorder %s101, %s104
      %p110 = scmp.eq.s32.totalorder %s39, 0
      %p111 = por %p109, %p110
      %p112 = scmp.ne.s32.totalorder %s101, %s104
      %p113 = scmp.eq.s32.totalorder %s44, 1
      %p114 = por %p112, %p113
      %p115 = scmp.ne.s32.totalorder %s104, %s105
      %p116 = scmp.eq.s32.totalorder %s44, 0
      %p117 = por %p115, %p116
      %p118 = scmp.ne.s32.totalorder %s104, %s105
      %p119 = scmp.eq.s32.totalorder %s45, 1
      %p120 = por %p118, %p119
      %p122 = scmp.ne.s32.totalorder %s105, %s121
      %p123 = scmp.eq.s32.totalorder %s45, 0
      %p124 = por %p122, %p123
      %s126 = sadd.s32 %s125, 1
      %p129 = scmp.eq.s32.totalorder %s39, 1
      %p130 = scmp.ne.s32.totalorder %s125, %s127
      %p131 = scmp.eq.s32.totalorder %s39, 0
      %p132 = por %p130, %p131
      %p133 = scmp.ne.s32.totalorder %s125, %s127
      %p134 = scmp.eq.s32.totalorder %s44, 1
      %p135 = por %p133, %p134
      %p136 = scmp.ne.s32.totalorder %s127, %s128
      %p137 = scmp.eq.s32.totalorder %s44, 0
      %p138 = por %p136, %p137
      %p139 = scmp.ne.s32.totalorder %s127, %s128
      %p140 = scmp.eq.s32.totalorder %s45, 1
      %p141 = por %p139, %p140
      %p143 = scmp.ne.s32.totalorder %s128, %s142
      %p144 = scmp.eq.s32.totalorder %s45, 0
      %p145 = por %p143, %p144
      %s147 = sadd.s32 %s146, 1
      %p150 = scmp.eq.s32.totalorder %s39, 1
      %p151 = scmp.ne.s32.totalorder %s146, %s148
      %p152 = scmp.eq.s32.totalorder %s39, 0
      %p153 = por %p151, %p152
      %p154 = scmp.ne.s32.totalorder %s146, %s148
      %p155 = scmp.eq.s32.totalorder %s44, 1
      %p156 = por %p154, %p155
      %p157 = scmp.ne.s32.totalorder %s148, %s149
      %p158 = scmp.eq.s32.totalorder %s44, 0
      %p159 = por %p157, %p158
      %p160 = scmp.ne.s32.totalorder %s148, %s149
      %p161 = scmp.eq.s32.totalorder %s45, 1
      %p162 = por %p160, %p161
      %p164 = scmp.ne.s32.totalorder %s149, %s163
      %p165 = scmp.eq.s32.totalorder %s45, 0
      %p166 = por %p164, %p165
      %s168 = sadd.s32 %s167, 1
      %p171 = scmp.eq.s32.totalorder %s39, 1
      %p172 = scmp.ne.s32.totalorder %s167, %s169
      %p173 = scmp.eq.s32.totalorder %s39, 0
      %p174 = por %p172, %p173
      %p175 = scmp.ne.s32.totalorder %s167, %s169
      %p176 = scmp.eq.s32.totalorder %s44, 1
      %p177 = por %p175, %p176
      %p178 = scmp.ne.s32.totalorder %s169, %s170
      %p179 = scmp.eq.s32.totalorder %s44, 0
      %p180 = por %p178, %p179
      %p181 = scmp.ne.s32.totalorder %s169, %s170
      %p182 = scmp.eq.s32.totalorder %s45, 1
      %p183 = por %p181, %p182
      %p185 = scmp.ne.s32.totalorder %s170, %s184
      %p186 = scmp.eq.s32.totalorder %s45, 0
      %p187 = por %p185, %p186
      %s189 = sadd.s32 %s188, 1
      %p192 = scmp.eq.s32.totalorder %s39, 1
      %p193 = scmp.ne.s32.totalorder %s188, %s190
      %p194 = scmp.eq.s32.totalorder %s39, 0
      %p195 = por %p193, %p194
      %p196 = scmp.ne.s32.totalorder %s188, %s190
      %p197 = scmp.eq.s32.totalorder %s44, 1
      %p198 = por %p196, %p197
      %p199 = scmp.ne.s32.totalorder %s190, %s191
      %p200 = scmp.eq.s32.totalorder %s44, 0
      %p201 = por %p199, %p200
      %p202 = scmp.ne.s32.totalorder %s190, %s191
      %p203 = scmp.eq.s32.totalorder %s45, 1
      %p204 = por %p202, %p203
      %p206 = scmp.ne.s32.totalorder %s191, %s205
      %p207 = scmp.eq.s32.totalorder %s45, 0
      %p208 = por %p206, %p207
      %s210 = sadd.s32 %s209, 1
      %p213 = scmp.eq.s32.totalorder %s39, 1
      %p214 = scmp.ne.s32.totalorder %s209, %s211
      %p215 = scmp.eq.s32.totalorder %s39, 0
      %p216 = por %p214, %p215
      %p217 = scmp.ne.s32.totalorder %s209, %s211
      %p218 = scmp.eq.s32.totalorder %s44, 1
      %p219 = por %p217, %p218
      %p220 = scmp.ne.s32.totalorder %s211, %s212
      %p221 = scmp.eq.s32.totalorder %s44, 0
      %p222 = por %p220, %p221
      %p223 = scmp.ne.s32.totalorder %s211, %s212
      %p224 = scmp.eq.s32.totalorder %s45, 1
      %p225 = por %p223, %p224
      %p227 = scmp.ne.s32.totalorder %s212, %s226
      %p228 = scmp.eq.s32.totalorder %s45, 0
      %p229 = por %p227, %p228
      %s231 = sadd.s32 %s230, 1
      %p234 = scmp.eq.s32.totalorder %s39, 1
      %p235 = scmp.ne.s32.totalorder %s230, %s232
      %p236 = scmp.eq.s32.totalorder %s39, 0
      %p237 = por %p235, %p236
      %p238 = scmp.ne.s32.totalorder %s230, %s232
      %p239 = scmp.eq.s32.totalorder %s44, 1
      %p240 = por %p238, %p239
      %p241 = scmp.ne.s32.totalorder %s232, %s233
      %p242 = scmp.eq.s32.totalorder %s44, 0
      %p243 = por %p241, %p242
      %p244 = scmp.ne.s32.totalorder %s232, %s233
      %p245 = scmp.eq.s32.totalorder %s45, 1
      %p246 = por %p244, %p245
      %p248 = scmp.ne.s32.totalorder %s233, %s247
      %p249 = scmp.eq.s32.totalorder %s45, 0
      %p250 = por %p248, %p249
      %s252 = sadd.s32 %s251, 1
      %p255 = scmp.eq.s32.totalorder %s39, 1
      %p256 = scmp.ne.s32.totalorder %s251, %s253
      %p257 = scmp.eq.s32.totalorder %s39, 0
      %p258 = por %p256, %p257
      %p259 = scmp.ne.s32.totalorder %s251, %s253
      %p260 = scmp.eq.s32.totalorder %s44, 1
      %p261 = por %p259, %p260
      %p262 = scmp.ne.s32.totalorder %s253, %s254
      %p263 = scmp.eq.s32.totalorder %s44, 0
      %p264 = por %p262, %p263
      %p265 = scmp.ne.s32.totalorder %s253, %s254
      %p266 = scmp.eq.s32.totalorder %s45, 1
      %p267 = por %p265, %p266
      %p269 = scmp.ne.s32.totalorder %s254, %s268
      %p270 = scmp.eq.s32.totalorder %s45, 0
      %p271 = por %p269, %p270
      %s273 = sadd.s32 %s272, 1
      %p276 = scmp.eq.s32.totalorder %s39, 1
      %p277 = scmp.ne.s32.totalorder %s272, %s274
      %p278 = scmp.eq.s32.totalorder %s39, 0
      %p279 = por %p277, %p278
      %p280 = scmp.ne.s32.totalorder %s272, %s274
      %p281 = scmp.eq.s32.totalorder %s44, 1
      %p282 = por %p280, %p281
      %p283 = scmp.ne.s32.totalorder %s274, %s275
      %p284 = scmp.eq.s32.totalorder %s44, 0
      %p285 = por %p283, %p284
      %p286 = scmp.ne.s32.totalorder %s274, %s275
      %p287 = scmp.eq.s32.totalorder %s45, 1
      %p288 = por %p286, %p287
      %p290 = scmp.ne.s32.totalorder %s275, %s289
      %p291 = scmp.eq.s32.totalorder %s45, 0
      %p292 = por %p290, %p291
      %s294 = sadd.s32 %s293, 1
      %p297 = scmp.eq.s32.totalorder %s39, 1
      %p298 = scmp.ne.s32.totalorder %s293, %s295
      %p299 = scmp.eq.s32.totalorder %s39, 0
      %p300 = por %p298, %p299
      %p301 = scmp.ne.s32.totalorder %s293, %s295
      %p302 = scmp.eq.s32.totalorder %s44, 1
      %p303 = por %p301, %p302
      %p304 = scmp.ne.s32.totalorder %s295, %s296
      %p305 = scmp.eq.s32.totalorder %s44, 0
      %p306 = por %p304, %p305
      %p307 = scmp.ne.s32.totalorder %s295, %s296
      %p308 = scmp.eq.s32.totalorder %s45, 1
      %p309 = por %p307, %p308
      %p311 = scmp.ne.s32.totalorder %s296, %s310
      %p312 = scmp.eq.s32.totalorder %s45, 0
      %p313 = por %p311, %p312
      %s315 = sadd.s32 %s314, 1
      %p318 = scmp.eq.s32.totalorder %s39, 1
      %p319 = scmp.ne.s32.totalorder %s314, %s316
      %p320 = scmp.eq.s32.totalorder %s39, 0
      %p321 = por %p319, %p320
      %p322 = scmp.ne.s32.totalorder %s314, %s316
      %p323 = scmp.eq.s32.totalorder %s44, 1
      %p324 = por %p322, %p323
      %p325 = scmp.ne.s32.totalorder %s316, %s317
      %p326 = scmp.eq.s32.totalorder %s44, 0
      %p327 = por %p325, %p326
      %p328 = scmp.ne.s32.totalorder %s316, %s317
      %p329 = scmp.eq.s32.totalorder %s45, 1
      %p330 = por %p328, %p329
      %p332 = scmp.ne.s32.totalorder %s317, %s331
      %p333 = scmp.eq.s32.totalorder %s45, 0
      %p334 = por %p332, %p333
      %s336 = sadd.s32 %s335, 1
      %p339 = scmp.eq.s32.totalorder %s39, 1
      %p340 = scmp.ne.s32.totalorder %s335, %s337
      %p341 = scmp.eq.s32.totalorder %s39, 0
      %p342 = por %p340, %p341
      %p343 = scmp.ne.s32.totalorder %s335, %s337
      %p344 = scmp.eq.s32.totalorder %s44, 1
      %p345 = por %p343, %p344
      %p346 = scmp.ne.s32.totalorder %s337, %s338
      %p347 = scmp.eq.s32.totalorder %s44, 0
      %p348 = por %p346, %p347
      %p349 = scmp.ne.s32.totalorder %s337, %s338
      %p350 = scmp.eq.s32.totalorder %s45, 1
      %p351 = por %p349, %p350
      %p353 = scmp.ne.s32.totalorder %s338, %s352
      %p354 = scmp.eq.s32.totalorder %s45, 0
      %p355 = por %p353, %p354
      %s357 = sadd.s32 %s356, 1
      %p360 = scmp.eq.s32.totalorder %s39, 1
      %p361 = scmp.ne.s32.totalorder %s356, %s358
      %p362 = scmp.eq.s32.totalorder %s39, 0
      %p363 = por %p361, %p362
      %p364 = scmp.ne.s32.totalorder %s356, %s358
      %p365 = scmp.eq.s32.totalorder %s44, 1
      %p366 = por %p364, %p365
      %p367 = scmp.ne.s32.totalorder %s358, %s359
      %p368 = scmp.eq.s32.totalorder %s44, 0
      %p369 = por %p367, %p368
      %p370 = scmp.ne.s32.totalorder %s358, %s359
      %p371 = scmp.eq.s32.totalorder %s45, 1
      %p372 = por %p370, %p371
      %p374 = scmp.ne.s32.totalorder %s359, %s373
      %p375 = scmp.eq.s32.totalorder %s45, 0
      %p376 = por %p374, %p375
      %s378 = sadd.s32 %s377, 1
      %p381 = scmp.eq.s32.totalorder %s39, 1
      %p382 = scmp.ne.s32.totalorder %s377, %s379
      %p383 = scmp.eq.s32.totalorder %s39, 0
      %p384 = por %p382, %p383
      %p385 = scmp.ne.s32.totalorder %s377, %s379
      %p386 = scmp.eq.s32.totalorder %s44, 1
      %p387 = por %p385, %p386
      %p388 = scmp.ne.s32.totalorder %s379, %s380
      %p389 = scmp.eq.s32.totalorder %s44, 0
      %p390 = por %p388, %p389
      %p391 = scmp.ne.s32.totalorder %s379, %s380
      %p392 = scmp.eq.s32.totalorder %s45, 1
      %p393 = por %p391, %p392
      %p395 = scmp.ne.s32.totalorder %s380, %s394
      %p396 = scmp.eq.s32.totalorder %s45, 0
      %p397 = por %p395, %p396
      %s399 = sadd.s32 %s398, 1
      %p402 = scmp.eq.s32.totalorder %s39, 1
      %p403 = scmp.ne.s32.totalorder %s398, %s400
      %p404 = scmp.eq.s32.totalorder %s39, 0
      %p405 = por %p403, %p404
      %p406 = scmp.ne.s32.totalorder %s398, %s400
      %p407 = scmp.eq.s32.totalorder %s44, 1
      %p408 = por %p406, %p407
      %p409 = scmp.ne.s32.totalorder %s400, %s401
      %p410 = scmp.eq.s32.totalorder %s44, 0
      %p411 = por %p409, %p410
      %p412 = scmp.ne.s32.totalorder %s400, %s401
      %p413 = scmp.eq.s32.totalorder %s45, 1
      %p414 = por %p412, %p413
      %p416 = scmp.ne.s32.totalorder %s401, %s415
      %p417 = scmp.eq.s32.totalorder %s45, 0
      %p418 = por %p416, %p417
      %s420 = sadd.s32 %s419, 1
      %p423 = scmp.eq.s32.totalorder %s39, 1
      %p424 = scmp.ne.s32.totalorder %s419, %s421
      %p425 = scmp.eq.s32.totalorder %s39, 0
      %p426 = por %p424, %p425
      %p427 = scmp.ne.s32.totalorder %s419, %s421
      %p428 = scmp.eq.s32.totalorder %s44, 1
      %p429 = por %p427, %p428
      %p430 = scmp.ne.s32.totalorder %s421, %s422
      %p431 = scmp.eq.s32.totalorder %s44, 0
      %p432 = por %p430, %p431
      %p433 = scmp.ne.s32.totalorder %s421, %s422
      %p434 = scmp.eq.s32.totalorder %s45, 1
      %p435 = por %p433, %p434
      %p437 = scmp.ne.s32.totalorder %s422, %s436
      %p438 = scmp.eq.s32.totalorder %s45, 0
      %p439 = por %p437, %p438
      %s441 = sadd.s32 %s440, 1
      %p444 = scmp.eq.s32.totalorder %s39, 1
      %p445 = scmp.ne.s32.totalorder %s440, %s442
      %p446 = scmp.eq.s32.totalorder %s39, 0
      %p447 = por %p445, %p446
      %p448 = scmp.ne.s32.totalorder %s440, %s442
      %p449 = scmp.eq.s32.totalorder %s44, 1
      %p450 = por %p448, %p449
      %p451 = scmp.ne.s32.totalorder %s442, %s443
      %p452 = scmp.eq.s32.totalorder %s44, 0
      %p453 = por %p451, %p452
      %p454 = scmp.ne.s32.totalorder %s442, %s443
      %p455 = scmp.eq.s32.totalorder %s45, 1
      %p456 = por %p454, %p455
      %p458 = scmp.ne.s32.totalorder %s443, %s457
      %p459 = scmp.eq.s32.totalorder %s45, 0
      %p460 = por %p458, %p459
      %s462 = sadd.s32 %s461, 1
      %p465 = scmp.eq.s32.totalorder %s39, 1
      %p466 = scmp.ne.s32.totalorder %s461, %s463
      %p467 = scmp.eq.s32.totalorder %s39, 0
      %p468 = por %p466, %p467
      %p469 = scmp.ne.s32.totalorder %s461, %s463
      %p470 = scmp.eq.s32.totalorder %s44, 1
      %p471 = por %p469, %p470
      %p472 = scmp.ne.s32.totalorder %s463, %s464
      %p473 = scmp.eq.s32.totalorder %s44, 0
      %p474 = por %p472, %p473
      %p475 = scmp.ne.s32.totalorder %s463, %s464
      %p476 = scmp.eq.s32.totalorder %s45, 1
      %p477 = por %p475, %p476
      %p479 = scmp.ne.s32.totalorder %s464, %s478
      %p480 = scmp.eq.s32.totalorder %s45, 0
      %p481 = por %p479, %p480
      %s483 = sadd.s32 %s482, 1
      %p486 = scmp.eq.s32.totalorder %s39, 1
      %p487 = scmp.ne.s32.totalorder %s482, %s484
      %p488 = scmp.eq.s32.totalorder %s39, 0
      %p489 = por %p487, %p488
      %p490 = scmp.ne.s32.totalorder %s482, %s484
      %p491 = scmp.eq.s32.totalorder %s44, 1
      %p492 = por %p490, %p491
      %p493 = scmp.ne.s32.totalorder %s484, %s485
      %p494 = scmp.eq.s32.totalorder %s44, 0
      %p495 = por %p493, %p494
      %p496 = scmp.ne.s32.totalorder %s484, %s485
      %p497 = scmp.eq.s32.totalorder %s45, 1
      %p498 = por %p496, %p497
      %p500 = scmp.ne.s32.totalorder %s485, %s499
      %p501 = scmp.eq.s32.totalorder %s45, 0
      %p502 = por %p500, %p501
      %s503 = ssub.s32 %s39, %s46
      %p504 = scmp.eq.s32.totalorder %s503, 0
      %s506 = sadd.s32 %s505, 1
      %s507 = scalar_select %p504, %s505, %s506
      %p510 = pneg %p504
      %p511 = scmp.eq.s32.totalorder %s39, 1
      %p512 = por %p510, %p511
      %p513 = scmp.ne.s32.totalorder %s505, %s508
      %p514 = scmp.eq.s32.totalorder %s39, 0
      %p515 = por %p513, %p514
      %p516 = scmp.ne.s32.totalorder %s505, %s508
      %p517 = scmp.eq.s32.totalorder %s44, 1
      %p518 = por %p516, %p517
      %p519 = scmp.ne.s32.totalorder %s508, %s509
      %p520 = scmp.eq.s32.totalorder %s44, 0
      %p521 = por %p519, %p520
      %p522 = scmp.ne.s32.totalorder %s508, %s509
      %p523 = scmp.eq.s32.totalorder %s45, 1
      %p524 = por %p522, %p523
      %p526 = scmp.ne.s32.totalorder %s509, %s525
      %p527 = scmp.eq.s32.totalorder %s45, 0
      %p528 = por %p526, %p527
      %p529 = scmp.le.s32.totalorder 1, %s39
      %p530 = scmp.lt.s32.totalorder %s39, 3
      %p531 = pnand %p529, %p530
      %p532 = pneg %p531
      // Predicated region
      $region9: #{tpu_custom_call.1} parent=5 // pred_check
        _
      $region10: #{tpu_custom_call.1} parent=5 // pred_check_branch
        %534 = sbr.rel (%p531) target = $region12
      $region11: #{tpu_custom_call.1} parent=5 // pred_region
        %s535 = ssub.s32 %s39, 1
        // Predicated region
        $region13: #{tpu_custom_call.1} parent=11 // pred_check
          %p536 = pneg %p138
        $region14: #{tpu_custom_call.1} parent=11 // pred_check_branch
          %538 = sbr.rel (%p536) target = $region16
        $region15: #{tpu_custom_call.1} parent=11 // pred_region
          %540 = vsyncadd [#allocation9], 0
          %s542 = sshll.u32 %s3, 4
          %s543 = int_to_ptr.hbm [resolvable:$true] %s542
          %s544 = sshll.u32 [#allocation8], 4
          %s545 = int_to_ptr.vmem [resolvable:$true] %s544
          %547 = dma.hbm_to_vmem [thread:$0]  %s543, 128, %s545, [#allocation9]
        $region16: #{tpu_custom_call.1} parent=11 // pred_fallthru
          _
        // Predicated region
        $region17: #{tpu_custom_call.1} parent=11 // pred_check
          %p548 = pneg %p159
        $region18: #{tpu_custom_call.1} parent=11 // pred_check_branch
          %550 = sbr.rel (%p548) target = $region20
        $region19: #{tpu_custom_call.1} parent=11 // pred_region
          %552 = vsyncadd [#allocation9], 0
          %s554 = sshll.u32 %s4, 4
          %s555 = int_to_ptr.hbm [resolvable:$true] %s554
          %s556 = sshll.u32 [#allocation10], 4
          %s557 = int_to_ptr.vmem [resolvable:$true] %s556
          %559 = dma.hbm_to_vmem [thread:$0]  %s555, 128, %s557, [#allocation9]
        $region20: #{tpu_custom_call.1} parent=11 // pred_fallthru
          _
        // Predicated region
        $region21: #{tpu_custom_call.1} parent=11 // pred_check
          %p560 = pneg %p180
        $region22: #{tpu_custom_call.1} parent=11 // pred_check_branch
          %562 = sbr.rel (%p560) target = $region24
        $region23: #{tpu_custom_call.1} parent=11 // pred_region
          %564 = vsyncadd [#allocation12], 0
          %s566 = sshll.u32 %s5, 4
          %s567 = int_to_ptr.hbm [resolvable:$true] %s566
          %s568 = sshll.u32 [#allocation11], 4
          %s569 = int_to_ptr.vmem [resolvable:$true] %s568
          %571 = dma.hbm_to_vmem [thread:$0]  %s567, 128, %s569, [#allocation12]
        $region24: #{tpu_custom_call.1} parent=11 // pred_fallthru
          _
        // Predicated region
        $region25: #{tpu_custom_call.1} parent=11 // pred_check
          %p572 = pneg %p201
        $region26: #{tpu_custom_call.1} parent=11 // pred_check_branch
          %574 = sbr.rel (%p572) target = $region28
        $region27: #{tpu_custom_call.1} parent=11 // pred_region
          _
        $region28: #{tpu_custom_call.1} parent=11 // pred_fallthru
          _
        // Predicated region
        $region29: #{tpu_custom_call.1} parent=11 // pred_check
          %p575 = pneg %p222
        $region30: #{tpu_custom_call.1} parent=11 // pred_check_branch
          %577 = sbr.rel (%p575) target = $region32
        $region31: #{tpu_custom_call.1} parent=11 // pred_region
          _
        $region32: #{tpu_custom_call.1} parent=11 // pred_fallthru
          _
        // Predicated region
        $region33: #{tpu_custom_call.1} parent=11 // pred_check
          %p578 = pneg %p243
        $region34: #{tpu_custom_call.1} parent=11 // pred_check_branch
          %580 = sbr.rel (%p578) target = $region36
        $region35: #{tpu_custom_call.1} parent=11 // pred_region
          _
        $region36: #{tpu_custom_call.1} parent=11 // pred_fallthru
          _
        // Predicated region
        $region37: #{tpu_custom_call.1} parent=11 // pred_check
          %p581 = pneg %p264
        $region38: #{tpu_custom_call.1} parent=11 // pred_check_branch
          %583 = sbr.rel (%p581) target = $region40
        $region39: #{tpu_custom_call.1} parent=11 // pred_region
          _
        $region40: #{tpu_custom_call.1} parent=11 // pred_fallthru
          _
        // Predicated region
        $region41: #{tpu_custom_call.1} parent=11 // pred_check
          %p584 = pneg %p285
        $region42: #{tpu_custom_call.1} parent=11 // pred_check_branch
          %586 = sbr.rel (%p584) target = $region44
        $region43: #{tpu_custom_call.1} parent=11 // pred_region
          _
        $region44: #{tpu_custom_call.1} parent=11 // pred_fallthru
          _
        // Predicated region
        $region45: #{tpu_custom_call.1} parent=11 // pred_check
          %p587 = pneg %p306
        $region46: #{tpu_custom_call.1} parent=11 // pred_check_branch
          %589 = sbr.rel (%p587) target = $region48
        $region47: #{tpu_custom_call.1} parent=11 // pred_region
          _
        $region48: #{tpu_custom_call.1} parent=11 // pred_fallthru
          _
        // Predicated region
        $region49: #{tpu_custom_call.1} parent=11 // pred_check
          %p590 = pneg %p327
        $region50: #{tpu_custom_call.1} parent=11 // pred_check_branch
          %592 = sbr.rel (%p590) target = $region52
        $region51: #{tpu_custom_call.1} parent=11 // pred_region
          _
        $region52: #{tpu_custom_call.1} parent=11 // pred_fallthru
          _
        // Predicated region
        $region53: #{tpu_custom_call.1} parent=11 // pred_check
          %p593 = pneg %p348
        $region54: #{tpu_custom_call.1} parent=11 // pred_check_branch
          %595 = sbr.rel (%p593) target = $region56
        $region55: #{tpu_custom_call.1} parent=11 // pred_region
          %597 = vsyncadd [#allocation12], 0
          %s598 = sshll.u32 %s13, 4
          %s599 = int_to_ptr.hbm [resolvable:$true] %s598
          %s600 = sshll.u32 [#allocation13], 4
          %s601 = int_to_ptr.vmem [resolvable:$true] %s600
          %606 = dma.hbm_to_vmem [thread:$0]  %s599, 256, %s601, [#allocation12], 64, 64, 4
        $region56: #{tpu_custom_call.1} parent=11 // pred_fallthru
          _
        // Predicated region
        $region57: #{tpu_custom_call.1} parent=11 // pred_check
          %p607 = pneg %p369
        $region58: #{tpu_custom_call.1} parent=11 // pred_check_branch
          %609 = sbr.rel (%p607) target = $region60
        $region59: #{tpu_custom_call.1} parent=11 // pred_region
          %611 = vsyncadd [#allocation15], 0
          %s613 = sshll.u32 %s14, 4
          %s614 = int_to_ptr.hbm [resolvable:$true] %s613
          %s615 = sshll.u32 [#allocation14], 4
          %s616 = int_to_ptr.vmem [resolvable:$true] %s615
          %618 = dma.hbm_to_vmem [thread:$0]  %s614, 16, %s616, [#allocation15]
        $region60: #{tpu_custom_call.1} parent=11 // pred_fallthru
          _
        // Predicated region
        $region61: #{tpu_custom_call.1} parent=11 // pred_check
          %p619 = pneg %p390
        $region62: #{tpu_custom_call.1} parent=11 // pred_check_branch
          %621 = sbr.rel (%p619) target = $region64
        $region63: #{tpu_custom_call.1} parent=11 // pred_region
          _
        $region64: #{tpu_custom_call.1} parent=11 // pred_fallthru
          _
        // Predicated region
        $region65: #{tpu_custom_call.1} parent=11 // pred_check
          %p622 = pneg %p411
        $region66: #{tpu_custom_call.1} parent=11 // pred_check_branch
          %624 = sbr.rel (%p622) target = $region68
        $region67: #{tpu_custom_call.1} parent=11 // pred_region
          _
        $region68: #{tpu_custom_call.1} parent=11 // pred_fallthru
          _
        // Predicated region
        $region69: #{tpu_custom_call.1} parent=11 // pred_check
          %p625 = pneg %p432
        $region70: #{tpu_custom_call.1} parent=11 // pred_check_branch
          %627 = sbr.rel (%p625) target = $region72
        $region71: #{tpu_custom_call.1} parent=11 // pred_region
          _
        $region72: #{tpu_custom_call.1} parent=11 // pred_fallthru
          _
        // Predicated region
        $region73: #{tpu_custom_call.1} parent=11 // pred_check
          %p628 = pneg %p453
        $region74: #{tpu_custom_call.1} parent=11 // pred_check_branch
          %630 = sbr.rel (%p628) target = $region76
        $region75: #{tpu_custom_call.1} parent=11 // pred_region
          _
        $region76: #{tpu_custom_call.1} parent=11 // pred_fallthru
          _
        // Predicated region
        $region77: #{tpu_custom_call.1} parent=11 // pred_check
          %p631 = pneg %p474
        $region78: #{tpu_custom_call.1} parent=11 // pred_check_branch
          %633 = sbr.rel (%p631) target = $region80
        $region79: #{tpu_custom_call.1} parent=11 // pred_region
          _
        $region80: #{tpu_custom_call.1} parent=11 // pred_fallthru
          _
        // Predicated region
        $region81: #{tpu_custom_call.1} parent=11 // pred_check
          %p634 = pneg %p495
        $region82: #{tpu_custom_call.1} parent=11 // pred_check_branch
          %636 = sbr.rel (%p634) target = $region84
        $region83: #{tpu_custom_call.1} parent=11 // pred_region
          _
        $region84: #{tpu_custom_call.1} parent=11 // pred_fallthru
          _
      $region12: #{tpu_custom_call.1} parent=5 // pred_fallthru
        _
      %p637 = scmp.lt.s32.totalorder %s39, 2
      // Predicated region
      $region85: #{tpu_custom_call.1} parent=5 // pred_check
        %p638 = pneg %p637
      $region86: #{tpu_custom_call.1} parent=5 // pred_check_branch
        %640 = sbr.rel (%p638) target = $region88
      $region87: #{tpu_custom_call.1} parent=5 // pred_region
        // Predicated region
        $region89: #{tpu_custom_call.1} parent=87 // pred_check
          %p641 = pneg %p59
        $region90: #{tpu_custom_call.1} parent=87 // pred_check_branch
          %643 = sbr.rel (%p641) target = $region92
        $region91: #{tpu_custom_call.1} parent=87 // pred_region
          %s644 = sand.u32 %s49, 1
          %s645 = scalar_lea.sflag [#allocation3], %s644
          %s646 = sand.u32 %s49, 1
          %s647 = smul.addr %s646, 4
          %s648 = scalar_lea.vmem [#allocation2], %s647
          %650 = vsyncadd %s645, 0
          %s651 = smul.addr %s39, 4
          %s652 = scalar_lea.hbm %s0, %s651
          %s654 = sshll.u32 %s652, 4
          %s655 = int_to_ptr.hbm [resolvable:$true] %s654
          %s656 = sshll.u32 %s648, 4
          %s657 = int_to_ptr.vmem [resolvable:$true] %s656
          %659 = dma.hbm_to_vmem [thread:$0]  %s655, 64, %s657, %s645
        $region92: #{tpu_custom_call.1} parent=87 // pred_fallthru
          _
        // Predicated region
        $region93: #{tpu_custom_call.1} parent=87 // pred_check
          %p660 = pneg %p85
        $region94: #{tpu_custom_call.1} parent=87 // pred_check_branch
          %662 = sbr.rel (%p660) target = $region96
        $region95: #{tpu_custom_call.1} parent=87 // pred_region
          %s663 = sand.u32 %s39, 1
          %s664 = scalar_lea.sflag [#allocation6], %s663
          %s665 = sand.u32 %s75, 1
          %s666 = smul.addr %s665, 4
          %s667 = scalar_lea.vmem [#allocation5], %s666
          %669 = vsyncadd %s664, 0
          %s670 = smul.addr %s39, 4
          %s671 = scalar_lea.hbm %s1, %s670
          %s673 = sshll.u32 %s671, 4
          %s674 = int_to_ptr.hbm [resolvable:$true] %s673
          %s675 = sshll.u32 %s667, 4
          %s676 = int_to_ptr.vmem [resolvable:$true] %s675
          %678 = dma.hbm_to_vmem [thread:$0]  %s674, 64, %s676, %s664
        $region96: #{tpu_custom_call.1} parent=87 // pred_fallthru
          _
        // Predicated region
        $region97: #{tpu_custom_call.1} parent=87 // pred_check
          %p679 = pneg %p111
        $region98: #{tpu_custom_call.1} parent=87 // pred_check_branch
          %681 = sbr.rel (%p679) target = $region100
        $region99: #{tpu_custom_call.1} parent=87 // pred_region
          %s682 = sand.u32 %s39, 1
          %s683 = scalar_lea.sflag [#allocation6], %s682
          %s684 = sand.u32 %s101, 1
          %s685 = smul.addr %s684, 4
          %s686 = scalar_lea.vmem [#allocation7], %s685
          %688 = vsyncadd %s683, 0
          %s689 = smul.addr %s39, 4
          %s690 = scalar_lea.hbm %s2, %s689
          %s692 = sshll.u32 %s690, 4
          %s693 = int_to_ptr.hbm [resolvable:$true] %s692
          %s694 = sshll.u32 %s686, 4
          %s695 = int_to_ptr.vmem [resolvable:$true] %s694
          %697 = dma.hbm_to_vmem [thread:$0]  %s693, 64, %s695, %s683
        $region100: #{tpu_custom_call.1} parent=87 // pred_fallthru
          _
      $region88: #{tpu_custom_call.1} parent=5 // pred_fallthru
        _
      %p698 = scmp.le.s32.totalorder 1, %s39
      %p699 = scmp.lt.s32.totalorder %s39, 3
      %p700 = pnand %p698, %p699
      %p701 = pneg %p700
      // Predicated region
      $region101: #{tpu_custom_call.1} parent=5 // pred_check
        _
      $region102: #{tpu_custom_call.1} parent=5 // pred_check_branch
        %703 = sbr.rel (%p700) target = $region104
      $region103: #{tpu_custom_call.1} parent=5 // pred_region
        %s704 = ssub.s32 %s39, 1
        %s705 = sand.u32 %s52, 1
        %s706 = scalar_lea.sflag [#allocation3], %s705
        %s707 = sand.u32 %s52, 1
        %s708 = smul.addr %s707, 4
        %s709 = scalar_lea.vmem [#allocation2], %s708
        // Predicated region
        $region105: #{tpu_custom_call.1} parent=103 // pred_check
          %p710 = pneg %p65
        $region106: #{tpu_custom_call.1} parent=103 // pred_check_branch
          %712 = sbr.rel (%p710) target = $region108
        $region107: #{tpu_custom_call.1} parent=103 // pred_region
          %714 = dma.done %s706, 64
        $region108: #{tpu_custom_call.1} parent=103 // pred_fallthru
          _
        %s715 = sand.u32 %s44, 1
        %s716 = scalar_lea.sflag [#allocation6], %s715
        %s717 = sand.u32 %s78, 1
        %s718 = smul.addr %s717, 4
        %s719 = scalar_lea.vmem [#allocation5], %s718
        // Predicated region
        $region109: #{tpu_custom_call.1} parent=103 // pred_check
          %p720 = pneg %p91
        $region110: #{tpu_custom_call.1} parent=103 // pred_check_branch
          %722 = sbr.rel (%p720) target = $region112
        $region111: #{tpu_custom_call.1} parent=103 // pred_region
          %724 = dma.done %s716, 64
        $region112: #{tpu_custom_call.1} parent=103 // pred_fallthru
          _
        %s725 = sand.u32 %s44, 1
        %s726 = scalar_lea.sflag [#allocation6], %s725
        %s727 = sand.u32 %s104, 1
        %s728 = smul.addr %s727, 4
        %s729 = scalar_lea.vmem [#allocation7], %s728
        // Predicated region
        $region113: #{tpu_custom_call.1} parent=103 // pred_check
          %p730 = pneg %p117
        $region114: #{tpu_custom_call.1} parent=103 // pred_check_branch
          %732 = sbr.rel (%p730) target = $region116
        $region115: #{tpu_custom_call.1} parent=103 // pred_region
          %734 = dma.done %s726, 64
        $region116: #{tpu_custom_call.1} parent=103 // pred_fallthru
          _
        // Predicated region
        $region117: #{tpu_custom_call.1} parent=103 // pred_check
          %p735 = pneg %p138
        $region118: #{tpu_custom_call.1} parent=103 // pred_check_branch
          %737 = sbr.rel (%p735) target = $region120
        $region119: #{tpu_custom_call.1} parent=103 // pred_region
          %739 = dma.done [#allocation9], 128
        $region120: #{tpu_custom_call.1} parent=103 // pred_fallthru
          _
        // Predicated region
        $region121: #{tpu_custom_call.1} parent=103 // pred_check
          %p740 = pneg %p159
        $region122: #{tpu_custom_call.1} parent=103 // pred_check_branch
          %742 = sbr.rel (%p740) target = $region124
        $region123: #{tpu_custom_call.1} parent=103 // pred_region
          %744 = dma.done [#allocation9], 128
        $region124: #{tpu_custom_call.1} parent=103 // pred_fallthru
          _
        // Predicated region
        $region125: #{tpu_custom_call.1} parent=103 // pred_check
          %p745 = pneg %p180
        $region126: #{tpu_custom_call.1} parent=103 // pred_check_branch
          %747 = sbr.rel (%p745) target = $region128
        $region127: #{tpu_custom_call.1} parent=103 // pred_region
          %749 = dma.done [#allocation12], 128
        $region128: #{tpu_custom_call.1} parent=103 // pred_fallthru
          _
        // Predicated region
        $region129: #{tpu_custom_call.1} parent=103 // pred_check
          %p750 = pneg %p348
        $region130: #{tpu_custom_call.1} parent=103 // pred_check_branch
          %752 = sbr.rel (%p750) target = $region132
        $region131: #{tpu_custom_call.1} parent=103 // pred_region
          %754 = dma.done [#allocation12], 256
        $region132: #{tpu_custom_call.1} parent=103 // pred_fallthru
          _
        // Predicated region
        $region133: #{tpu_custom_call.1} parent=103 // pred_check
          %p755 = pneg %p369
        $region134: #{tpu_custom_call.1} parent=103 // pred_check_branch
          %757 = sbr.rel (%p755) target = $region136
        $region135: #{tpu_custom_call.1} parent=103 // pred_region
          %759 = dma.done [#allocation15], 16
        $region136: #{tpu_custom_call.1} parent=103 // pred_fallthru
          _
        %s760 = sand.u32 %s52, 1
        %s761 = scalar_lea.sflag [#allocation3], %s760
        %s762 = sand.u32 %s52, 1
        %s763 = smul.addr %s762, 4
        %s764 = scalar_lea.vmem [#allocation2], %s763
        %p765 = pneg %p65
        %p766 = pneg %p62
        %s767 = sand.u32 %s44, 1
        %s768 = scalar_lea.sflag [#allocation6], %s767
        %s769 = sand.u32 %s78, 1
        %s770 = smul.addr %s769, 4
        %s771 = scalar_lea.vmem [#allocation5], %s770
        %p772 = pneg %p91
        %p773 = pneg %p88
        %s774 = sand.u32 %s44, 1
        %s775 = scalar_lea.sflag [#allocation6], %s774
        %s776 = sand.u32 %s104, 1
        %s777 = smul.addr %s776, 4
        %s778 = scalar_lea.vmem [#allocation7], %s777
        %p779 = pneg %p117
        %p780 = pneg %p114
        %p781 = pneg %p138
        %p782 = pneg %p135
        %p783 = pneg %p159
        %p784 = pneg %p156
        %p785 = pneg %p180
        %p786 = pneg %p177
        %p787 = pneg %p201
        %p788 = pneg %p198
        %p789 = pneg %p222
        %p790 = pneg %p219
        %p791 = pneg %p243
        %p792 = pneg %p240
        %p793 = pneg %p264
        %p794 = pneg %p261
        %p795 = pneg %p285
        %p796 = pneg %p282
        %p797 = pneg %p306
        %p798 = pneg %p303
        %p799 = pneg %p327
        %p800 = pneg %p324
        %p801 = pneg %p348
        %p802 = pneg %p345
        %p803 = pneg %p369
        %p804 = pneg %p366
        %p805 = pneg %p390
        %p806 = pneg %p387
        %p807 = pneg %p411
        %p808 = pneg %p408
        %p809 = pneg %p432
        %p810 = pneg %p429
        %p811 = pneg %p453
        %p812 = pneg %p450
        %p813 = pneg %p474
        %p814 = pneg %p471
        %p815 = pneg %p495
        %p816 = pneg %p492
        %p817 = pneg %p521
        %p818 = pneg %p518
        %s819 = sand.u32 %s508, 1
        %s820 = scalar_lea.sflag [#allocation4], %s819
        %s821 = sand.u32 %s508, 1
        %s822 = smul.addr %s821, 8
        %s823 = scalar_lea.vmem [#allocation16], %s822
        %v825 = vld [vmem:[%s709] sm:$0xf]
        %v826 = vld [vmem:[%s719] sm:$0xf]
        %v827 = vld [vmem:[%s729] sm:$0xf]
        %v828 = vunpack.c.l.bf16 %v825
        %v830 = vunpack.c.l.b16 %v826
        %v831 = vpack.c.b16 %v830, %v830
        %vm832 = vcmask 1043456
        %v835 = vsel %vm832, %v825, %v831
        %v836 = vld [vmem:[%s6] sm:$0xf]
        %v837 = vld [vmem:[%s6 + $0x4] sm:$0xf]
        %v838 = vld [vmem:[%s6 + $0x8] sm:$0xf]
        %v839 = vld [vmem:[%s6 + $0xc] sm:$0xf]
        %v840 = vld [vmem:[%s7] sm:$0x1]
        %v842 = vperm.slane %v840, 0
        %v848 = vunpack.c.l.b16 %v836
        %v849 = vunpack.c.l.b16 %v837
        %v850 = vunpack.c.l.b16 %v838
        %v851 = vunpack.c.l.b16 %v839
        %v852 = vpack.c.b16 %v849, %v848
        %v853 = vpack.c.b16 %v851, %v850
        %vm856 = vcmask 261120
        %v857 = vsel %vm856, %v835, 0
        %859 = vmatpush.bf16.msra.mxu0 0
        %860 = vmatpush.bf16.msra.mxu0 0
        %861 = vmatpush.bf16.msra.mxu0 0
        %862 = vmatpush.bf16.msra.mxu0 0
        %863 = vmatpush.bf16.msra.mxu0 0
        %864 = vmatpush.bf16.msra.mxu0 0
        %865 = vmatpush.bf16.msra.mxu0 %v853
        %866 = vmatpush.bf16.msra.mxu0 %v852
        %867 = vmatmul.bf16.gmra.mxu0 %v857
        %v868 = vpop.f32.mrf.mxu0
        %v869 = vadd.f32 %v842, %v868
        %v870 = vpop.f32.mrf.mxu0
        %v871 = vadd.f32 %v842, %v870
        %872 = vdwg.mxu0
        %v873 = vld [vmem:[%s8] sm:$0xf]
        %v874 = vld [vmem:[%s8 + $0x4] sm:$0xf]
        %v875 = vld [vmem:[%s8 + $0x8] sm:$0xf]
        %v876 = vld [vmem:[%s8 + $0xc] sm:$0xf]
        %v877 = vld [vmem:[%s9] sm:$0x1]
        %v879 = vperm.slane %v877, 0
        %v885 = vunpack.c.l.b16 %v873
        %v886 = vunpack.c.l.b16 %v874
        %v887 = vunpack.c.l.b16 %v875
        %v888 = vunpack.c.l.b16 %v876
        %v889 = vpack.c.b16 %v886, %v885
        %v890 = vpack.c.b16 %v888, %v887
        %v894 = vsel %vm856, %v827, 0
        %896 = vmatpush.bf16.msra.mxu0 0
        %897 = vmatpush.bf16.msra.mxu0 0
        %898 = vmatpush.bf16.msra.mxu0 0
        %899 = vmatpush.bf16.msra.mxu0 0
        %900 = vmatpush.bf16.msra.mxu0 0
        %901 = vmatpush.bf16.msra.mxu0 0
        %902 = vmatpush.bf16.msra.mxu0 %v890
        %903 = vmatpush.bf16.msra.mxu0 %v889
        %904 = vmatmul.bf16.gmra.mxu0 %v894
        %v905 = vpop.f32.mrf.mxu0
        %v906 = vadd.f32 %v879, %v905
        %v907 = vpop.f32.mrf.mxu0
        %908 = vdwg.mxu0
        %v909 = vpack.c.bf16 %v869, %v869
        %911 = vrot.lane.b32.xlu0 %v909, 120
        %v912 = vpop.permute.xlu0 %911
        %913 = vrot.lane.b32.xlu0 %v909, 112
        %v914 = vpop.permute.xlu0 %913
        %915 = vrot.lane.b32.xlu0 %v909, 104
        %v916 = vpop.permute.xlu0 %915
        %v919 = vpack.i.b16 %v912, %v909
        %v920 = vshrl.u32 %v909, 16
        %v921 = vshrl.u32 %v912, 16
        %v922 = vpack.i.b16 %v921, %v920
        %v925 = vpack.i.b16 %v916, %v914
        %v926 = vshrl.u32 %v914, 16
        %v927 = vshrl.u32 %v916, 16
        %v928 = vpack.i.b16 %v927, %v926
        %v931 = vunpack.c.l.s4 1983009808
        %v932 = vunpack.c.0.s8 %v931
        %v933 = vperm.slane %v919, %v932
        %v936 = vunpack.c.l.s4 1983009808
        %v937 = vunpack.c.0.s8 %v936
        %v938 = vperm.slane %v925, %v937
        %v939 = vrot.slane %v938, 4
        %vm940 = vcmask 1047556
        %v941 = vsel %vm940, %v939, %v933
        %v942 = vrot.slane %v933, 4
        %v943 = vsel %vm940, %v938, %v942
        %v945 = vunpack.c.l.s4 1934713408
        %v946 = vunpack.c.0.s8 %v945
        %v947 = vperm.slane %v941, %v946
        %v949 = vunpack.c.l.s4 1934713408
        %v950 = vunpack.c.0.s8 %v949
        %v951 = vperm.slane %v943, %v950
        %v952 = vrot.slane %v947, 4
        %v953 = vsel %vm940, 0, %v952
        %v954 = vrot.slane %v951, 4
        %v955 = vsel %vm940, 0, %v954
        %v958 = vunpack.c.l.s4 1983009808
        %v959 = vunpack.c.0.s8 %v958
        %v960 = vperm.slane %v922, %v959
        %v963 = vunpack.c.l.s4 1983009808
        %v964 = vunpack.c.0.s8 %v963
        %v965 = vperm.slane %v928, %v964
        %v966 = vrot.slane %v965, 4
        %v967 = vsel %vm940, %v966, %v960
        %v968 = vrot.slane %v960, 4
        %v969 = vsel %vm940, %v965, %v968
        %v971 = vunpack.c.l.s4 1934713408
        %v972 = vunpack.c.0.s8 %v971
        %v973 = vperm.slane %v967, %v972
        %v975 = vunpack.c.l.s4 1934713408
        %v976 = vunpack.c.0.s8 %v975
        %v977 = vperm.slane %v969, %v976
        %v978 = vrot.slane %v973, 4
        %v979 = vsel %vm940, 0, %v978
        %v980 = vrot.slane %v977, 4
        %v981 = vsel %vm940, 0, %v980
        %v982 = vsel %vm940, %v954, %v947
        %v984 = vunpack.c.l.s4 1983009808
        %v985 = vunpack.c.0.s8 %v984
        %v986 = vperm.slane %v982, %v985
        %v987 = vrot.slane %v955, 4
        %v988 = vsel %vm940, %v987, %v953
        %v990 = vunpack.c.l.s4 1983009808
        %v991 = vunpack.c.0.s8 %v990
        %v992 = vperm.slane %v988, %v991
        %v993 = vrot.slane %v992, 4
        %v994 = vsel %vm940, %v993, %v986
        %v996 = vunpack.c.l.s4 1934713408
        %v997 = vunpack.c.0.s8 %v996
        %v998 = vperm.slane %v994, %v997
        %v999 = vrot.slane %v998, 4
        %v1000 = vsel %vm940, 0, %v999
        %v1001 = vsel %vm940, %v980, %v973
        %v1003 = vunpack.c.l.s4 1983009808
        %v1004 = vunpack.c.0.s8 %v1003
        %v1005 = vperm.slane %v1001, %v1004
        %v1006 = vrot.slane %v981, 4
        %v1007 = vsel %vm940, %v1006, %v979
        %v1009 = vunpack.c.l.s4 1983009808
        %v1010 = vunpack.c.0.s8 %v1009
        %v1011 = vperm.slane %v1007, %v1010
        %v1012 = vrot.slane %v1011, 4
        %v1013 = vsel %vm940, %v1012, %v1005
        %v1015 = vunpack.c.l.s4 1934713408
        %v1016 = vunpack.c.0.s8 %v1015
        %v1017 = vperm.slane %v1013, %v1016
        %v1018 = vrot.slane %v1017, 4
        %v1019 = vsel %vm940, 0, %v1018
        %v1022 = vpack.i.b16 %v1017, %v998
        %v1023 = vshrl.u32 %v998, 16
        %v1024 = vshrl.u32 %v1017, 16
        %v1025 = vpack.i.b16 %v1024, %v1023
        %v1028 = vpack.i.b16 %v1019, %v1000
        %v1029 = vshrl.u32 %v1000, 16
        %v1030 = vshrl.u32 %v1019, 16
        %v1031 = vpack.i.b16 %v1030, %v1029
        %v1032 = vpack.c.bf16 %v871, %v871
        %1034 = vrot.lane.b32.xlu0 %v1032, 120
        %v1035 = vpop.permute.xlu0 %1034
        %1036 = vrot.lane.b32.xlu0 %v1032, 112
        %v1037 = vpop.permute.xlu0 %1036
        %1038 = vrot.lane.b32.xlu0 %v1032, 104
        %v1039 = vpop.permute.xlu0 %1038
        %v1042 = vpack.i.b16 %v1035, %v1032
        %v1043 = vshrl.u32 %v1032, 16
        %v1044 = vshrl.u32 %v1035, 16
        %v1045 = vpack.i.b16 %v1044, %v1043
        %v1048 = vpack.i.b16 %v1039, %v1037
        %v1049 = vshrl.u32 %v1037, 16
        %v1050 = vshrl.u32 %v1039, 16
        %v1051 = vpack.i.b16 %v1050, %v1049
        %v1054 = vunpack.c.l.s4 1983009808
        %v1055 = vunpack.c.0.s8 %v1054
        %v1056 = vperm.slane %v1042, %v1055
        %v1059 = vunpack.c.l.s4 1983009808
        %v1060 = vunpack.c.0.s8 %v1059
        %v1061 = vperm.slane %v1048, %v1060
        %v1062 = vrot.slane %v1061, 4
        %v1063 = vsel %vm940, %v1062, %v1056
        %v1064 = vrot.slane %v1056, 4
        %v1065 = vsel %vm940, %v1061, %v1064
        %v1067 = vunpack.c.l.s4 1934713408
        %v1068 = vunpack.c.0.s8 %v1067
        %v1069 = vperm.slane %v1063, %v1068
        %v1071 = vunpack.c.l.s4 1934713408
        %v1072 = vunpack.c.0.s8 %v1071
        %v1073 = vperm.slane %v1065, %v1072
        %v1074 = vrot.slane %v1069, 4
        %v1075 = vsel %vm940, 0, %v1074
        %v1076 = vrot.slane %v1073, 4
        %v1077 = vsel %vm940, 0, %v1076
        %v1080 = vunpack.c.l.s4 1983009808
        %v1081 = vunpack.c.0.s8 %v1080
        %v1082 = vperm.slane %v1045, %v1081
        %v1085 = vunpack.c.l.s4 1983009808
        %v1086 = vunpack.c.0.s8 %v1085
        %v1087 = vperm.slane %v1051, %v1086
        %v1088 = vrot.slane %v1087, 4
        %v1089 = vsel %vm940, %v1088, %v1082
        %v1090 = vrot.slane %v1082, 4
        %v1091 = vsel %vm940, %v1087, %v1090
        %v1093 = vunpack.c.l.s4 1934713408
        %v1094 = vunpack.c.0.s8 %v1093
        %v1095 = vperm.slane %v1089, %v1094
        %v1097 = vunpack.c.l.s4 1934713408
        %v1098 = vunpack.c.0.s8 %v1097
        %v1099 = vperm.slane %v1091, %v1098
        %v1100 = vrot.slane %v1095, 4
        %v1101 = vsel %vm940, 0, %v1100
        %v1102 = vrot.slane %v1099, 4
        %v1103 = vsel %vm940, 0, %v1102
        %v1104 = vsel %vm940, %v1076, %v1069
        %v1106 = vunpack.c.l.s4 1983009808
        %v1107 = vunpack.c.0.s8 %v1106
        %v1108 = vperm.slane %v1104, %v1107
        %v1109 = vrot.slane %v1077, 4
        %v1110 = vsel %vm940, %v1109, %v1075
        %v1112 = vunpack.c.l.s4 1983009808
        %v1113 = vunpack.c.0.s8 %v1112
        %v1114 = vperm.slane %v1110, %v1113
        %v1115 = vrot.slane %v1114, 4
        %v1116 = vsel %vm940, %v1115, %v1108
        %v1118 = vunpack.c.l.s4 1934713408
        %v1119 = vunpack.c.0.s8 %v1118
        %v1120 = vperm.slane %v1116, %v1119
        %v1121 = vrot.slane %v1120, 4
        %v1122 = vsel %vm940, 0, %v1121
        %v1123 = vsel %vm940, %v1102, %v1095
        %v1125 = vunpack.c.l.s4 1983009808
        %v1126 = vunpack.c.0.s8 %v1125
        %v1127 = vperm.slane %v1123, %v1126
        %v1128 = vrot.slane %v1103, 4
        %v1129 = vsel %vm940, %v1128, %v1101
        %v1131 = vunpack.c.l.s4 1983009808
        %v1132 = vunpack.c.0.s8 %v1131
        %v1133 = vperm.slane %v1129, %v1132
        %v1134 = vrot.slane %v1133, 4
        %v1135 = vsel %vm940, %v1134, %v1127
        %v1137 = vunpack.c.l.s4 1934713408
        %v1138 = vunpack.c.0.s8 %v1137
        %v1139 = vperm.slane %v1135, %v1138
        %v1140 = vrot.slane %v1139, 4
        %v1141 = vsel %vm940, 0, %v1140
        %v1144 = vpack.i.b16 %v1139, %v1120
        %v1145 = vshrl.u32 %v1120, 16
        %v1146 = vshrl.u32 %v1139, 16
        %v1147 = vpack.i.b16 %v1146, %v1145
        %v1150 = vpack.i.b16 %v1141, %v1122
        %v1151 = vshrl.u32 %v1122, 16
        %v1152 = vshrl.u32 %v1141, 16
        %v1153 = vpack.i.b16 %v1152, %v1151
        %v1154 = vpack.c.bf16 %v906, %v906
        %1156 = vrot.lane.b32.xlu0 %v1154, 120
        %v1157 = vpop.permute.xlu0 %1156
        %1158 = vrot.lane.b32.xlu0 %v1154, 112
        %v1159 = vpop.permute.xlu0 %1158
        %1160 = vrot.lane.b32.xlu0 %v1154, 104
        %v1161 = vpop.permute.xlu0 %1160
        %v1164 = vpack.i.b16 %v1157, %v1154
        %v1165 = vshrl.u32 %v1154, 16
        %v1166 = vshrl.u32 %v1157, 16
        %v1167 = vpack.i.b16 %v1166, %v1165
        %v1170 = vpack.i.b16 %v1161, %v1159
        %v1171 = vshrl.u32 %v1159, 16
        %v1172 = vshrl.u32 %v1161, 16
        %v1173 = vpack.i.b16 %v1172, %v1171
        %v1176 = vunpack.c.l.s4 1983009808
        %v1177 = vunpack.c.0.s8 %v1176
        %v1178 = vperm.slane %v1164, %v1177
        %v1181 = vunpack.c.l.s4 1983009808
        %v1182 = vunpack.c.0.s8 %v1181
        %v1183 = vperm.slane %v1170, %v1182
        %v1184 = vrot.slane %v1183, 4
        %v1185 = vsel %vm940, %v1184, %v1178
        %v1186 = vrot.slane %v1178, 4
        %v1187 = vsel %vm940, %v1183, %v1186
        %v1189 = vunpack.c.l.s4 1934713408
        %v1190 = vunpack.c.0.s8 %v1189
        %v1191 = vperm.slane %v1185, %v1190
        %v1193 = vunpack.c.l.s4 1934713408
        %v1194 = vunpack.c.0.s8 %v1193
        %v1195 = vperm.slane %v1187, %v1194
        %v1196 = vrot.slane %v1191, 4
        %v1197 = vsel %vm940, 0, %v1196
        %v1198 = vrot.slane %v1195, 4
        %v1199 = vsel %vm940, 0, %v1198
        %v1202 = vunpack.c.l.s4 1983009808
        %v1203 = vunpack.c.0.s8 %v1202
        %v1204 = vperm.slane %v1167, %v1203
        %v1207 = vunpack.c.l.s4 1983009808
        %v1208 = vunpack.c.0.s8 %v1207
        %v1209 = vperm.slane %v1173, %v1208
        %v1210 = vrot.slane %v1209, 4
        %v1211 = vsel %vm940, %v1210, %v1204
        %v1212 = vrot.slane %v1204, 4
        %v1213 = vsel %vm940, %v1209, %v1212
        %v1215 = vunpack.c.l.s4 1934713408
        %v1216 = vunpack.c.0.s8 %v1215
        %v1217 = vperm.slane %v1211, %v1216
        %v1219 = vunpack.c.l.s4 1934713408
        %v1220 = vunpack.c.0.s8 %v1219
        %v1221 = vperm.slane %v1213, %v1220
        %v1222 = vrot.slane %v1217, 4
        %v1223 = vsel %vm940, 0, %v1222
        %v1224 = vrot.slane %v1221, 4
        %v1225 = vsel %vm940, 0, %v1224
        %v1226 = vsel %vm940, %v1198, %v1191
        %v1228 = vunpack.c.l.s4 1983009808
        %v1229 = vunpack.c.0.s8 %v1228
        %v1230 = vperm.slane %v1226, %v1229
        %v1231 = vrot.slane %v1199, 4
        %v1232 = vsel %vm940, %v1231, %v1197
        %v1234 = vunpack.c.l.s4 1983009808
        %v1235 = vunpack.c.0.s8 %v1234
        %v1236 = vperm.slane %v1232, %v1235
        %v1237 = vrot.slane %v1236, 4
        %v1238 = vsel %vm940, %v1237, %v1230
        %v1240 = vunpack.c.l.s4 1934713408
        %v1241 = vunpack.c.0.s8 %v1240
        %v1242 = vperm.slane %v1238, %v1241
        %v1243 = vrot.slane %v1242, 4
        %v1244 = vsel %vm940, 0, %v1243
        %v1245 = vsel %vm940, %v1224, %v1217
        %v1247 = vunpack.c.l.s4 1983009808
        %v1248 = vunpack.c.0.s8 %v1247
        %v1249 = vperm.slane %v1245, %v1248
        %v1250 = vrot.slane %v1225, 4
        %v1251 = vsel %vm940, %v1250, %v1223
        %v1253 = vunpack.c.l.s4 1983009808
        %v1254 = vunpack.c.0.s8 %v1253
        %v1255 = vperm.slane %v1251, %v1254
        %v1256 = vrot.slane %v1255, 4
        %v1257 = vsel %vm940, %v1256, %v1249
        %v1259 = vunpack.c.l.s4 1934713408
        %v1260 = vunpack.c.0.s8 %v1259
        %v1261 = vperm.slane %v1257, %v1260
        %v1262 = vrot.slane %v1261, 4
        %v1263 = vsel %vm940, 0, %v1262
        %v1266 = vpack.i.b16 %v1261, %v1242
        %v1267 = vshrl.u32 %v1242, 16
        %v1268 = vshrl.u32 %v1261, 16
        %v1269 = vpack.i.b16 %v1268, %v1267
        %v1272 = vpack.i.b16 %v1263, %v1244
        %v1273 = vshrl.u32 %v1244, 16
        %v1274 = vshrl.u32 %v1263, 16
        %v1275 = vpack.i.b16 %v1274, %v1273
        %v1276 = vld [vmem:[#allocation8] sm:$0xff]
        %vm1277 = vcmp.gt.f32.partialorder %v1276, 0.5
        %v1278 = vld [vmem:[#allocation10] sm:$0xff]
        %vm1279 = vcmask 64512
        %v1281 = vsel %vm1279, %v1022, 0
        %v1284 = vsel %vm1279, %v1144, 0
        %1286 = vmatpush.bf16.xpose.msra.mxu0 0
        %1287 = vmatpush.bf16.xpose.msra.mxu0 0
        %1288 = vmatpush.bf16.xpose.msra.mxu0 0
        %1289 = vmatpush.bf16.xpose.msra.mxu0 0
        %1290 = vmatpush.bf16.xpose.msra.mxu0 0
        %1291 = vmatpush.bf16.xpose.msra.mxu0 0
        %1292 = vmatpush.bf16.xpose.msra.mxu0 0
        %1293 = vmatpush.bf16.xpose.msra.mxu0 %v1284
        %1294 = vmatmul.bf16.gmra.mxu0 %v1281
        %v1295 = vpop.f32.mrf.mxu0
        %v1296 = vadd.f32 0.0, %v1295
        %v1297 = vpop.f32.mrf.mxu0
        %1298 = vdwg.mxu0
        %v1300 = vsel %vm1279, %v1025, 0
        %v1303 = vsel %vm1279, %v1147, 0
        %1305 = vmatpush.bf16.xpose.msra.mxu0 0
        %1306 = vmatpush.bf16.xpose.msra.mxu0 0
        %1307 = vmatpush.bf16.xpose.msra.mxu0 0
        %1308 = vmatpush.bf16.xpose.msra.mxu0 0
        %1309 = vmatpush.bf16.xpose.msra.mxu0 0
        %1310 = vmatpush.bf16.xpose.msra.mxu0 0
        %1311 = vmatpush.bf16.xpose.msra.mxu0 0
        %1312 = vmatpush.bf16.xpose.msra.mxu0 %v1303
        %1313 = vmatmul.bf16.gmra.mxu0 %v1300
        %v1314 = vpop.f32.mrf.mxu0
        %v1315 = vadd.f32 0.0, %v1314
        %v1316 = vpop.f32.mrf.mxu0
        %1317 = vdwg.mxu0
        %v1319 = vsel %vm1279, %v1028, 0
        %v1322 = vsel %vm1279, %v1150, 0
        %1324 = vmatpush.bf16.xpose.msra.mxu0 0
        %1325 = vmatpush.bf16.xpose.msra.mxu0 0
        %1326 = vmatpush.bf16.xpose.msra.mxu0 0
        %1327 = vmatpush.bf16.xpose.msra.mxu0 0
        %1328 = vmatpush.bf16.xpose.msra.mxu0 0
        %1329 = vmatpush.bf16.xpose.msra.mxu0 0
        %1330 = vmatpush.bf16.xpose.msra.mxu0 0
        %1331 = vmatpush.bf16.xpose.msra.mxu0 %v1322
        %1332 = vmatmul.bf16.gmra.mxu0 %v1319
        %v1333 = vpop.f32.mrf.mxu0
        %v1334 = vadd.f32 0.0, %v1333
        %v1335 = vpop.f32.mrf.mxu0
        %1336 = vdwg.mxu0
        %v1338 = vsel %vm1279, %v1031, 0
        %v1341 = vsel %vm1279, %v1153, 0
        %1343 = vmatpush.bf16.xpose.msra.mxu0 0
        %1344 = vmatpush.bf16.xpose.msra.mxu0 0
        %1345 = vmatpush.bf16.xpose.msra.mxu0 0
        %1346 = vmatpush.bf16.xpose.msra.mxu0 0
        %1347 = vmatpush.bf16.xpose.msra.mxu0 0
        %1348 = vmatpush.bf16.xpose.msra.mxu0 0
        %1349 = vmatpush.bf16.xpose.msra.mxu0 0
        %1350 = vmatpush.bf16.xpose.msra.mxu0 %v1341
        %1351 = vmatmul.bf16.gmra.mxu0 %v1338
        %v1352 = vpop.f32.mrf.mxu0
        %v1353 = vadd.f32 0.0, %v1352
        %v1354 = vpop.f32.mrf.mxu0
        %1355 = vdwg.mxu0
        %v1356 = vmul.f32 %v1296, 0.35355338
        %v1357 = vmul.f32 %v1315, 0.35355338
        %v1358 = vmul.f32 %v1334, 0.35355338
        %v1359 = vmul.f32 %v1353, 0.35355338
        %v1360 = vsel %vm1277, 1, 0
        %vm1361 = vcmp.eq.s32.totalorder %v1360, 1
        %v1362 = vsel %vm1361, %v1356, -1e+32
        %v1363 = vsel %vm1361, %v1357, -1e+32
        %v1364 = vsel %vm1361, %v1358, -1e+32
        %v1365 = vsel %vm1361, %v1359, -1e+32
        %v1366 = vsel %vm1279, %v1362, -inf
        %1367 = vmax.xlane.f32.xlu0 %v1366
        %v1368 = vpop.xlane.xlu0 %1367
        %v1369 = vsel %vm1279, %v1363, -inf
        %1370 = vmax.xlane.f32.xlu0 %v1369
        %v1371 = vpop.xlane.xlu0 %1370
        %v1372 = vsel %vm1279, %v1364, -inf
        %1373 = vmax.xlane.f32.xlu0 %v1372
        %v1374 = vpop.xlane.xlu0 %1373
        %v1375 = vsel %vm1279, %v1365, -inf
        %1376 = vmax.xlane.f32.xlu0 %v1375
        %v1377 = vpop.xlane.xlu0 %1376
        %v1378 = vsub.f32 %v1362, %v1368
        %v1379 = vsub.f32 %v1363, %v1371
        %v1380 = vsub.f32 %v1364, %v1374
        %v1381 = vsub.f32 %v1365, %v1377
        %v1382 = vmul.f32 %v1378, 1.442695
        %v1383 = vpow.pop %v1382
        %v1384 = vmul.f32 %v1379, 1.442695
        %v1385 = vpow.pop %v1384
        %v1386 = vmul.f32 %v1380, 1.442695
        %v1387 = vpow.pop %v1386
        %v1388 = vmul.f32 %v1381, 1.442695
        %v1389 = vpow.pop %v1388
        %v1390 = vsel %vm1279, %v1383, 0.0
        %1391 = vadd.xlane.f32.xlu0 %v1390
        %v1392 = vpop.xlane.xlu0 %1391
        %v1393 = vsel %vm1279, %v1385, 0.0
        %1394 = vadd.xlane.f32.xlu0 %v1393
        %v1395 = vpop.xlane.xlu0 %1394
        %v1396 = vsel %vm1279, %v1387, 0.0
        %1397 = vadd.xlane.f32.xlu0 %v1396
        %v1398 = vpop.xlane.xlu0 %1397
        %v1399 = vsel %vm1279, %v1389, 0.0
        %1400 = vadd.xlane.f32.xlu0 %v1399
        %v1401 = vpop.xlane.xlu0 %1400
        %v1402 = vrcp.pop %v1392
        %v1403 = vmul.f32 %v1392, %v1402
        %v1404 = vsub.f32 1.0, %v1403
        %v1405 = vmul.f32 %v1402, %v1404
        %v1406 = vadd.f32 %v1402, %v1405
        %vm1407 = vweird.f32 %v1392
        %vm1408 = vweird.f32 %v1402
        %vm1409 = vmor %vm1407, %vm1408
        %v1410 = vsel %vm1409, %v1402, %v1406
        %v1411 = vand.u32 2147483647, %v1392
        %vm1412 = vcmp.eq.f32.partialorder %v1411, 8.507059e+37
        %v1413 = vand.u32 %v1392, 2147483648
        %v1414 = vor.u32 1.1754944e-38, %v1413
        %v1415 = vsel %vm1412, %v1414, %v1410
        %v1416 = vmul.f32 %v1383, %v1415
        %v1417 = vrcp.pop %v1395
        %v1418 = vmul.f32 %v1395, %v1417
        %v1419 = vsub.f32 1.0, %v1418
        %v1420 = vmul.f32 %v1417, %v1419
        %v1421 = vadd.f32 %v1417, %v1420
        %vm1422 = vweird.f32 %v1395
        %vm1423 = vweird.f32 %v1417
        %vm1424 = vmor %vm1422, %vm1423
        %v1425 = vsel %vm1424, %v1417, %v1421
        %v1426 = vand.u32 2147483647, %v1395
        %vm1427 = vcmp.eq.f32.partialorder %v1426, 8.507059e+37
        %v1428 = vand.u32 %v1395, 2147483648
        %v1429 = vor.u32 1.1754944e-38, %v1428
        %v1430 = vsel %vm1427, %v1429, %v1425
        %v1431 = vmul.f32 %v1385, %v1430
        %v1432 = vrcp.pop %v1398
        %v1433 = vmul.f32 %v1398, %v1432
        %v1434 = vsub.f32 1.0, %v1433
        %v1435 = vmul.f32 %v1432, %v1434
        %v1436 = vadd.f32 %v1432, %v1435
        %vm1437 = vweird.f32 %v1398
        %vm1438 = vweird.f32 %v1432
        %vm1439 = vmor %vm1437, %vm1438
        %v1440 = vsel %vm1439, %v1432, %v1436
        %v1441 = vand.u32 2147483647, %v1398
        %vm1442 = vcmp.eq.f32.partialorder %v1441, 8.507059e+37
        %v1443 = vand.u32 %v1398, 2147483648
        %v1444 = vor.u32 1.1754944e-38, %v1443
        %v1445 = vsel %vm1442, %v1444, %v1440
        %v1446 = vmul.f32 %v1387, %v1445
        %v1447 = vrcp.pop %v1401
        %v1448 = vmul.f32 %v1401, %v1447
        %v1449 = vsub.f32 1.0, %v1448
        %v1450 = vmul.f32 %v1447, %v1449
        %v1451 = vadd.f32 %v1447, %v1450
        %vm1452 = vweird.f32 %v1401
        %vm1453 = vweird.f32 %v1447
        %vm1454 = vmor %vm1452, %vm1453
        %v1455 = vsel %vm1454, %v1447, %v1451
        %v1456 = vand.u32 2147483647, %v1401
        %vm1457 = vcmp.eq.f32.partialorder %v1456, 8.507059e+37
        %v1458 = vand.u32 %v1401, 2147483648
        %v1459 = vor.u32 1.1754944e-38, %v1458
        %v1460 = vsel %vm1457, %v1459, %v1455
        %v1461 = vmul.f32 %v1389, %v1460
        %v1462 = vld [vmem:[#allocation11] sm:$0xff]
        %v1464 = vsel %vm1279, %v1416, 0
        %v1467 = vsel %vm1279, %v1431, 0
        %v1470 = vsel %vm1279, %v1446, 0
        %v1473 = vsel %vm1279, %v1461, 0
        %1475 = vmatpush.msra.mxu0 0.0
        %1476 = vmatpush.msra.mxu0 0.0
        %1477 = vmatpush.msra.mxu0 0.0
        %1478 = vmatpush.msra.mxu0 0.0
        %1479 = vmatpush.msra.mxu0 0.0
        %1480 = vmatpush.msra.mxu0 0.0
        %1481 = vmatpush.msra.mxu0 0.0
        %1482 = vmatpush.msra.mxu0 0.0
        %1483 = vmatpush.msra.mxu0 0.0
        %1484 = vmatpush.msra.mxu0 0.0
        %1485 = vmatpush.msra.mxu0 0.0
        %1486 = vmatpush.msra.mxu0 0.0
        %1487 = vmatpush.msra.mxu0 0.0
        %1488 = vmatpush.msra.mxu0 0.0
        %1489 = vmatpush.msra.mxu0 0.0
        %1490 = vmatpush.msra.mxu0 %v1462
        %1491 = vmatmul.f32.gmra.mxu0 %v1464
        %v1492 = vpop.f32.mrf.mxu0
        %v1493 = vadd.f32 0.0, %v1492
        %1494 = vmatmul.f32.gmra.mxu0 %v1467
        %v1495 = vpop.f32.mrf.mxu0
        %v1496 = vadd.f32 0.0, %v1495
        %1497 = vmatmul.f32.gmra.mxu0 %v1470
        %v1498 = vpop.f32.mrf.mxu0
        %v1499 = vadd.f32 0.0, %v1498
        %1500 = vmatmul.f32.gmra.mxu0 %v1473
        %v1501 = vpop.f32.mrf.mxu0
        %v1502 = vadd.f32 0.0, %v1501
        %1503 = vdwg.mxu0
        %v1504 = vmul.f32 %v1493, %v1278
        %v1505 = vmul.f32 %v1496, %v1278
        %v1506 = vmul.f32 %v1499, %v1278
        %v1507 = vmul.f32 %v1502, %v1278
        %v1508 = vmax.f32 %v1504, 0.0
        %v1509 = vmax.f32 %v1505, 0.0
        %v1510 = vmax.f32 %v1506, 0.0
        %v1511 = vmax.f32 %v1507, 0.0
        %v1512 = vrsqrt.pop %v1508
        %v1513 = vmul.f32 %v1512, %v1508
        %v1514 = vmul.f32 %v1513, %v1512
        %v1515 = vmul.f32 0.5, %v1514
        %v1516 = vsub.f32 1.5, %v1515
        %v1517 = vmul.f32 %v1512, %v1516
        %v1518 = vmul.f32 %v1508, %v1517
        %vm1519 = vcmp.eq.f32.partialorder %v1508, inf
        %v1520 = vsel %vm1519, %v1508, %v1518
        %vm1521 = vcmp.eq.f32.partialorder %v1508, 0.0
        %v1522 = vand.u32 %v1508, 2147483648
        %v1523 = vsel %vm1521, %v1522, %v1520
        %v1524 = vrsqrt.pop %v1509
        %v1525 = vmul.f32 %v1524, %v1509
        %v1526 = vmul.f32 %v1525, %v1524
        %v1527 = vmul.f32 0.5, %v1526
        %v1528 = vsub.f32 1.5, %v1527
        %v1529 = vmul.f32 %v1524, %v1528
        %v1530 = vmul.f32 %v1509, %v1529
        %vm1531 = vcmp.eq.f32.partialorder %v1509, inf
        %v1532 = vsel %vm1531, %v1509, %v1530
        %vm1533 = vcmp.eq.f32.partialorder %v1509, 0.0
        %v1534 = vand.u32 %v1509, 2147483648
        %v1535 = vsel %vm1533, %v1534, %v1532
        %v1536 = vrsqrt.pop %v1510
        %v1537 = vmul.f32 %v1536, %v1510
        %v1538 = vmul.f32 %v1537, %v1536
        %v1539 = vmul.f32 0.5, %v1538
        %v1540 = vsub.f32 1.5, %v1539
        %v1541 = vmul.f32 %v1536, %v1540
        %v1542 = vmul.f32 %v1510, %v1541
        %vm1543 = vcmp.eq.f32.partialorder %v1510, inf
        %v1544 = vsel %vm1543, %v1510, %v1542
        %vm1545 = vcmp.eq.f32.partialorder %v1510, 0.0
        %v1546 = vand.u32 %v1510, 2147483648
        %v1547 = vsel %vm1545, %v1546, %v1544
        %v1548 = vrsqrt.pop %v1511
        %v1549 = vmul.f32 %v1548, %v1511
        %v1550 = vmul.f32 %v1549, %v1548
        %v1551 = vmul.f32 0.5, %v1550
        %v1552 = vsub.f32 1.5, %v1551
        %v1553 = vmul.f32 %v1548, %v1552
        %v1554 = vmul.f32 %v1511, %v1553
        %vm1555 = vcmp.eq.f32.partialorder %v1511, inf
        %v1556 = vsel %vm1555, %v1511, %v1554
        %vm1557 = vcmp.eq.f32.partialorder %v1511, 0.0
        %v1558 = vand.u32 %v1511, 2147483648
        %v1559 = vsel %vm1557, %v1558, %v1556
        %v1560 = vld [vmem:[%s12] sm:$0x1]
        %v1561 = vld [vmem:[%s12 + $0x1] sm:$0x1]
        %v1562 = vld [vmem:[%s12 + $0x2] sm:$0x1]
        %v1563 = vld [vmem:[%s12 + $0x3] sm:$0x1]
        %v1564 = vmax.f32 %v1560, 0.0
        %v1565 = vmax.f32 %v1561, 0.0
        %v1566 = vmax.f32 %v1562, 0.0
        %v1567 = vmax.f32 %v1563, 0.0
        %v1568 = vand.u32 2147483647, %v1560
        %v1569 = vand.u32 2147483647, %v1561
        %v1570 = vand.u32 2147483647, %v1562
        %v1571 = vand.u32 2147483647, %v1563
        %v1572 = vsub.f32 0.0, %v1568
        %v1573 = vsub.f32 0.0, %v1569
        %v1574 = vsub.f32 0.0, %v1570
        %v1575 = vsub.f32 0.0, %v1571
        %v1576 = vmul.f32 %v1572, 1.442695
        %v1577 = vpow.pop %v1576
        %v1578 = vmul.f32 %v1573, 1.442695
        %v1579 = vpow.pop %v1578
        %v1580 = vmul.f32 %v1574, 1.442695
        %v1581 = vpow.pop %v1580
        %v1582 = vmul.f32 %v1575, 1.442695
        %v1583 = vpow.pop %v1582
        %v1584 = vadd.f32 %v1577, 1.0
        %v1585 = vlog2.pop %v1584
        %v1586 = vmul.f32 %v1585, 0.6931472
        %v1587 = vmul.f32 -0.5, %v1577
        %v1588 = vadd.f32 %v1587, 1.0
        %v1589 = vmul.f32 %v1588, %v1577
        %v1590 = vand.u32 2147483647, %v1577
        %vm1591 = vcmp.lt.f32.partialorder %v1590, 0.0004427343
        %v1592 = vsel %vm1591, %v1589, %v1586
        %v1593 = vadd.f32 %v1579, 1.0
        %v1594 = vlog2.pop %v1593
        %v1595 = vmul.f32 %v1594, 0.6931472
        %v1596 = vmul.f32 -0.5, %v1579
        %v1597 = vadd.f32 %v1596, 1.0
        %v1598 = vmul.f32 %v1597, %v1579
        %v1599 = vand.u32 2147483647, %v1579
        %vm1600 = vcmp.lt.f32.partialorder %v1599, 0.0004427343
        %v1601 = vsel %vm1600, %v1598, %v1595
        %v1602 = vadd.f32 %v1581, 1.0
        %v1603 = vlog2.pop %v1602
        %v1604 = vmul.f32 %v1603, 0.6931472
        %v1605 = vmul.f32 -0.5, %v1581
        %v1606 = vadd.f32 %v1605, 1.0
        %v1607 = vmul.f32 %v1606, %v1581
        %v1608 = vand.u32 2147483647, %v1581
        %vm1609 = vcmp.lt.f32.partialorder %v1608, 0.0004427343
        %v1610 = vsel %vm1609, %v1607, %v1604
        %v1611 = vadd.f32 %v1583, 1.0
        %v1612 = vlog2.pop %v1611
        %v1613 = vmul.f32 %v1612, 0.6931472
        %v1614 = vmul.f32 -0.5, %v1583
        %v1615 = vadd.f32 %v1614, 1.0
        %v1616 = vmul.f32 %v1615, %v1583
        %v1617 = vand.u32 2147483647, %v1583
        %vm1618 = vcmp.lt.f32.partialorder %v1617, 0.0004427343
        %v1619 = vsel %vm1618, %v1616, %v1613
        %v1620 = vadd.f32 %v1564, %v1592
        %v1621 = vadd.f32 %v1565, %v1601
        %v1622 = vadd.f32 %v1566, %v1610
        %v1623 = vadd.f32 %v1567, %v1619
        %v1624 = vsub.f32 0.0, %v1620
        %v1625 = vsub.f32 0.0, %v1621
        %v1626 = vsub.f32 0.0, %v1622
        %v1627 = vsub.f32 0.0, %v1623
        %v1632 = vperm.slane %v1624, 0
        %v1633 = vperm.slane %v1625, 0
        %v1634 = vperm.slane %v1626, 0
        %v1635 = vperm.slane %v1627, 0
        %1636 = vset.pattern.permute.xlu0 0
        %1637 = vperm.xlu0 %1636, %v1632
        %v1638 = vpop.permute.xlu0 %1637
        %1640 = vset.pattern.permute.xlu0 0
        %1641 = vperm.xlu0 %1640, %v1633
        %v1642 = vpop.permute.xlu0 %1641
        %1644 = vset.pattern.permute.xlu0 0
        %1645 = vperm.xlu0 %1644, %v1634
        %v1646 = vpop.permute.xlu0 %1645
        %1648 = vset.pattern.permute.xlu0 0
        %1649 = vperm.xlu0 %1648, %v1635
        %v1650 = vpop.permute.xlu0 %1649
        %v1652 = vmul.f32 %v1523, %v1638
        %v1653 = vmul.f32 %v1535, %v1642
        %v1654 = vmul.f32 %v1547, %v1646
        %v1655 = vmul.f32 %v1559, %v1650
        %v1656 = vmul.f32 %v1652, 1.442695
        %v1657 = vpow.pop %v1656
        %v1658 = vmul.f32 %v1653, 1.442695
        %v1659 = vpow.pop %v1658
        %v1660 = vmul.f32 %v1654, 1.442695
        %v1661 = vpow.pop %v1660
        %v1662 = vmul.f32 %v1655, 1.442695
        %v1663 = vpow.pop %v1662
        %v1664 = vmax.f32 %v1657, 1e-05
        %v1665 = vmax.f32 %v1659, 1e-05
        %v1666 = vmax.f32 %v1661, 1e-05
        %v1667 = vmax.f32 %v1663, 1e-05
        %v1668 = vmin.f32 %v1664, 100000.0
        %v1669 = vmin.f32 %v1665, 100000.0
        %v1670 = vmin.f32 %v1666, 100000.0
        %v1671 = vmin.f32 %v1667, 100000.0
        %v1672 = vmul.f32 %v1356, %v1668
        %v1673 = vmul.f32 %v1357, %v1669
        %v1674 = vmul.f32 %v1358, %v1670
        %v1675 = vmul.f32 %v1359, %v1671
        %v1676 = vsel %vm1361, %v1672, -1e+32
        %v1677 = vsel %vm1361, %v1673, -1e+32
        %v1678 = vsel %vm1361, %v1674, -1e+32
        %v1679 = vsel %vm1361, %v1675, -1e+32
        %v1680 = vsel %vm1279, %v1676, -inf
        %1681 = vmax.xlane.f32.xlu0 %v1680
        %v1682 = vpop.xlane.xlu0 %1681
        %v1683 = vsel %vm1279, %v1677, -inf
        %1684 = vmax.xlane.f32.xlu0 %v1683
        %v1685 = vpop.xlane.xlu0 %1684
        %v1686 = vsel %vm1279, %v1678, -inf
        %1687 = vmax.xlane.f32.xlu0 %v1686
        %v1688 = vpop.xlane.xlu0 %1687
        %v1689 = vsel %vm1279, %v1679, -inf
        %1690 = vmax.xlane.f32.xlu0 %v1689
        %v1691 = vpop.xlane.xlu0 %1690
        %v1692 = vsub.f32 %v1676, %v1682
        %v1693 = vsub.f32 %v1677, %v1685
        %v1694 = vsub.f32 %v1678, %v1688
        %v1695 = vsub.f32 %v1679, %v1691
        %v1696 = vmul.f32 %v1692, 1.442695
        %v1697 = vpow.pop %v1696
        %v1698 = vmul.f32 %v1693, 1.442695
        %v1699 = vpow.pop %v1698
        %v1700 = vmul.f32 %v1694, 1.442695
        %v1701 = vpow.pop %v1700
        %v1702 = vmul.f32 %v1695, 1.442695
        %v1703 = vpow.pop %v1702
        %v1704 = vsel %vm1279, %v1697, 0.0
        %1705 = vadd.xlane.f32.xlu0 %v1704
        %v1706 = vpop.xlane.xlu0 %1705
        %v1707 = vsel %vm1279, %v1699, 0.0
        %1708 = vadd.xlane.f32.xlu0 %v1707
        %v1709 = vpop.xlane.xlu0 %1708
        %v1710 = vsel %vm1279, %v1701, 0.0
        %1711 = vadd.xlane.f32.xlu0 %v1710
        %v1712 = vpop.xlane.xlu0 %1711
        %v1713 = vsel %vm1279, %v1703, 0.0
        %1714 = vadd.xlane.f32.xlu0 %v1713
        %v1715 = vpop.xlane.xlu0 %1714
        %v1716 = vrcp.pop %v1706
        %v1717 = vrcp.pop %v1709
        %v1718 = vrcp.pop %v1712
        %v1719 = vrcp.pop %v1715
        %v1720 = vmul.f32 %v1697, %v1716
        %v1721 = vmul.f32 %v1699, %v1717
        %v1722 = vmul.f32 %v1701, %v1718
        %v1723 = vmul.f32 %v1703, %v1719
        %v1724 = vpack.c.bf16 %v1720, %v1720
        %v1725 = vpack.c.bf16 %v1721, %v1721
        %v1726 = vpack.c.bf16 %v1722, %v1722
        %v1727 = vpack.c.bf16 %v1723, %v1723
        %v1729 = vsel %vm1279, %v1724, 0
        %v1732 = vsel %vm832, %v1266, 0
        %1734 = vmatpush.bf16.msra.mxu0 0
        %1735 = vmatpush.bf16.msra.mxu0 0
        %1736 = vmatpush.bf16.msra.mxu0 0
        %1737 = vmatpush.bf16.msra.mxu0 0
        %1738 = vmatpush.bf16.msra.mxu0 0
        %1739 = vmatpush.bf16.msra.mxu0 0
        %1740 = vmatpush.bf16.msra.mxu0 0
        %1741 = vmatpush.bf16.msra.mxu0 %v1732
        %1742 = vmatmul.bf16.gmra.mxu0 %v1729
        %v1743 = vpop.f32.mrf.mxu0
        %v1744 = vadd.f32 0.0, %v1743
        %v1745 = vpop.f32.mrf.mxu0
        %1746 = vdwg.mxu0
        %v1748 = vsel %vm1279, %v1725, 0
        %v1751 = vsel %vm832, %v1269, 0
        %1753 = vmatpush.bf16.msra.mxu0 0
        %1754 = vmatpush.bf16.msra.mxu0 0
        %1755 = vmatpush.bf16.msra.mxu0 0
        %1756 = vmatpush.bf16.msra.mxu0 0
        %1757 = vmatpush.bf16.msra.mxu0 0
        %1758 = vmatpush.bf16.msra.mxu0 0
        %1759 = vmatpush.bf16.msra.mxu0 0
        %1760 = vmatpush.bf16.msra.mxu0 %v1751
        %1761 = vmatmul.bf16.gmra.mxu0 %v1748
        %v1762 = vpop.f32.mrf.mxu0
        %v1763 = vadd.f32 0.0, %v1762
        %v1764 = vpop.f32.mrf.mxu0
        %1765 = vdwg.mxu0
        %v1767 = vsel %vm1279, %v1726, 0
        %v1770 = vsel %vm832, %v1272, 0
        %1772 = vmatpush.bf16.msra.mxu0 0
        %1773 = vmatpush.bf16.msra.mxu0 0
        %1774 = vmatpush.bf16.msra.mxu0 0
        %1775 = vmatpush.bf16.msra.mxu0 0
        %1776 = vmatpush.bf16.msra.mxu0 0
        %1777 = vmatpush.bf16.msra.mxu0 0
        %1778 = vmatpush.bf16.msra.mxu0 0
        %1779 = vmatpush.bf16.msra.mxu0 %v1770
        %1780 = vmatmul.bf16.gmra.mxu0 %v1767
        %v1781 = vpop.f32.mrf.mxu0
        %v1782 = vadd.f32 0.0, %v1781
        %v1783 = vpop.f32.mrf.mxu0
        %1784 = vdwg.mxu0
        %v1786 = vsel %vm1279, %v1727, 0
        %v1789 = vsel %vm832, %v1275, 0
        %1791 = vmatpush.bf16.msra.mxu0 0
        %1792 = vmatpush.bf16.msra.mxu0 0
        %1793 = vmatpush.bf16.msra.mxu0 0
        %1794 = vmatpush.bf16.msra.mxu0 0
        %1795 = vmatpush.bf16.msra.mxu0 0
        %1796 = vmatpush.bf16.msra.mxu0 0
        %1797 = vmatpush.bf16.msra.mxu0 0
        %1798 = vmatpush.bf16.msra.mxu0 %v1789
        %1799 = vmatmul.bf16.gmra.mxu0 %v1786
        %v1800 = vpop.f32.mrf.mxu0
        %v1801 = vadd.f32 0.0, %v1800
        %v1802 = vpop.f32.mrf.mxu0
        %1803 = vdwg.mxu0
        %v1804 = vpack.c.bf16 %v1744, %v1744
        %v1805 = vpack.c.bf16 %v1763, %v1763
        %v1806 = vpack.c.bf16 %v1782, %v1782
        %v1807 = vpack.c.bf16 %v1801, %v1801
        %v1810 = vpack.i.b16 %v1805, %v1804
        %v1811 = vshrl.u32 %v1804, 16
        %v1812 = vshrl.u32 %v1805, 16
        %v1813 = vpack.i.b16 %v1812, %v1811
        %v1816 = vpack.i.b16 %v1807, %v1806
        %v1817 = vshrl.u32 %v1806, 16
        %v1818 = vshrl.u32 %v1807, 16
        %v1819 = vpack.i.b16 %v1818, %v1817
        %v1822 = vunpack.c.l.s4 1983009808
        %v1823 = vunpack.c.0.s8 %v1822
        %v1824 = vperm.slane %v1810, %v1823
        %v1827 = vunpack.c.l.s4 1983009808
        %v1828 = vunpack.c.0.s8 %v1827
        %v1829 = vperm.slane %v1816, %v1828
        %v1830 = vrot.slane %v1829, 4
        %v1831 = vsel %vm940, %v1830, %v1824
        %v1832 = vrot.slane %v1824, 4
        %v1833 = vsel %vm940, %v1829, %v1832
        %v1835 = vunpack.c.l.s4 1934713408
        %v1836 = vunpack.c.0.s8 %v1835
        %v1837 = vperm.slane %v1831, %v1836
        %v1839 = vunpack.c.l.s4 1934713408
        %v1840 = vunpack.c.0.s8 %v1839
        %v1841 = vperm.slane %v1833, %v1840
        %v1842 = vrot.slane %v1837, 4
        %v1843 = vsel %vm940, 0, %v1842
        %v1844 = vrot.slane %v1841, 4
        %v1845 = vsel %vm940, 0, %v1844
        %v1848 = vunpack.c.l.s4 1983009808
        %v1849 = vunpack.c.0.s8 %v1848
        %v1850 = vperm.slane %v1813, %v1849
        %v1853 = vunpack.c.l.s4 1983009808
        %v1854 = vunpack.c.0.s8 %v1853
        %v1855 = vperm.slane %v1819, %v1854
        %v1856 = vrot.slane %v1855, 4
        %v1857 = vsel %vm940, %v1856, %v1850
        %v1858 = vrot.slane %v1850, 4
        %v1859 = vsel %vm940, %v1855, %v1858
        %v1861 = vunpack.c.l.s4 1934713408
        %v1862 = vunpack.c.0.s8 %v1861
        %v1863 = vperm.slane %v1857, %v1862
        %v1865 = vunpack.c.l.s4 1934713408
        %v1866 = vunpack.c.0.s8 %v1865
        %v1867 = vperm.slane %v1859, %v1866
        %v1868 = vrot.slane %v1863, 4
        %v1869 = vsel %vm940, 0, %v1868
        %v1870 = vrot.slane %v1867, 4
        %v1871 = vsel %vm940, 0, %v1870
        %v1872 = vsel %vm940, %v1844, %v1837
        %v1874 = vunpack.c.l.s4 1983009808
        %v1875 = vunpack.c.0.s8 %v1874
        %v1876 = vperm.slane %v1872, %v1875
        %v1877 = vrot.slane %v1845, 4
        %v1878 = vsel %vm940, %v1877, %v1843
        %v1880 = vunpack.c.l.s4 1983009808
        %v1881 = vunpack.c.0.s8 %v1880
        %v1882 = vperm.slane %v1878, %v1881
        %v1883 = vrot.slane %v1882, 4
        %v1884 = vsel %vm940, %v1883, %v1876
        %v1886 = vunpack.c.l.s4 1934713408
        %v1887 = vunpack.c.0.s8 %v1886
        %v1888 = vperm.slane %v1884, %v1887
        %v1889 = vrot.slane %v1888, 4
        %v1890 = vsel %vm940, 0, %v1889
        %v1891 = vsel %vm940, %v1870, %v1863
        %v1893 = vunpack.c.l.s4 1983009808
        %v1894 = vunpack.c.0.s8 %v1893
        %v1895 = vperm.slane %v1891, %v1894
        %v1896 = vrot.slane %v1871, 4
        %v1897 = vsel %vm940, %v1896, %v1869
        %v1899 = vunpack.c.l.s4 1983009808
        %v1900 = vunpack.c.0.s8 %v1899
        %v1901 = vperm.slane %v1897, %v1900
        %v1902 = vrot.slane %v1901, 4
        %v1903 = vsel %vm940, %v1902, %v1895
        %v1905 = vunpack.c.l.s4 1934713408
        %v1906 = vunpack.c.0.s8 %v1905
        %v1907 = vperm.slane %v1903, %v1906
        %v1908 = vrot.slane %v1907, 4
        %v1909 = vsel %vm940, 0, %v1908
        %v1912 = vpack.i.b16 %v1907, %v1888
        %v1913 = vshrl.u32 %v1888, 16
        %v1914 = vshrl.u32 %v1907, 16
        %v1915 = vpack.i.b16 %v1914, %v1913
        %v1918 = vpack.i.b16 %v1909, %v1890
        %v1919 = vshrl.u32 %v1890, 16
        %v1920 = vshrl.u32 %v1909, 16
        %v1921 = vpack.i.b16 %v1920, %v1919
        %v1922 = vunpack.c.l.b16 %v1915
        %v1923 = vpack.c.b16 %v1922, %v1922
        %1924 = vrot.lane.b32.xlu0 %v1923, 8
        %v1925 = vpop.permute.xlu0 %1924
        %v1926 = vunpack.c.l.b16 %v1918
        %v1927 = vpack.c.b16 %v1926, %v1926
        %1928 = vrot.lane.b32.xlu0 %v1927, 16
        %v1929 = vpop.permute.xlu0 %1928
        %v1930 = vunpack.c.l.b16 %v1921
        %v1931 = vpack.c.b16 %v1930, %v1930
        %1932 = vrot.lane.b32.xlu0 %v1931, 24
        %v1933 = vpop.permute.xlu0 %1932
        %v1936 = vsel %vm1279, %v1912, %v1925
        %vm1937 = vcmask 130048
        %v1939 = vsel %vm1937, %v1936, %v1929
        %vm1940 = vcmask 195584
        %v1942 = vsel %vm1940, %v1939, %v1933
        %v1943 = vld [vmem:[%s10] sm:$0xf]
        %v1944 = vld [vmem:[%s10 + $0x4] sm:$0xf]
        %v1945 = vld [vmem:[%s10 + $0x8] sm:$0xf]
        %v1946 = vld [vmem:[%s10 + $0xc] sm:$0xf]
        %v1947 = vld [vmem:[%s11] sm:$0x1]
        %v1949 = vperm.slane %v1947, 0
        %v1955 = vunpack.c.l.b16 %v1943
        %v1956 = vunpack.c.l.b16 %v1944
        %v1957 = vunpack.c.l.b16 %v1945
        %v1958 = vunpack.c.l.b16 %v1946
        %v1959 = vpack.c.b16 %v1956, %v1955
        %v1960 = vpack.c.b16 %v1958, %v1957
        %v1963 = vsel %vm856, %v1942, 0
        %1965 = vmatpush.bf16.msra.mxu0 0
        %1966 = vmatpush.bf16.msra.mxu0 0
        %1967 = vmatpush.bf16.msra.mxu0 0
        %1968 = vmatpush.bf16.msra.mxu0 0
        %1969 = vmatpush.bf16.msra.mxu0 0
        %1970 = vmatpush.bf16.msra.mxu0 0
        %1971 = vmatpush.bf16.msra.mxu0 %v1960
        %1972 = vmatpush.bf16.msra.mxu0 %v1959
        %1973 = vmatmul.bf16.gmra.mxu0 %v1963
        %v1974 = vpop.f32.mrf.mxu0
        %v1975 = vadd.f32 %v1949, %v1974
        %v1976 = vpop.f32.mrf.mxu0
        %1977 = vdwg.mxu0
        %v1978 = vadd.f32 %v828, %v1975
        %v1979 = vsel %vm856, %v1978, 0.0
        %1980 = vadd.xlane.f32.xlu0 %v1979
        %v1981 = vpop.xlane.xlu0 %1980
        %v1982 = vrcp.pop 32.0
        %v1983 = vmul.f32 32.0, %v1982
        %v1984 = vsub.f32 1.0, %v1983
        %v1985 = vmul.f32 %v1982, %v1984
        %v1986 = vadd.f32 %v1982, %v1985
        %vm1987 = vweird.f32 %v1982
        %v1988 = vsel %vm1987, %v1982, %v1986
        %v1989 = vmul.f32 %v1981, %v1988
        %v1990 = vsub.f32 %v1978, %v1989
        %v1991 = vmul.f32 %v1990, %v1990
        %v1992 = vsel %vm856, %v1991, 0.0
        %1993 = vadd.xlane.f32.xlu0 %v1992
        %v1994 = vpop.xlane.xlu0 %1993
        %v1995 = vmul.f32 %v1994, %v1988
        %v1996 = vadd.f32 %v1995, 1e-05
        %v1997 = vrsqrt.pop %v1996
        %v1998 = vmul.f32 %v1997, %v1996
        %v1999 = vmul.f32 %v1998, %v1997
        %v2000 = vmul.f32 0.5, %v1999
        %v2001 = vsub.f32 1.5, %v2000
        %v2002 = vmul.f32 %v1997, %v2001
        %vm2003 = vweird.f32 %v1996
        %vm2004 = vweird.f32 %v1997
        %vm2005 = vmor %vm2003, %vm2004
        %v2006 = vsel %vm2005, %v1997, %v2002
        %v2007 = vmul.f32 %v1990, %v2006
        %v2008 = vld [vmem:[%s17] sm:$0x1]
        %v2010 = vperm.slane %v2008, 0
        %v2012 = vmul.f32 %v2007, %v2010
        %v2013 = vld [vmem:[%s18] sm:$0x1]
        %v2015 = vperm.slane %v2013, 0
        %v2017 = vadd.f32 %v2012, %v2015
        %v2018 = vpack.c.bf16 %v2017, %v2017
        %v2019 = vld [vmem:[#allocation13] sm:$0xf]
        %v2020 = vld [vmem:[#allocation13 + $0x4] sm:$0xf]
        %v2021 = vld [vmem:[#allocation13 + $0x8] sm:$0xf]
        %v2022 = vld [vmem:[#allocation13 + $0xc] sm:$0xf]
        %v2023 = vld [vmem:[#allocation14] sm:$0x1]
        %v2025 = vperm.slane %v2023, 0
        %v2031 = vunpack.c.l.b16 %v2019
        %v2032 = vunpack.c.l.b16 %v2020
        %v2033 = vunpack.c.l.b16 %v2021
        %v2034 = vunpack.c.l.b16 %v2022
        %v2035 = vpack.c.b16 %v2032, %v2031
        %v2036 = vpack.c.b16 %v2034, %v2033
        %v2040 = vsel %vm856, %v2018, 0
        %2042 = vmatpush.bf16.msra.mxu0 0
        %2043 = vmatpush.bf16.msra.mxu0 0
        %2044 = vmatpush.bf16.msra.mxu0 0
        %2045 = vmatpush.bf16.msra.mxu0 0
        %2046 = vmatpush.bf16.msra.mxu0 0
        %2047 = vmatpush.bf16.msra.mxu0 0
        %2048 = vmatpush.bf16.msra.mxu0 %v2036
        %2049 = vmatpush.bf16.msra.mxu0 %v2035
        %2050 = vmatmul.bf16.gmra.mxu0 %v2040
        %v2051 = vpop.f32.mrf.mxu0
        %v2052 = vadd.f32 %v2025, %v2051
        %v2053 = vpop.f32.mrf.mxu0
        %2054 = vdwg.mxu0
        %v2055 = vmax.f32 %v2052, 0.0
        %v2056 = vpack.c.bf16 %v2055, %v2055
        %v2057 = vld [vmem:[%s15] sm:$0xf]
        %v2058 = vld [vmem:[%s15 + $0x4] sm:$0xf]
        %v2059 = vld [vmem:[%s15 + $0x8] sm:$0xf]
        %v2060 = vld [vmem:[%s15 + $0xc] sm:$0xf]
        %v2061 = vld [vmem:[%s15 + $0x10] sm:$0xf]
        %v2062 = vld [vmem:[%s15 + $0x14] sm:$0xf]
        %v2063 = vld [vmem:[%s15 + $0x18] sm:$0xf]
        %v2064 = vld [vmem:[%s15 + $0x1c] sm:$0xf]
        %v2065 = vld [vmem:[%s16] sm:$0x1]
        %v2067 = vperm.slane %v2065, 0
        %v2077 = vunpack.c.l.b16 %v2057
        %v2078 = vunpack.c.l.b16 %v2058
        %v2079 = vunpack.c.l.b16 %v2059
        %v2080 = vunpack.c.l.b16 %v2060
        %v2081 = vunpack.c.l.b16 %v2061
        %v2082 = vunpack.c.l.b16 %v2062
        %v2083 = vunpack.c.l.b16 %v2063
        %v2084 = vunpack.c.l.b16 %v2064
        %v2085 = vpack.c.b16 %v2078, %v2077
        %v2086 = vpack.c.b16 %v2080, %v2079
        %v2087 = vpack.c.b16 %v2082, %v2081
        %v2088 = vpack.c.b16 %v2084, %v2083
        %vm2093 = vcmask 523264
        %v2095 = vsel %vm2093, %v2056, 0
        %2097 = vmatpush.bf16.msra.mxu0 0
        %2098 = vmatpush.bf16.msra.mxu0 0
        %2099 = vmatpush.bf16.msra.mxu0 0
        %2100 = vmatpush.bf16.msra.mxu0 0
        %2101 = vmatpush.bf16.msra.mxu0 %v2088
        %2102 = vmatpush.bf16.msra.mxu0 %v2087
        %2103 = vmatpush.bf16.msra.mxu0 %v2086
        %2104 = vmatpush.bf16.msra.mxu0 %v2085
        %2105 = vmatmul.bf16.gmra.mxu0 %v2095
        %v2106 = vpop.f32.mrf.mxu0
        %v2107 = vadd.f32 %v2067, %v2106
        %v2108 = vpop.f32.mrf.mxu0
        %2109 = vdwg.mxu0
        %v2110 = vadd.f32 %v2017, %v2107
        %v2111 = vsel %vm856, %v2110, 0.0
        %2112 = vadd.xlane.f32.xlu0 %v2111
        %v2113 = vpop.xlane.xlu0 %2112
        %v2114 = vmul.f32 %v2113, %v1988
        %v2115 = vsub.f32 %v2110, %v2114
        %v2116 = vmul.f32 %v2115, %v2115
        %v2117 = vsel %vm856, %v2116, 0.0
        %2118 = vadd.xlane.f32.xlu0 %v2117
        %v2119 = vpop.xlane.xlu0 %2118
        %v2120 = vmul.f32 %v2119, %v1988
        %v2121 = vadd.f32 %v2120, 1e-05
        %v2122 = vrsqrt.pop %v2121
        %v2123 = vmul.f32 %v2122, %v2121
        %v2124 = vmul.f32 %v2123, %v2122
        %v2125 = vmul.f32 0.5, %v2124
        %v2126 = vsub.f32 1.5, %v2125
        %v2127 = vmul.f32 %v2122, %v2126
        %vm2128 = vweird.f32 %v2121
        %vm2129 = vweird.f32 %v2122
        %vm2130 = vmor %vm2128, %vm2129
        %v2131 = vsel %vm2130, %v2122, %v2127
        %v2132 = vmul.f32 %v2115, %v2131
        %v2133 = vld [vmem:[%s19] sm:$0x1]
        %v2135 = vperm.slane %v2133, 0
        %v2137 = vmul.f32 %v2132, %v2135
        %v2138 = vld [vmem:[%s20] sm:$0x1]
        %v2140 = vperm.slane %v2138, 0
        %v2142 = vadd.f32 %v2137, %v2140
        %2143 = vst.msk [vmem:[%s823] sm:$0xff] %vm856, %v2142
        %s2144 = sand.u32 %s508, 1
        %s2145 = scalar_lea.sflag [#allocation4], %s2144
        %s2146 = sand.u32 %s508, 1
        %s2147 = smul.addr %s2146, 8
        %s2148 = scalar_lea.vmem [#allocation16], %s2147
        // Predicated region
        $region137: #{tpu_custom_call.1} parent=103 // pred_check
          %p2149 = pneg %p518
        $region138: #{tpu_custom_call.1} parent=103 // pred_check_branch
          %2151 = sbr.rel (%p2149) target = $region140
        $region139: #{tpu_custom_call.1} parent=103 // pred_region
          %2153 = vsyncadd %s2145, 0
          %s2154 = smul.addr %s44, 8
          %s2155 = scalar_lea.hbm %s21, %s2154
          %s2157 = sshll.u32 %s2148, 4
          %s2158 = int_to_ptr.vmem [resolvable:$true] %s2157
          %s2159 = sshll.u32 %s2155, 4
          %s2160 = int_to_ptr.hbm [resolvable:$true] %s2159
          %2162 = dma.vmem_to_hbm [thread:$0]  %s2158, 128, %s2160, %s2145
        $region140: #{tpu_custom_call.1} parent=103 // pred_fallthru
          _
      $region104: #{tpu_custom_call.1} parent=5 // pred_fallthru
        _
      %p2163 = scmp.le.s32.totalorder 2, %s39
      // Predicated region
      $region141: #{tpu_custom_call.1} parent=5 // pred_check
        %p2164 = pneg %p2163
      $region142: #{tpu_custom_call.1} parent=5 // pred_check_branch
        %2166 = sbr.rel (%p2164) target = $region144
      $region143: #{tpu_custom_call.1} parent=5 // pred_region
        %s2167 = ssub.s32 %s39, 2
        // Predicated region
        $region145: #{tpu_custom_call.1} parent=143 // pred_check
          %p2168 = pneg %p524
        $region146: #{tpu_custom_call.1} parent=143 // pred_check_branch
          %2170 = sbr.rel (%p2168) target = $region148
        $region147: #{tpu_custom_call.1} parent=143 // pred_region
          %s2171 = sand.u32 %s509, 1
          %s2172 = scalar_lea.sflag [#allocation4], %s2171
          %s2173 = sand.u32 %s509, 1
          %s2174 = smul.addr %s2173, 8
          %s2175 = scalar_lea.vmem [#allocation16], %s2174
          %2177 = dma.done %s2172, 128
        $region148: #{tpu_custom_call.1} parent=143 // pred_fallthru
          _
      $region144: #{tpu_custom_call.1} parent=5 // pred_fallthru
        _
    $region6: #{tpu_custom_call.1} parent=1 // loop_footer
      %s43 = sadd.s32 1, %s39
    $region7: #{tpu_custom_call.1} parent=1 // loop_footer_branch
      %38 = sbr.rel target = $region3
    $region8: #{tpu_custom_call.1} parent=1 // loop_exit
      _
    %2178 = vsyncpa [#allocation3], 1
    %s2179 = scalar_lea.sflag [#allocation3], 1
    %2180 = vsyncpa %s2179, 1
    %2181 = vsyncpa [#allocation6], 1
    %s2182 = scalar_lea.sflag [#allocation6], 1
    %2183 = vsyncpa %s2182, 1
    %2184 = vsyncpa [#allocation9], 1
    %2185 = vsyncpa [#allocation12], 1
    %2186 = vsyncpa [#allocation15], 1
    %2187 = vsyncpa [#allocation4], 1
    %s2188 = scalar_lea.sflag [#allocation4], 1
    %2189 = vsyncpa %s2188, 1

// kernel: tpu_custom_call.1
$region0: #{tpu_custom_call.1}
  #allocation0 [shape = 'u32[]', space=smem, size = 0x4, offset = 0x4, fixed_abs, tag = 'smem constant byte address 0x4 - core index']
  #allocation1 [shape = 'u32[72,128]{1,0:T(1,128)}', space=vmem, size = 0x9000, scoped, tag = 'internal scratch']
  %s0 = inlined_call_operand.hbm [shape: bf16[2,8,32], index: 0, kind: input, shape index: {}]
  %s1 = inlined_call_operand.hbm [shape: bf16[2,8,32], index: 1, kind: input, shape index: {}]
  %s2 = inlined_call_operand.hbm [shape: bf16[2,8,32], index: 2, kind: input, shape index: {}]
  %s3 = inlined_call_operand.hbm [shape: f32[8,8], index: 3, kind: input, shape index: {}]
  %s4 = inlined_call_operand.hbm [shape: f32[8,8], index: 4, kind: input, shape index: {}]
  %s5 = inlined_call_operand.hbm [shape: f32[8,8], index: 5, kind: input, shape index: {}]
  %s6 = inlined_call_operand.vmem [shape: bf16[32,32], index: 6, kind: input, shape index: {}]
  %s7 = inlined_call_operand.vmem [shape: f32[1,32], index: 7, kind: input, shape index: {}]
  %s8 = inlined_call_operand.vmem [shape: bf16[32,32], index: 8, kind: input, shape index: {}]
  %s9 = inlined_call_operand.vmem [shape: f32[1,32], index: 9, kind: input, shape index: {}]
  %s10 = inlined_call_operand.vmem [shape: bf16[32,32], index: 10, kind: input, shape index: {}]
  %s11 = inlined_call_operand.vmem [shape: f32[1,32], index: 11, kind: input, shape index: {}]
  %s12 = inlined_call_operand.vmem [shape: f32[4,1,1,1], index: 12, kind: input, shape index: {}]
  %s13 = inlined_call_operand.hbm [shape: bf16[32,64], index: 13, kind: input, shape index: {}]
  %s14 = inlined_call_operand.hbm [shape: f32[1,64], index: 14, kind: input, shape index: {}]
  %s15 = inlined_call_operand.vmem [shape: bf16[64,32], index: 15, kind: input, shape index: {}]
  %s16 = inlined_call_operand.vmem [shape: f32[1,32], index: 16, kind: input, shape index: {}]
  %s17 = inlined_call_operand.vmem [shape: f32[1,32], index: 17, kind: input, shape index: {}]
  %s18 = inlined_call_operand.vmem [shape: f32[1,32], index: 18, kind: input, shape index: {}]
  %s19 = inlined_call_operand.vmem [shape: f32[1,32], index: 19, kind: input, shape index: {}]
  %s20 = inlined_call_operand.vmem [shape: f32[1,32], index: 20, kind: input, shape index: {}]
  %s21 = inlined_call_operand.hbm [shape: f32[2,8,32], index: 21, kind: output, shape index: {}]
  %s22 = sld [smem:[#allocation0]]
  $region149: #{tpu_custom_call.1} parent=0
    _
  %s24 = ssub.s32 1, %s22
  %s25 = scalar_select 0, %s24, %s22
  $region1: #{tpu_custom_call.1} parent=0
    #allocation2 [shape = 'u8[4096]{0}', space=vmem, size = 0x1000, scoped, tag = 'input window, operand 0']
    #allocation3 [shape = 's32[2]{0}', space=sflag, size = 0x8, scoped, tag = 'scoped memory for tpu_custom_call.1']
    #allocation4 [shape = 's32[2]{0}', space=sflag, size = 0x8, scoped, tag = 'scoped memory for tpu_custom_call.1']
    #allocation5 [shape = 'u8[4096]{0}', space=vmem, size = 0x1000, scoped, tag = 'input window, operand 1']
    #allocation6 [shape = 's32[2]{0}', space=sflag, size = 0x8, scoped, tag = 'scoped memory for tpu_custom_call.1']
    #allocation7 [shape = 'u8[4096]{0}', space=vmem, size = 0x1000, scoped, tag = 'input window, operand 2']
    #allocation8 [shape = 'u8[4096]{0}', space=vmem, size = 0x1000, scoped, tag = 'input window, operand 3, single buffered']
    #allocation9 [shape = 's32[1]{0}', space=sflag, size = 0x4, scoped, tag = 'scoped memory for tpu_custom_call.1']
    #allocation10 [shape = 'u8[4096]{0}', space=vmem, size = 0x1000, scoped, tag = 'input window, operand 4, single buffered']
    #allocation11 [shape = 'u8[4096]{0}', space=vmem, size = 0x1000, scoped, tag = 'input window, operand 5, single buffered']
    #allocation12 [shape = 's32[1]{0}', space=sflag, size = 0x4, scoped, tag = 'scoped memory for tpu_custom_call.1']
    #allocation13 [shape = 'u8[8192]{0}', space=vmem, size = 0x2000, scoped, tag = 'input window, operand 13, single buffered']
    #allocation14 [shape = 'u8[512]{0}', space=vmem, size = 0x400, scoped, tag = 'input window, operand 14, single buffered']
    #allocation15 [shape = 's32[1]{0}', space=sflag, size = 0x4, scoped, tag = 'scoped memory for tpu_custom_call.1']
    #allocation16 [shape = 'u8[8192]{0}', space=vmem, size = 0x2000, scoped, tag = 'output window, operand 0']
    %26 = vsyncpa [#allocation3], 0
    %s27 = scalar_lea.sflag [#allocation3], 1
    %28 = vsyncpa %s27, 0
    %29 = vsyncpa [#allocation6], 0
    %s30 = scalar_lea.sflag [#allocation6], 1
    %31 = vsyncpa %s30, 0
    %32 = vsyncpa [#allocation9], 0
    %33 = vsyncpa [#allocation12], 0
    %34 = vsyncpa [#allocation15], 0
    %35 = vsyncpa [#allocation4], 0
    %s36 = scalar_lea.sflag [#allocation4], 1
    %37 = vsyncpa %s36, 0
    loop: start=0, step=1, limit=4
    $region2: #{tpu_custom_call.1} parent=1 // loop_pre_header
      _
    $region3: #{tpu_custom_call.1} parent=1 // loop_header
      %s39 = sphi 0, %s43
      %p40 = scmp.ge.s32.totalorder %s39, 4
      %s49 = sphi 0, %s51
      %s52 = sphi 0, %s49
      %s53 = sphi 0, %s52
      %s69 = sphi 0, %s53
      %s75 = sphi 0, %s77
      %s78 = sphi 0, %s75
      %s79 = sphi 0, %s78
      %s95 = sphi 0, %s79
      %s101 = sphi 0, %s103
      %s104 = sphi 0, %s101
      %s105 = sphi 0, %s104
      %s121 = sphi 0, %s105
      %s125 = sphi 0, %s125
      %s127 = sphi 0, %s125
      %s128 = sphi 0, %s127
      %s142 = sphi 0, %s128
      %s146 = sphi 0, %s146
      %s148 = sphi 0, %s146
      %s149 = sphi 0, %s148
      %s163 = sphi 0, %s149
      %s167 = sphi 0, %s167
      %s169 = sphi 0, %s167
      %s170 = sphi 0, %s169
      %s184 = sphi 0, %s170
      %s188 = sphi 0, %s188
      %s190 = sphi 0, %s188
      %s191 = sphi 0, %s190
      %s205 = sphi 0, %s191
      %s209 = sphi 0, %s209
      %s211 = sphi 0, %s209
      %s212 = sphi 0, %s211
      %s226 = sphi 0, %s212
      %s230 = sphi 0, %s230
      %s232 = sphi 0, %s230
      %s233 = sphi 0, %s232
      %s247 = sphi 0, %s233
      %s251 = sphi 0, %s251
      %s253 = sphi 0, %s251
      %s254 = sphi 0, %s253
      %s268 = sphi 0, %s254
      %s272 = sphi 0, %s272
      %s274 = sphi 0, %s272
      %s275 = sphi 0, %s274
      %s289 = sphi 0, %s275
      %s293 = sphi 0, %s293
      %s295 = sphi 0, %s293
      %s296 = sphi 0, %s295
      %s310 = sphi 0, %s296
      %s314 = sphi 0, %s314
      %s316 = sphi 0, %s314
      %s317 = sphi 0, %s316
      %s331 = sphi 0, %s317
      %s335 = sphi 0, %s335
      %s337 = sphi 0, %s335
      %s338 = sphi 0, %s337
      %s352 = sphi 0, %s338
      %s356 = sphi 0, %s356
      %s358 = sphi 0, %s356
      %s359 = sphi 0, %s358
      %s373 = sphi 0, %s359
      %s377 = sphi 0, %s377
      %s379 = sphi 0, %s377
      %s380 = sphi 0, %s379
      %s394 = sphi 0, %s380
      %s398 = sphi 0, %s398
      %s400 = sphi 0, %s398
      %s401 = sphi 0, %s400
      %s415 = sphi 0, %s401
      %s419 = sphi 0, %s419
      %s421 = sphi 0, %s419
      %s422 = sphi 0, %s421
      %s436 = sphi 0, %s422
      %s440 = sphi 0, %s440
      %s442 = sphi 0, %s440
      %s443 = sphi 0, %s442
      %s457 = sphi 0, %s443
      %s461 = sphi 0, %s461
      %s463 = sphi 0, %s461
      %s464 = sphi 0, %s463
      %s478 = sphi 0, %s464
      %s482 = sphi 0, %s482
      %s484 = sphi 0, %s482
      %s485 = sphi 0, %s484
      %s499 = sphi 0, %s485
      %s505 = sphi 0, %s507
      %s508 = sphi 0, %s505
      %s509 = sphi 0, %s508
      %s525 = sphi 0, %s509
    $region4: #{tpu_custom_call.1} parent=1 // loop_header_branch
      %42 = sbr.rel (%p40) target = $region8
    $region5: #{tpu_custom_call.1} parent=1 // loop_body
      %s44 = ssub.s32 %s39, 1
      %s45 = ssub.s32 %s39, 2
      %s46 = sadd.s32 %s39, 1
      %s47 = ssub.s32 %s39, %s46
      %p48 = scmp.eq.s32.totalorder %s47, 0
      %s50 = sadd.s32 %s49, 1
      %s51 = scalar_select %p48, %s49, %s50
      %p54 = pneg %p48
      %p55 = scmp.eq.s32.totalorder %s39, 1
      %p56 = por %p54, %p55
      %p57 = scmp.ne.s32.totalorder %s49, %s52
      %p58 = scmp.eq.s32.totalorder %s39, 0
      %p59 = por %p57, %p58
      %p60 = scmp.ne.s32.totalorder %s49, %s52
      %p61 = scmp.eq.s32.totalorder %s44, 1
      %p62 = por %p60, %p61
      %p63 = scmp.ne.s32.totalorder %s52, %s53
      %p64 = scmp.eq.s32.totalorder %s44, 0
      %p65 = por %p63, %p64
      %p66 = scmp.ne.s32.totalorder %s52, %s53
      %p67 = scmp.eq.s32.totalorder %s45, 1
      %p68 = por %p66, %p67
      %p70 = scmp.ne.s32.totalorder %s53, %s69
      %p71 = scmp.eq.s32.totalorder %s45, 0
      %p72 = por %p70, %p71
      %s73 = ssub.s32 %s39, %s46
      %p74 = scmp.eq.s32.totalorder %s73, 0
      %s76 = sadd.s32 %s75, 1
      %s77 = scalar_select %p74, %s75, %s76
      %p80 = pneg %p74
      %p81 = scmp.eq.s32.totalorder %s39, 1
      %p82 = por %p80, %p81
      %p83 = scmp.ne.s32.totalorder %s75, %s78
      %p84 = scmp.eq.s32.totalorder %s39, 0
      %p85 = por %p83, %p84
      %p86 = scmp.ne.s32.totalorder %s75, %s78
      %p87 = scmp.eq.s32.totalorder %s44, 1
      %p88 = por %p86, %p87
      %p89 = scmp.ne.s32.totalorder %s78, %s79
      %p90 = scmp.eq.s32.totalorder %s44, 0
      %p91 = por %p89, %p90
      %p92 = scmp.ne.s32.totalorder %s78, %s79
      %p93 = scmp.eq.s32.totalorder %s45, 1
      %p94 = por %p92, %p93
      %p96 = scmp.ne.s32.totalorder %s79, %s95
      %p97 = scmp.eq.s32.totalorder %s45, 0
      %p98 = por %p96, %p97
      %s99 = ssub.s32 %s39, %s46
      %p100 = scmp.eq.s32.totalorder %s99, 0
      %s102 = sadd.s32 %s101, 1
      %s103 = scalar_select %p100, %s101, %s102
      %p106 = pneg %p100
      %p107 = scmp.eq.s32.totalorder %s39, 1
      %p108 = por %p106, %p107
      %p109 = scmp.ne.s32.totalorder %s101, %s104
      %p110 = scmp.eq.s32.totalorder %s39, 0
      %p111 = por %p109, %p110
      %p112 = scmp.ne.s32.totalorder %s101, %s104
      %p113 = scmp.eq.s32.totalorder %s44, 1
      %p114 = por %p112, %p113
      %p115 = scmp.ne.s32.totalorder %s104, %s105
      %p116 = scmp.eq.s32.totalorder %s44, 0
      %p117 = por %p115, %p116
      %p118 = scmp.ne.s32.totalorder %s104, %s105
      %p119 = scmp.eq.s32.totalorder %s45, 1
      %p120 = por %p118, %p119
      %p122 = scmp.ne.s32.totalorder %s105, %s121
      %p123 = scmp.eq.s32.totalorder %s45, 0
      %p124 = por %p122, %p123
      %s126 = sadd.s32 %s125, 1
      %p129 = scmp.eq.s32.totalorder %s39, 1
      %p130 = scmp.ne.s32.totalorder %s125, %s127
      %p131 = scmp.eq.s32.totalorder %s39, 0
      %p132 = por %p130, %p131
      %p133 = scmp.ne.s32.totalorder %s125, %s127
      %p134 = scmp.eq.s32.totalorder %s44, 1
      %p135 = por %p133, %p134
      %p136 = scmp.ne.s32.totalorder %s127, %s128
      %p137 = scmp.eq.s32.totalorder %s44, 0
      %p138 = por %p136, %p137
      %p139 = scmp.ne.s32.totalorder %s127, %s128
      %p140 = scmp.eq.s32.totalorder %s45, 1
      %p141 = por %p139, %p140
      %p143 = scmp.ne.s32.totalorder %s128, %s142
      %p144 = scmp.eq.s32.totalorder %s45, 0
      %p145 = por %p143, %p144
      %s147 = sadd.s32 %s146, 1
      %p150 = scmp.eq.s32.totalorder %s39, 1
      %p151 = scmp.ne.s32.totalorder %s146, %s148
      %p152 = scmp.eq.s32.totalorder %s39, 0
      %p153 = por %p151, %p152
      %p154 = scmp.ne.s32.totalorder %s146, %s148
      %p155 = scmp.eq.s32.totalorder %s44, 1
      %p156 = por %p154, %p155
      %p157 = scmp.ne.s32.totalorder %s148, %s149
      %p158 = scmp.eq.s32.totalorder %s44, 0
      %p159 = por %p157, %p158
      %p160 = scmp.ne.s32.totalorder %s148, %s149
      %p161 = scmp.eq.s32.totalorder %s45, 1
      %p162 = por %p160, %p161
      %p164 = scmp.ne.s32.totalorder %s149, %s163
      %p165 = scmp.eq.s32.totalorder %s45, 0
      %p166 = por %p164, %p165
      %s168 = sadd.s32 %s167, 1
      %p171 = scmp.eq.s32.totalorder %s39, 1
      %p172 = scmp.ne.s32.totalorder %s167, %s169
      %p173 = scmp.eq.s32.totalorder %s39, 0
      %p174 = por %p172, %p173
      %p175 = scmp.ne.s32.totalorder %s167, %s169
      %p176 = scmp.eq.s32.totalorder %s44, 1
      %p177 = por %p175, %p176
      %p178 = scmp.ne.s32.totalorder %s169, %s170
      %p179 = scmp.eq.s32.totalorder %s44, 0
      %p180 = por %p178, %p179
      %p181 = scmp.ne.s32.totalorder %s169, %s170
      %p182 = scmp.eq.s32.totalorder %s45, 1
      %p183 = por %p181, %p182
      %p185 = scmp.ne.s32.totalorder %s170, %s184
      %p186 = scmp.eq.s32.totalorder %s45, 0
      %p187 = por %p185, %p186
      %s189 = sadd.s32 %s188, 1
      %p192 = scmp.eq.s32.totalorder %s39, 1
      %p193 = scmp.ne.s32.totalorder %s188, %s190
      %p194 = scmp.eq.s32.totalorder %s39, 0
      %p195 = por %p193, %p194
      %p196 = scmp.ne.s32.totalorder %s188, %s190
      %p197 = scmp.eq.s32.totalorder %s44, 1
      %p198 = por %p196, %p197
      %p199 = scmp.ne.s32.totalorder %s190, %s191
      %p200 = scmp.eq.s32.totalorder %s44, 0
      %p201 = por %p199, %p200
      %p202 = scmp.ne.s32.totalorder %s190, %s191
      %p203 = scmp.eq.s32.totalorder %s45, 1
      %p204 = por %p202, %p203
      %p206 = scmp.ne.s32.totalorder %s191, %s205
      %p207 = scmp.eq.s32.totalorder %s45, 0
      %p208 = por %p206, %p207
      %s210 = sadd.s32 %s209, 1
      %p213 = scmp.eq.s32.totalorder %s39, 1
      %p214 = scmp.ne.s32.totalorder %s209, %s211
      %p215 = scmp.eq.s32.totalorder %s39, 0
      %p216 = por %p214, %p215
      %p217 = scmp.ne.s32.totalorder %s209, %s211
      %p218 = scmp.eq.s32.totalorder %s44, 1
      %p219 = por %p217, %p218
      %p220 = scmp.ne.s32.totalorder %s211, %s212
      %p221 = scmp.eq.s32.totalorder %s44, 0
      %p222 = por %p220, %p221
      %p223 = scmp.ne.s32.totalorder %s211, %s212
      %p224 = scmp.eq.s32.totalorder %s45, 1
      %p225 = por %p223, %p224
      %p227 = scmp.ne.s32.totalorder %s212, %s226
      %p228 = scmp.eq.s32.totalorder %s45, 0
      %p229 = por %p227, %p228
      %s231 = sadd.s32 %s230, 1
      %p234 = scmp.eq.s32.totalorder %s39, 1
      %p235 = scmp.ne.s32.totalorder %s230, %s232
      %p236 = scmp.eq.s32.totalorder %s39, 0
      %p237 = por %p235, %p236
      %p238 = scmp.ne.s32.totalorder %s230, %s232
      %p239 = scmp.eq.s32.totalorder %s44, 1
      %p240 = por %p238, %p239
      %p241 = scmp.ne.s32.totalorder %s232, %s233
      %p242 = scmp.eq.s32.totalorder %s44, 0
      %p243 = por %p241, %p242
      %p244 = scmp.ne.s32.totalorder %s232, %s233
      %p245 = scmp.eq.s32.totalorder %s45, 1
      %p246 = por %p244, %p245
      %p248 = scmp.ne.s32.totalorder %s233, %s247
      %p249 = scmp.eq.s32.totalorder %s45, 0
      %p250 = por %p248, %p249
      %s252 = sadd.s32 %s251, 1
      %p255 = scmp.eq.s32.totalorder %s39, 1
      %p256 = scmp.ne.s32.totalorder %s251, %s253
      %p257 = scmp.eq.s32.totalorder %s39, 0
      %p258 = por %p256, %p257
      %p259 = scmp.ne.s32.totalorder %s251, %s253
      %p260 = scmp.eq.s32.totalorder %s44, 1
      %p261 = por %p259, %p260
      %p262 = scmp.ne.s32.totalorder %s253, %s254
      %p263 = scmp.eq.s32.totalorder %s44, 0
      %p264 = por %p262, %p263
      %p265 = scmp.ne.s32.totalorder %s253, %s254
      %p266 = scmp.eq.s32.totalorder %s45, 1
      %p267 = por %p265, %p266
      %p269 = scmp.ne.s32.totalorder %s254, %s268
      %p270 = scmp.eq.s32.totalorder %s45, 0
      %p271 = por %p269, %p270
      %s273 = sadd.s32 %s272, 1
      %p276 = scmp.eq.s32.totalorder %s39, 1
      %p277 = scmp.ne.s32.totalorder %s272, %s274
      %p278 = scmp.eq.s32.totalorder %s39, 0
      %p279 = por %p277, %p278
      %p280 = scmp.ne.s32.totalorder %s272, %s274
      %p281 = scmp.eq.s32.totalorder %s44, 1
      %p282 = por %p280, %p281
      %p283 = scmp.ne.s32.totalorder %s274, %s275
      %p284 = scmp.eq.s32.totalorder %s44, 0
      %p285 = por %p283, %p284
      %p286 = scmp.ne.s32.totalorder %s274, %s275
      %p287 = scmp.eq.s32.totalorder %s45, 1
      %p288 = por %p286, %p287
      %p290 = scmp.ne.s32.totalorder %s275, %s289
      %p291 = scmp.eq.s32.totalorder %s45, 0
      %p292 = por %p290, %p291
      %s294 = sadd.s32 %s293, 1
      %p297 = scmp.eq.s32.totalorder %s39, 1
      %p298 = scmp.ne.s32.totalorder %s293, %s295
      %p299 = scmp.eq.s32.totalorder %s39, 0
      %p300 = por %p298, %p299
      %p301 = scmp.ne.s32.totalorder %s293, %s295
      %p302 = scmp.eq.s32.totalorder %s44, 1
      %p303 = por %p301, %p302
      %p304 = scmp.ne.s32.totalorder %s295, %s296
      %p305 = scmp.eq.s32.totalorder %s44, 0
      %p306 = por %p304, %p305
      %p307 = scmp.ne.s32.totalorder %s295, %s296
      %p308 = scmp.eq.s32.totalorder %s45, 1
      %p309 = por %p307, %p308
      %p311 = scmp.ne.s32.totalorder %s296, %s310
      %p312 = scmp.eq.s32.totalorder %s45, 0
      %p313 = por %p311, %p312
      %s315 = sadd.s32 %s314, 1
      %p318 = scmp.eq.s32.totalorder %s39, 1
      %p319 = scmp.ne.s32.totalorder %s314, %s316
      %p320 = scmp.eq.s32.totalorder %s39, 0
      %p321 = por %p319, %p320
      %p322 = scmp.ne.s32.totalorder %s314, %s316
      %p323 = scmp.eq.s32.totalorder %s44, 1
      %p324 = por %p322, %p323
      %p325 = scmp.ne.s32.totalorder %s316, %s317
      %p326 = scmp.eq.s32.totalorder %s44, 0
      %p327 = por %p325, %p326
      %p328 = scmp.ne.s32.totalorder %s316, %s317
      %p329 = scmp.eq.s32.totalorder %s45, 1
      %p330 = por %p328, %p329
      %p332 = scmp.ne.s32.totalorder %s317, %s331
      %p333 = scmp.eq.s32.totalorder %s45, 0
      %p334 = por %p332, %p333
      %s336 = sadd.s32 %s335, 1
      %p339 = scmp.eq.s32.totalorder %s39, 1
      %p340 = scmp.ne.s32.totalorder %s335, %s337
      %p341 = scmp.eq.s32.totalorder %s39, 0
      %p342 = por %p340, %p341
      %p343 = scmp.ne.s32.totalorder %s335, %s337
      %p344 = scmp.eq.s32.totalorder %s44, 1
      %p345 = por %p343, %p344
      %p346 = scmp.ne.s32.totalorder %s337, %s338
      %p347 = scmp.eq.s32.totalorder %s44, 0
      %p348 = por %p346, %p347
      %p349 = scmp.ne.s32.totalorder %s337, %s338
      %p350 = scmp.eq.s32.totalorder %s45, 1
      %p351 = por %p349, %p350
      %p353 = scmp.ne.s32.totalorder %s338, %s352
      %p354 = scmp.eq.s32.totalorder %s45, 0
      %p355 = por %p353, %p354
      %s357 = sadd.s32 %s356, 1
      %p360 = scmp.eq.s32.totalorder %s39, 1
      %p361 = scmp.ne.s32.totalorder %s356, %s358
      %p362 = scmp.eq.s32.totalorder %s39, 0
      %p363 = por %p361, %p362
      %p364 = scmp.ne.s32.totalorder %s356, %s358
      %p365 = scmp.eq.s32.totalorder %s44, 1
      %p366 = por %p364, %p365
      %p367 = scmp.ne.s32.totalorder %s358, %s359
      %p368 = scmp.eq.s32.totalorder %s44, 0
      %p369 = por %p367, %p368
      %p370 = scmp.ne.s32.totalorder %s358, %s359
      %p371 = scmp.eq.s32.totalorder %s45, 1
      %p372 = por %p370, %p371
      %p374 = scmp.ne.s32.totalorder %s359, %s373
      %p375 = scmp.eq.s32.totalorder %s45, 0
      %p376 = por %p374, %p375
      %s378 = sadd.s32 %s377, 1
      %p381 = scmp.eq.s32.totalorder %s39, 1
      %p382 = scmp.ne.s32.totalorder %s377, %s379
      %p383 = scmp.eq.s32.totalorder %s39, 0
      %p384 = por %p382, %p383
      %p385 = scmp.ne.s32.totalorder %s377, %s379
      %p386 = scmp.eq.s32.totalorder %s44, 1
      %p387 = por %p385, %p386
      %p388 = scmp.ne.s32.totalorder %s379, %s380
      %p389 = scmp.eq.s32.totalorder %s44, 0
      %p390 = por %p388, %p389
      %p391 = scmp.ne.s32.totalorder %s379, %s380
      %p392 = scmp.eq.s32.totalorder %s45, 1
      %p393 = por %p391, %p392
      %p395 = scmp.ne.s32.totalorder %s380, %s394
      %p396 = scmp.eq.s32.totalorder %s45, 0
      %p397 = por %p395, %p396
      %s399 = sadd.s32 %s398, 1
      %p402 = scmp.eq.s32.totalorder %s39, 1
      %p403 = scmp.ne.s32.totalorder %s398, %s400
      %p404 = scmp.eq.s32.totalorder %s39, 0
      %p405 = por %p403, %p404
      %p406 = scmp.ne.s32.totalorder %s398, %s400
      %p407 = scmp.eq.s32.totalorder %s44, 1
      %p408 = por %p406, %p407
      %p409 = scmp.ne.s32.totalorder %s400, %s401
      %p410 = scmp.eq.s32.totalorder %s44, 0
      %p411 = por %p409, %p410
      %p412 = scmp.ne.s32.totalorder %s400, %s401
      %p413 = scmp.eq.s32.totalorder %s45, 1
      %p414 = por %p412, %p413
      %p416 = scmp.ne.s32.totalorder %s401, %s415
      %p417 = scmp.eq.s32.totalorder %s45, 0
      %p418 = por %p416, %p417
      %s420 = sadd.s32 %s419, 1
      %p423 = scmp.eq.s32.totalorder %s39, 1
      %p424 = scmp.ne.s32.totalorder %s419, %s421
      %p425 = scmp.eq.s32.totalorder %s39, 0
      %p426 = por %p424, %p425
      %p427 = scmp.ne.s32.totalorder %s419, %s421
      %p428 = scmp.eq.s32.totalorder %s44, 1
      %p429 = por %p427, %p428
      %p430 = scmp.ne.s32.totalorder %s421, %s422
      %p431 = scmp.eq.s32.totalorder %s44, 0
      %p432 = por %p430, %p431
      %p433 = scmp.ne.s32.totalorder %s421, %s422
      %p434 = scmp.eq.s32.totalorder %s45, 1
      %p435 = por %p433, %p434
      %p437 = scmp.ne.s32.totalorder %s422, %s436
      %p438 = scmp.eq.s32.totalorder %s45, 0
      %p439 = por %p437, %p438
      %s441 = sadd.s32 %s440, 1
      %p444 = scmp.eq.s32.totalorder %s39, 1
      %p445 = scmp.ne.s32.totalorder %s440, %s442
      %p446 = scmp.eq.s32.totalorder %s39, 0
      %p447 = por %p445, %p446
      %p448 = scmp.ne.s32.totalorder %s440, %s442
      %p449 = scmp.eq.s32.totalorder %s44, 1
      %p450 = por %p448, %p449
      %p451 = scmp.ne.s32.totalorder %s442, %s443
      %p452 = scmp.eq.s32.totalorder %s44, 0
      %p453 = por %p451, %p452
      %p454 = scmp.ne.s32.totalorder %s442, %s443
      %p455 = scmp.eq.s32.totalorder %s45, 1
      %p456 = por %p454, %p455
      %p458 = scmp.ne.s32.totalorder %s443, %s457
      %p459 = scmp.eq.s32.totalorder %s45, 0
      %p460 = por %p458, %p459
      %s462 = sadd.s32 %s461, 1
      %p465 = scmp.eq.s32.totalorder %s39, 1
      %p466 = scmp.ne.s32.totalorder %s461, %s463
      %p467 = scmp.eq.s32.totalorder %s39, 0
      %p468 = por %p466, %p467
      %p469 = scmp.ne.s32.totalorder %s461, %s463
      %p470 = scmp.eq.s32.totalorder %s44, 1
      %p471 = por %p469, %p470
      %p472 = scmp.ne.s32.totalorder %s463, %s464
      %p473 = scmp.eq.s32.totalorder %s44, 0
      %p474 = por %p472, %p473
      %p475 = scmp.ne.s32.totalorder %s463, %s464
      %p476 = scmp.eq.s32.totalorder %s45, 1
      %p477 = por %p475, %p476
      %p479 = scmp.ne.s32.totalorder %s464, %s478
      %p480 = scmp.eq.s32.totalorder %s45, 0
      %p481 = por %p479, %p480
      %s483 = sadd.s32 %s482, 1
      %p486 = scmp.eq.s32.totalorder %s39, 1
      %p487 = scmp.ne.s32.totalorder %s482, %s484
      %p488 = scmp.eq.s32.totalorder %s39, 0
      %p489 = por %p487, %p488
      %p490 = scmp.ne.s32.totalorder %s482, %s484
      %p491 = scmp.eq.s32.totalorder %s44, 1
      %p492 = por %p490, %p491
      %p493 = scmp.ne.s32.totalorder %s484, %s485
      %p494 = scmp.eq.s32.totalorder %s44, 0
      %p495 = por %p493, %p494
      %p496 = scmp.ne.s32.totalorder %s484, %s485
      %p497 = scmp.eq.s32.totalorder %s45, 1
      %p498 = por %p496, %p497
      %p500 = scmp.ne.s32.totalorder %s485, %s499
      %p501 = scmp.eq.s32.totalorder %s45, 0
      %p502 = por %p500, %p501
      %s503 = ssub.s32 %s39, %s46
      %p504 = scmp.eq.s32.totalorder %s503, 0
      %s506 = sadd.s32 %s505, 1
      %s507 = scalar_select %p504, %s505, %s506
      %p510 = pneg %p504
      %p511 = scmp.eq.s32.totalorder %s39, 1
      %p512 = por %p510, %p511
      %p513 = scmp.ne.s32.totalorder %s505, %s508
      %p514 = scmp.eq.s32.totalorder %s39, 0
      %p515 = por %p513, %p514
      %p516 = scmp.ne.s32.totalorder %s505, %s508
      %p517 = scmp.eq.s32.totalorder %s44, 1
      %p518 = por %p516, %p517
      %p519 = scmp.ne.s32.totalorder %s508, %s509
      %p520 = scmp.eq.s32.totalorder %s44, 0
      %p521 = por %p519, %p520
      %p522 = scmp.ne.s32.totalorder %s508, %s509
      %p523 = scmp.eq.s32.totalorder %s45, 1
      %p524 = por %p522, %p523
      %p526 = scmp.ne.s32.totalorder %s509, %s525
      %p527 = scmp.eq.s32.totalorder %s45, 0
      %p528 = por %p526, %p527
      %p529 = scmp.le.s32.totalorder 1, %s39
      %p530 = scmp.lt.s32.totalorder %s39, 3
      %p531 = pnand %p529, %p530
      %p532 = pneg %p531
      // Predicated region
      $region9: #{tpu_custom_call.1} parent=5 // pred_check
        _
      $region10: #{tpu_custom_call.1} parent=5 // pred_check_branch
        %534 = sbr.rel (%p531) target = $region12
      $region11: #{tpu_custom_call.1} parent=5 // pred_region
        %s535 = ssub.s32 %s39, 1
        // Predicated region
        $region13: #{tpu_custom_call.1} parent=11 // pred_check
          %p536 = pneg %p138
        $region14: #{tpu_custom_call.1} parent=11 // pred_check_branch
          %538 = sbr.rel (%p536) target = $region16
        $region15: #{tpu_custom_call.1} parent=11 // pred_region
          %540 = vsyncadd [#allocation9], 0
          %s542 = sshll.u32 %s3, 4
          %s543 = int_to_ptr.hbm [resolvable:$true] %s542
          %s544 = sshll.u32 [#allocation8], 4
          %s545 = int_to_ptr.vmem [resolvable:$true] %s544
          %547 = dma.hbm_to_vmem [thread:$0]  %s543, 128, %s545, [#allocation9]
        $region16: #{tpu_custom_call.1} parent=11 // pred_fallthru
          _
        // Predicated region
        $region17: #{tpu_custom_call.1} parent=11 // pred_check
          %p548 = pneg %p159
        $region18: #{tpu_custom_call.1} parent=11 // pred_check_branch
          %550 = sbr.rel (%p548) target = $region20
        $region19: #{tpu_custom_call.1} parent=11 // pred_region
          %552 = vsyncadd [#allocation9], 0
          %s554 = sshll.u32 %s4, 4
          %s555 = int_to_ptr.hbm [resolvable:$true] %s554
          %s556 = sshll.u32 [#allocation10], 4
          %s557 = int_to_ptr.vmem [resolvable:$true] %s556
          %559 = dma.hbm_to_vmem [thread:$0]  %s555, 128, %s557, [#allocation9]
        $region20: #{tpu_custom_call.1} parent=11 // pred_fallthru
          _
        // Predicated region
        $region21: #{tpu_custom_call.1} parent=11 // pred_check
          %p560 = pneg %p180
        $region22: #{tpu_custom_call.1} parent=11 // pred_check_branch
          %562 = sbr.rel (%p560) target = $region24
        $region23: #{tpu_custom_call.1} parent=11 // pred_region
          %564 = vsyncadd [#allocation12], 0
          %s566 = sshll.u32 %s5, 4
          %s567 = int_to_ptr.hbm [resolvable:$true] %s566
          %s568 = sshll.u32 [#allocation11], 4
          %s569 = int_to_ptr.vmem [resolvable:$true] %s568
          %571 = dma.hbm_to_vmem [thread:$0]  %s567, 128, %s569, [#allocation12]
        $region24: #{tpu_custom_call.1} parent=11 // pred_fallthru
          _
        // Predicated region
        $region25: #{tpu_custom_call.1} parent=11 // pred_check
          %p572 = pneg %p201
        $region26: #{tpu_custom_call.1} parent=11 // pred_check_branch
          %574 = sbr.rel (%p572) target = $region28
        $region27: #{tpu_custom_call.1} parent=11 // pred_region
          _
        $region28: #{tpu_custom_call.1} parent=11 // pred_fallthru
          _
        // Predicated region
        $region29: #{tpu_custom_call.1} parent=11 // pred_check
          %p575 = pneg %p222
        $region30: #{tpu_custom_call.1} parent=11 // pred_check_branch
          %577 = sbr.rel (%p575) target = $region32
        $region31: #{tpu_custom_call.1} parent=11 // pred_region
          _
        $region32: #{tpu_custom_call.1} parent=11 // pred_fallthru
          _
        // Predicated region
        $region33: #{tpu_custom_call.1} parent=11 // pred_check
          %p578 = pneg %p243
        $region34: #{tpu_custom_call.1} parent=11 // pred_check_branch
          %580 = sbr.rel (%p578) target = $region36
        $region35: #{tpu_custom_call.1} parent=11 // pred_region
          _
        $region36: #{tpu_custom_call.1} parent=11 // pred_fallthru
          _
        // Predicated region
        $region37: #{tpu_custom_call.1} parent=11 // pred_check
          %p581 = pneg %p264
        $region38: #{tpu_custom_call.1} parent=11 // pred_check_branch
          %583 = sbr.rel (%p581) target = $region40
        $region39: #{tpu_custom_call.1} parent=11 // pred_region
          _
        $region40: #{tpu_custom_call.1} parent=11 // pred_fallthru
          _
        // Predicated region
        $region41: #{tpu_custom_call.1} parent=11 // pred_check
          %p584 = pneg %p285
        $region42: #{tpu_custom_call.1} parent=11 // pred_check_branch
          %586 = sbr.rel (%p584) target = $region44
        $region43: #{tpu_custom_call.1} parent=11 // pred_region
          _
        $region44: #{tpu_custom_call.1} parent=11 // pred_fallthru
          _
        // Predicated region
        $region45: #{tpu_custom_call.1} parent=11 // pred_check
          %p587 = pneg %p306
        $region46: #{tpu_custom_call.1} parent=11 // pred_check_branch
          %589 = sbr.rel (%p587) target = $region48
        $region47: #{tpu_custom_call.1} parent=11 // pred_region
          _
        $region48: #{tpu_custom_call.1} parent=11 // pred_fallthru
          _
        // Predicated region
        $region49: #{tpu_custom_call.1} parent=11 // pred_check
          %p590 = pneg %p327
        $region50: #{tpu_custom_call.1} parent=11 // pred_check_branch
          %592 = sbr.rel (%p590) target = $region52
        $region51: #{tpu_custom_call.1} parent=11 // pred_region
          _
        $region52: #{tpu_custom_call.1} parent=11 // pred_fallthru
          _
        // Predicated region
        $region53: #{tpu_custom_call.1} parent=11 // pred_check
          %p593 = pneg %p348
        $region54: #{tpu_custom_call.1} parent=11 // pred_check_branch
          %595 = sbr.rel (%p593) target = $region56
        $region55: #{tpu_custom_call.1} parent=11 // pred_region
          %597 = vsyncadd [#allocation12], 0
          %s598 = sshll.u32 %s13, 4
          %s599 = int_to_ptr.hbm [resolvable:$true] %s598
          %s600 = sshll.u32 [#allocation13], 4
          %s601 = int_to_ptr.vmem [resolvable:$true] %s600
          %606 = dma.hbm_to_vmem [thread:$0]  %s599, 256, %s601, [#allocation12], 64, 64, 4
        $region56: #{tpu_custom_call.1} parent=11 // pred_fallthru
          _
        // Predicated region
        $region57: #{tpu_custom_call.1} parent=11 // pred_check
          %p607 = pneg %p369
        $region58: #{tpu_custom_call.1} parent=11 // pred_check_branch
          %609 = sbr.rel (%p607) target = $region60
        $region59: #{tpu_custom_call.1} parent=11 // pred_region
          %611 = vsyncadd [#allocation15], 0
          %s613 = sshll.u32 %s14, 4
          %s614 = int_to_ptr.hbm [resolvable:$true] %s613
          %s615 = sshll.u32 [#allocation14], 4
          %s616 = int_to_ptr.vmem [resolvable:$true] %s615
          %618 = dma.hbm_to_vmem [thread:$0]  %s614, 16, %s616, [#allocation15]
        $region60: #{tpu_custom_call.1} parent=11 // pred_fallthru
          _
        // Predicated region
        $region61: #{tpu_custom_call.1} parent=11 // pred_check
          %p619 = pneg %p390
        $region62: #{tpu_custom_call.1} parent=11 // pred_check_branch
          %621 = sbr.rel (%p619) target = $region64
        $region63: #{tpu_custom_call.1} parent=11 // pred_region
          _
        $region64: #{tpu_custom_call.1} parent=11 // pred_fallthru
          _
        // Predicated region
        $region65: #{tpu_custom_call.1} parent=11 // pred_check
          %p622 = pneg %p411
        $region66: #{tpu_custom_call.1} parent=11 // pred_check_branch
          %624 = sbr.rel (%p622) target = $region68
        $region67: #{tpu_custom_call.1} parent=11 // pred_region
          _
        $region68: #{tpu_custom_call.1} parent=11 // pred_fallthru
          _
        // Predicated region
        $region69: #{tpu_custom_call.1} parent=11 // pred_check
          %p625 = pneg %p432
        $region70: #{tpu_custom_call.1} parent=11 // pred_check_branch
          %627 = sbr.rel (%p625) target = $region72
        $region71: #{tpu_custom_call.1} parent=11 // pred_region
          _
        $region72: #{tpu_custom_call.1} parent=11 // pred_fallthru
          _
        // Predicated region
        $region73: #{tpu_custom_call.1} parent=11 // pred_check
          %p628 = pneg %p453
        $region74: #{tpu_custom_call.1} parent=11 // pred_check_branch
          %630 = sbr.rel (%p628) target = $region76
        $region75: #{tpu_custom_call.1} parent=11 // pred_region
          _
        $region76: #{tpu_custom_call.1} parent=11 // pred_fallthru
          _
        // Predicated region
        $region77: #{tpu_custom_call.1} parent=11 // pred_check
          %p631 = pneg %p474
        $region78: #{tpu_custom_call.1} parent=11 // pred_check_branch
          %633 = sbr.rel (%p631) target = $region80
        $region79: #{tpu_custom_call.1} parent=11 // pred_region
          _
        $region80: #{tpu_custom_call.1} parent=11 // pred_fallthru
          _
        // Predicated region
        $region81: #{tpu_custom_call.1} parent=11 // pred_check
          %p634 = pneg %p495
        $region82: #{tpu_custom_call.1} parent=11 // pred_check_branch
          %636 = sbr.rel (%p634) target = $region84
        $region83: #{tpu_custom_call.1} parent=11 // pred_region
          _
        $region84: #{tpu_custom_call.1} parent=11 // pred_fallthru
          _
      $region12: #{tpu_custom_call.1} parent=5 // pred_fallthru
        _
      %p637 = scmp.lt.s32.totalorder %s39, 2
      // Predicated region
      $region85: #{tpu_custom_call.1} parent=5 // pred_check
        %p638 = pneg %p637
      $region86: #{tpu_custom_call.1} parent=5 // pred_check_branch
        %640 = sbr.rel (%p638) target = $region88
      $region87: #{tpu_custom_call.1} parent=5 // pred_region
        // Predicated region
        $region89: #{tpu_custom_call.1} parent=87 // pred_check
          %p641 = pneg %p59
        $region90: #{tpu_custom_call.1} parent=87 // pred_check_branch
          %643 = sbr.rel (%p641) target = $region92
        $region91: #{tpu_custom_call.1} parent=87 // pred_region
          %s644 = sand.u32 %s49, 1
          %s645 = scalar_lea.sflag [#allocation3], %s644
          %s646 = sand.u32 %s49, 1
          %s647 = smul.addr %s646, 4
          %s648 = scalar_lea.vmem [#allocation2], %s647
          %650 = vsyncadd %s645, 0
          %s651 = smul.addr %s39, 4
          %s652 = scalar_lea.hbm %s0, %s651
          %s654 = sshll.u32 %s652, 4
          %s655 = int_to_ptr.hbm [resolvable:$true] %s654
          %s656 = sshll.u32 %s648, 4
          %s657 = int_to_ptr.vmem [resolvable:$true] %s656
          %659 = dma.hbm_to_vmem [thread:$0]  %s655, 64, %s657, %s645
        $region92: #{tpu_custom_call.1} parent=87 // pred_fallthru
          _
        // Predicated region
        $region93: #{tpu_custom_call.1} parent=87 // pred_check
          %p660 = pneg %p85
        $region94: #{tpu_custom_call.1} parent=87 // pred_check_branch
          %662 = sbr.rel (%p660) target = $region96
        $region95: #{tpu_custom_call.1} parent=87 // pred_region
          %s663 = sand.u32 %s39, 1
          %s664 = scalar_lea.sflag [#allocation6], %s663
          %s665 = sand.u32 %s75, 1
          %s666 = smul.addr %s665, 4
          %s667 = scalar_lea.vmem [#allocation5], %s666
          %669 = vsyncadd %s664, 0
          %s670 = smul.addr %s39, 4
          %s671 = scalar_lea.hbm %s1, %s670
          %s673 = sshll.u32 %s671, 4
          %s674 = int_to_ptr.hbm [resolvable:$true] %s673
          %s675 = sshll.u32 %s667, 4
          %s676 = int_to_ptr.vmem [resolvable:$true] %s675
          %678 = dma.hbm_to_vmem [thread:$0]  %s674, 64, %s676, %s664
        $region96: #{tpu_custom_call.1} parent=87 // pred_fallthru
          _
        // Predicated region
        $region97: #{tpu_custom_call.1} parent=87 // pred_check
          %p679 = pneg %p111
        $region98: #{tpu_custom_call.1} parent=87 // pred_check_branch
          %681 = sbr.rel (%p679) target = $region100
        $region99: #{tpu_custom_call.1} parent=87 // pred_region
          %s682 = sand.u32 %s39, 1
          %s683 = scalar_lea.sflag [#allocation6], %s682
          %s684 = sand.u32 %s101, 1
          %s685 = smul.addr %s684, 4
          %s686 = scalar_lea.vmem [#allocation7], %s685
          %688 = vsyncadd %s683, 0
          %s689 = smul.addr %s39, 4
          %s690 = scalar_lea.hbm %s2, %s689
          %s692 = sshll.u32 %s690, 4
          %s693 = int_to_ptr.hbm [resolvable:$true] %s692
          %s694 = sshll.u32 %s686, 4
          %s695 = int_to_ptr.vmem [resolvable:$true] %s694
          %697 = dma.hbm_to_vmem [thread:$0]  %s693, 64, %s695, %s683
        $region100: #{tpu_custom_call.1} parent=87 // pred_fallthru
          _
      $region88: #{tpu_custom_call.1} parent=5 // pred_fallthru
        _
      %p698 = scmp.le.s32.totalorder 1, %s39
      %p699 = scmp.lt.s32.totalorder %s39, 3
      %p700 = pnand %p698, %p699
      %p701 = pneg %p700
      // Predicated region
      $region101: #{tpu_custom_call.1} parent=5 // pred_check
        _
      $region102: #{tpu_custom_call.1} parent=5 // pred_check_branch
        %703 = sbr.rel (%p700) target = $region104
      $region103: #{tpu_custom_call.1} parent=5 // pred_region
        %s704 = ssub.s32 %s39, 1
        %s705 = sand.u32 %s52, 1
        %s706 = scalar_lea.sflag [#allocation3], %s705
        %s707 = sand.u32 %s52, 1
        %s708 = smul.addr %s707, 4
        %s709 = scalar_lea.vmem [#allocation2], %s708
        // Predicated region
        $region105: #{tpu_custom_call.1} parent=103 // pred_check
          %p710 = pneg %p65
        $region106: #{tpu_custom_call.1} parent=103 // pred_check_branch
          %712 = sbr.rel (%p710) target = $region108
        $region107: #{tpu_custom_call.1} parent=103 // pred_region
          %714 = dma.done %s706, 64
        $region108: #{tpu_custom_call.1} parent=103 // pred_fallthru
          _
        %s715 = sand.u32 %s44, 1
        %s716 = scalar_lea.sflag [#allocation6], %s715
        %s717 = sand.u32 %s78, 1
        %s718 = smul.addr %s717, 4
        %s719 = scalar_lea.vmem [#allocation5], %s718
        // Predicated region
        $region109: #{tpu_custom_call.1} parent=103 // pred_check
          %p720 = pneg %p91
        $region110: #{tpu_custom_call.1} parent=103 // pred_check_branch
          %722 = sbr.rel (%p720) target = $region112
        $region111: #{tpu_custom_call.1} parent=103 // pred_region
          %724 = dma.done %s716, 64
        $region112: #{tpu_custom_call.1} parent=103 // pred_fallthru
          _
        %s725 = sand.u32 %s44, 1
        %s726 = scalar_lea.sflag [#allocation6], %s725
        %s727 = sand.u32 %s104, 1
        %s728 = smul.addr %s727, 4
        %s729 = scalar_lea.vmem [#allocation7], %s728
        // Predicated region
        $region113: #{tpu_custom_call.1} parent=103 // pred_check
          %p730 = pneg %p117
        $region114: #{tpu_custom_call.1} parent=103 // pred_check_branch
          %732 = sbr.rel (%p730) target = $region116
        $region115: #{tpu_custom_call.1} parent=103 // pred_region
          %734 = dma.done %s726, 64
        $region116: #{tpu_custom_call.1} parent=103 // pred_fallthru
          _
        // Predicated region
        $region117: #{tpu_custom_call.1} parent=103 // pred_check
          %p735 = pneg %p138
        $region118: #{tpu_custom_call.1} parent=103 // pred_check_branch
          %737 = sbr.rel (%p735) target = $region120
        $region119: #{tpu_custom_call.1} parent=103 // pred_region
          %739 = dma.done [#allocation9], 128
        $region120: #{tpu_custom_call.1} parent=103 // pred_fallthru
          _
        // Predicated region
        $region121: #{tpu_custom_call.1} parent=103 // pred_check
          %p740 = pneg %p159
        $region122: #{tpu_custom_call.1} parent=103 // pred_check_branch
          %742 = sbr.rel (%p740) target = $region124
        $region123: #{tpu_custom_call.1} parent=103 // pred_region
          %744 = dma.done [#allocation9], 128
        $region124: #{tpu_custom_call.1} parent=103 // pred_fallthru
          _
        // Predicated region
        $region125: #{tpu_custom_call.1} parent=103 // pred_check
          %p745 = pneg %p180
        $region126: #{tpu_custom_call.1} parent=103 // pred_check_branch
          %747 = sbr.rel (%p745) target = $region128
        $region127: #{tpu_custom_call.1} parent=103 // pred_region
          %749 = dma.done [#allocation12], 128
        $region128: #{tpu_custom_call.1} parent=103 // pred_fallthru
          _
        // Predicated region
        $region129: #{tpu_custom_call.1} parent=103 // pred_check
          %p750 = pneg %p348
        $region130: #{tpu_custom_call.1} parent=103 // pred_check_branch
          %752 = sbr.rel (%p750) target = $region132
        $region131: #{tpu_custom_call.1} parent=103 // pred_region
          %754 = dma.done [#allocation12], 256
        $region132: #{tpu_custom_call.1} parent=103 // pred_fallthru
          _
        // Predicated region
        $region133: #{tpu_custom_call.1} parent=103 // pred_check
          %p755 = pneg %p369
        $region134: #{tpu_custom_call.1} parent=103 // pred_check_branch
          %757 = sbr.rel (%p755) target = $region136
        $region135: #{tpu_custom_call.1} parent=103 // pred_region
          %759 = dma.done [#allocation15], 16
        $region136: #{tpu_custom_call.1} parent=103 // pred_fallthru
          _
        %s760 = sand.u32 %s52, 1
        %s761 = scalar_lea.sflag [#allocation3], %s760
        %s762 = sand.u32 %s52, 1
        %s763 = smul.addr %s762, 4
        %s764 = scalar_lea.vmem [#allocation2], %s763
        %p765 = pneg %p65
        %p766 = pneg %p62
        %s767 = sand.u32 %s44, 1
        %s768 = scalar_lea.sflag [#allocation6], %s767
        %s769 = sand.u32 %s78, 1
        %s770 = smul.addr %s769, 4
        %s771 = scalar_lea.vmem [#allocation5], %s770
        %p772 = pneg %p91
        %p773 = pneg %p88
        %s774 = sand.u32 %s44, 1
        %s775 = scalar_lea.sflag [#allocation6], %s774
        %s776 = sand.u32 %s104, 1
        %s777 = smul.addr %s776, 4
        %s778 = scalar_lea.vmem [#allocation7], %s777
        %p779 = pneg %p117
        %p780 = pneg %p114
        %p781 = pneg %p138
        %p782 = pneg %p135
        %p783 = pneg %p159
        %p784 = pneg %p156
        %p785 = pneg %p180
        %p786 = pneg %p177
        %p787 = pneg %p201
        %p788 = pneg %p198
        %p789 = pneg %p222
        %p790 = pneg %p219
        %p791 = pneg %p243
        %p792 = pneg %p240
        %p793 = pneg %p264
        %p794 = pneg %p261
        %p795 = pneg %p285
        %p796 = pneg %p282
        %p797 = pneg %p306
        %p798 = pneg %p303
        %p799 = pneg %p327
        %p800 = pneg %p324
        %p801 = pneg %p348
        %p802 = pneg %p345
        %p803 = pneg %p369
        %p804 = pneg %p366
        %p805 = pneg %p390
        %p806 = pneg %p387
        %p807 = pneg %p411
        %p808 = pneg %p408
        %p809 = pneg %p432
        %p810 = pneg %p429
        %p811 = pneg %p453
        %p812 = pneg %p450
        %p813 = pneg %p474
        %p814 = pneg %p471
        %p815 = pneg %p495
        %p816 = pneg %p492
        %p817 = pneg %p521
        %p818 = pneg %p518
        %s819 = sand.u32 %s508, 1
        %s820 = scalar_lea.sflag [#allocation4], %s819
        %s821 = sand.u32 %s508, 1
        %s822 = smul.addr %s821, 8
        %s823 = scalar_lea.vmem [#allocation16], %s822
        %v825 = vld [vmem:[%s709] sm:$0xf]
        %v826 = vld [vmem:[%s719] sm:$0xf]
        %v827 = vld [vmem:[%s729] sm:$0xf]
        %v828 = vunpack.c.l.bf16 %v825
        %v830 = vunpack.c.l.b16 %v826
        %v831 = vpack.c.b16 %v830, %v830
        %vm832 = vcmask 1043456
        %v835 = vsel %vm832, %v825, %v831
        %v836 = vld [vmem:[%s6] sm:$0xf]
        %v837 = vld [vmem:[%s6 + $0x4] sm:$0xf]
        %v838 = vld [vmem:[%s6 + $0x8] sm:$0xf]
        %v839 = vld [vmem:[%s6 + $0xc] sm:$0xf]
        %v840 = vld [vmem:[%s7] sm:$0x1]
        %v842 = vperm.slane %v840, 0
        %v848 = vunpack.c.l.b16 %v836
        %v849 = vunpack.c.l.b16 %v837
        %v850 = vunpack.c.l.b16 %v838
        %v851 = vunpack.c.l.b16 %v839
        %v852 = vpack.c.b16 %v849, %v848
        %v853 = vpack.c.b16 %v851, %v850
        %vm856 = vcmask 261120
        %v857 = vsel %vm856, %v835, 0
        %859 = vmatpush.bf16.msra.mxu0 0
        %860 = vmatpush.bf16.msra.mxu0 0
        %861 = vmatpush.bf16.msra.mxu0 0
        %862 = vmatpush.bf16.msra.mxu0 0
        %863 = vmatpush.bf16.msra.mxu0 0
        %864 = vmatpush.bf16.msra.mxu0 0
        %865 = vmatpush.bf16.msra.mxu0 %v853
        %866 = vmatpush.bf16.msra.mxu0 %v852
        %867 = vmatmul.bf16.gmra.mxu0 %v857
        %v868 = vpop.f32.mrf.mxu0
        %v869 = vadd.f32 %v842, %v868
        %v870 = vpop.f32.mrf.mxu0
        %v871 = vadd.f32 %v842, %v870
        %872 = vdwg.mxu0
        %v873 = vld [vmem:[%s8] sm:$0xf]
        %v874 = vld [vmem:[%s8 + $0x4] sm:$0xf]
        %v875 = vld [vmem:[%s8 + $0x8] sm:$0xf]
        %v876 = vld [vmem:[%s8 + $0xc] sm:$0xf]
        %v877 = vld [vmem:[%s9] sm:$0x1]
        %v879 = vperm.slane %v877, 0
        %v885 = vunpack.c.l.b16 %v873
        %v886 = vunpack.c.l.b16 %v874
        %v887 = vunpack.c.l.b16 %v875
        %v888 = vunpack.c.l.b16 %v876
        %v889 = vpack.c.b16 %v886, %v885
        %v890 = vpack.c.b16 %v888, %v887
        %v894 = vsel %vm856, %v827, 0
        %896 = vmatpush.bf16.msra.mxu0 0
        %897 = vmatpush.bf16.msra.mxu0 0
        %898 = vmatpush.bf16.msra.mxu0 0
        %899 = vmatpush.bf16.msra.mxu0 0
        %900 = vmatpush.bf16.msra.mxu0 0
        %901 = vmatpush.bf16.msra.mxu0 0
        %902 = vmatpush.bf16.msra.mxu0 %v890
        %903 = vmatpush.bf16.msra.mxu0 %v889
        %904 = vmatmul.bf16.gmra.mxu0 %v894
        %v905 = vpop.f32.mrf.mxu0
        %v906 = vadd.f32 %v879, %v905
        %v907 = vpop.f32.mrf.mxu0
        %908 = vdwg.mxu0
        %910 = vrot.lane.b32.xlu0 %v869, 120
        %v911 = vpop.permute.xlu0 %910
        %913 = vrot.lane.b32.xlu0 %v869, 112
        %v914 = vpop.permute.xlu0 %913
        %916 = vrot.lane.b32.xlu0 %v869, 104
        %v917 = vpop.permute.xlu0 %916
        %v919 = vpack.c.bf16 %v869, %v869
        %v920 = vpack.c.bf16 %v911, %v911
        %v921 = vpack.c.bf16 %v914, %v914
        %v922 = vpack.c.bf16 %v917, %v917
        %924 = vrot.lane.b32.xlu0 %v871, 120
        %v925 = vpop.permute.xlu0 %924
        %927 = vrot.lane.b32.xlu0 %v871, 112
        %v928 = vpop.permute.xlu0 %927
        %930 = vrot.lane.b32.xlu0 %v871, 104
        %v931 = vpop.permute.xlu0 %930
        %v933 = vpack.c.bf16 %v871, %v871
        %v934 = vpack.c.bf16 %v925, %v925
        %v935 = vpack.c.bf16 %v928, %v928
        %v936 = vpack.c.bf16 %v931, %v931
        %938 = vrot.lane.b32.xlu0 %v906, 120
        %v939 = vpop.permute.xlu0 %938
        %941 = vrot.lane.b32.xlu0 %v906, 112
        %v942 = vpop.permute.xlu0 %941
        %944 = vrot.lane.b32.xlu0 %v906, 104
        %v945 = vpop.permute.xlu0 %944
        %v947 = vpack.c.bf16 %v906, %v906
        %v948 = vpack.c.bf16 %v939, %v939
        %v949 = vpack.c.bf16 %v942, %v942
        %v950 = vpack.c.bf16 %v945, %v945
        %v951 = vld [vmem:[#allocation8] sm:$0xff]
        %vm952 = vcmp.gt.f32.partialorder %v951, 0.5
        %v953 = vld [vmem:[#allocation10] sm:$0xff]
        %vm954 = vcmask 64512
        %v956 = vsel %vm954, %v919, 0
        %v959 = vsel %vm954, %v933, 0
        %961 = vmatpush.bf16.xpose.msra.mxu0 0
        %962 = vmatpush.bf16.xpose.msra.mxu0 0
        %963 = vmatpush.bf16.xpose.msra.mxu0 0
        %964 = vmatpush.bf16.xpose.msra.mxu0 0
        %965 = vmatpush.bf16.xpose.msra.mxu0 0
        %966 = vmatpush.bf16.xpose.msra.mxu0 0
        %967 = vmatpush.bf16.xpose.msra.mxu0 0
        %968 = vmatpush.bf16.xpose.msra.mxu0 %v959
        %969 = vmatmul.bf16.gmra.mxu0 %v956
        %v970 = vpop.f32.mrf.mxu0
        %v971 = vadd.f32 0.0, %v970
        %v972 = vpop.f32.mrf.mxu0
        %973 = vdwg.mxu0
        %v975 = vsel %vm954, %v920, 0
        %v978 = vsel %vm954, %v934, 0
        %980 = vmatpush.bf16.xpose.msra.mxu0 0
        %981 = vmatpush.bf16.xpose.msra.mxu0 0
        %982 = vmatpush.bf16.xpose.msra.mxu0 0
        %983 = vmatpush.bf16.xpose.msra.mxu0 0
        %984 = vmatpush.bf16.xpose.msra.mxu0 0
        %985 = vmatpush.bf16.xpose.msra.mxu0 0
        %986 = vmatpush.bf16.xpose.msra.mxu0 0
        %987 = vmatpush.bf16.xpose.msra.mxu0 %v978
        %988 = vmatmul.bf16.gmra.mxu0 %v975
        %v989 = vpop.f32.mrf.mxu0
        %v990 = vadd.f32 0.0, %v989
        %v991 = vpop.f32.mrf.mxu0
        %992 = vdwg.mxu0
        %v994 = vsel %vm954, %v921, 0
        %v997 = vsel %vm954, %v935, 0
        %999 = vmatpush.bf16.xpose.msra.mxu0 0
        %1000 = vmatpush.bf16.xpose.msra.mxu0 0
        %1001 = vmatpush.bf16.xpose.msra.mxu0 0
        %1002 = vmatpush.bf16.xpose.msra.mxu0 0
        %1003 = vmatpush.bf16.xpose.msra.mxu0 0
        %1004 = vmatpush.bf16.xpose.msra.mxu0 0
        %1005 = vmatpush.bf16.xpose.msra.mxu0 0
        %1006 = vmatpush.bf16.xpose.msra.mxu0 %v997
        %1007 = vmatmul.bf16.gmra.mxu0 %v994
        %v1008 = vpop.f32.mrf.mxu0
        %v1009 = vadd.f32 0.0, %v1008
        %v1010 = vpop.f32.mrf.mxu0
        %1011 = vdwg.mxu0
        %v1013 = vsel %vm954, %v922, 0
        %v1016 = vsel %vm954, %v936, 0
        %1018 = vmatpush.bf16.xpose.msra.mxu0 0
        %1019 = vmatpush.bf16.xpose.msra.mxu0 0
        %1020 = vmatpush.bf16.xpose.msra.mxu0 0
        %1021 = vmatpush.bf16.xpose.msra.mxu0 0
        %1022 = vmatpush.bf16.xpose.msra.mxu0 0
        %1023 = vmatpush.bf16.xpose.msra.mxu0 0
        %1024 = vmatpush.bf16.xpose.msra.mxu0 0
        %1025 = vmatpush.bf16.xpose.msra.mxu0 %v1016
        %1026 = vmatmul.bf16.gmra.mxu0 %v1013
        %v1027 = vpop.f32.mrf.mxu0
        %v1028 = vadd.f32 0.0, %v1027
        %v1029 = vpop.f32.mrf.mxu0
        %1030 = vdwg.mxu0
        %v1031 = vmul.f32 %v971, 0.35355338
        %v1032 = vmul.f32 %v990, 0.35355338
        %v1033 = vmul.f32 %v1009, 0.35355338
        %v1034 = vmul.f32 %v1028, 0.35355338
        %v1035 = vsel %vm952, 1, 0
        %vm1036 = vcmp.eq.s32.totalorder %v1035, 1
        %v1037 = vsel %vm1036, %v1031, -1e+32
        %v1038 = vsel %vm1036, %v1032, -1e+32
        %v1039 = vsel %vm1036, %v1033, -1e+32
        %v1040 = vsel %vm1036, %v1034, -1e+32
        %v1041 = vsel %vm954, %v1037, -inf
        %1042 = vmax.xlane.f32.xlu0 %v1041
        %v1043 = vpop.xlane.xlu0 %1042
        %v1044 = vsel %vm954, %v1038, -inf
        %1045 = vmax.xlane.f32.xlu0 %v1044
        %v1046 = vpop.xlane.xlu0 %1045
        %v1047 = vsel %vm954, %v1039, -inf
        %1048 = vmax.xlane.f32.xlu0 %v1047
        %v1049 = vpop.xlane.xlu0 %1048
        %v1050 = vsel %vm954, %v1040, -inf
        %1051 = vmax.xlane.f32.xlu0 %v1050
        %v1052 = vpop.xlane.xlu0 %1051
        %v1053 = vsub.f32 %v1037, %v1043
        %v1054 = vsub.f32 %v1038, %v1046
        %v1055 = vsub.f32 %v1039, %v1049
        %v1056 = vsub.f32 %v1040, %v1052
        %v1057 = vmul.f32 %v1053, 1.442695
        %v1058 = vpow.pop %v1057
        %v1059 = vmul.f32 %v1054, 1.442695
        %v1060 = vpow.pop %v1059
        %v1061 = vmul.f32 %v1055, 1.442695
        %v1062 = vpow.pop %v1061
        %v1063 = vmul.f32 %v1056, 1.442695
        %v1064 = vpow.pop %v1063
        %v1065 = vsel %vm954, %v1058, 0.0
        %1066 = vadd.xlane.f32.xlu0 %v1065
        %v1067 = vpop.xlane.xlu0 %1066
        %v1068 = vsel %vm954, %v1060, 0.0
        %1069 = vadd.xlane.f32.xlu0 %v1068
        %v1070 = vpop.xlane.xlu0 %1069
        %v1071 = vsel %vm954, %v1062, 0.0
        %1072 = vadd.xlane.f32.xlu0 %v1071
        %v1073 = vpop.xlane.xlu0 %1072
        %v1074 = vsel %vm954, %v1064, 0.0
        %1075 = vadd.xlane.f32.xlu0 %v1074
        %v1076 = vpop.xlane.xlu0 %1075
        %v1077 = vrcp.pop %v1067
        %v1078 = vmul.f32 %v1067, %v1077
        %v1079 = vsub.f32 1.0, %v1078
        %v1080 = vmul.f32 %v1077, %v1079
        %v1081 = vadd.f32 %v1077, %v1080
        %vm1082 = vweird.f32 %v1067
        %vm1083 = vweird.f32 %v1077
        %vm1084 = vmor %vm1082, %vm1083
        %v1085 = vsel %vm1084, %v1077, %v1081
        %v1086 = vand.u32 2147483647, %v1067
        %vm1087 = vcmp.eq.f32.partialorder %v1086, 8.507059e+37
        %v1088 = vand.u32 %v1067, 2147483648
        %v1089 = vor.u32 1.1754944e-38, %v1088
        %v1090 = vsel %vm1087, %v1089, %v1085
        %v1091 = vmul.f32 %v1058, %v1090
        %v1092 = vrcp.pop %v1070
        %v1093 = vmul.f32 %v1070, %v1092
        %v1094 = vsub.f32 1.0, %v1093
        %v1095 = vmul.f32 %v1092, %v1094
        %v1096 = vadd.f32 %v1092, %v1095
        %vm1097 = vweird.f32 %v1070
        %vm1098 = vweird.f32 %v1092
        %vm1099 = vmor %vm1097, %vm1098
        %v1100 = vsel %vm1099, %v1092, %v1096
        %v1101 = vand.u32 2147483647, %v1070
        %vm1102 = vcmp.eq.f32.partialorder %v1101, 8.507059e+37
        %v1103 = vand.u32 %v1070, 2147483648
        %v1104 = vor.u32 1.1754944e-38, %v1103
        %v1105 = vsel %vm1102, %v1104, %v1100
        %v1106 = vmul.f32 %v1060, %v1105
        %v1107 = vrcp.pop %v1073
        %v1108 = vmul.f32 %v1073, %v1107
        %v1109 = vsub.f32 1.0, %v1108
        %v1110 = vmul.f32 %v1107, %v1109
        %v1111 = vadd.f32 %v1107, %v1110
        %vm1112 = vweird.f32 %v1073
        %vm1113 = vweird.f32 %v1107
        %vm1114 = vmor %vm1112, %vm1113
        %v1115 = vsel %vm1114, %v1107, %v1111
        %v1116 = vand.u32 2147483647, %v1073
        %vm1117 = vcmp.eq.f32.partialorder %v1116, 8.507059e+37
        %v1118 = vand.u32 %v1073, 2147483648
        %v1119 = vor.u32 1.1754944e-38, %v1118
        %v1120 = vsel %vm1117, %v1119, %v1115
        %v1121 = vmul.f32 %v1062, %v1120
        %v1122 = vrcp.pop %v1076
        %v1123 = vmul.f32 %v1076, %v1122
        %v1124 = vsub.f32 1.0, %v1123
        %v1125 = vmul.f32 %v1122, %v1124
        %v1126 = vadd.f32 %v1122, %v1125
        %vm1127 = vweird.f32 %v1076
        %vm1128 = vweird.f32 %v1122
        %vm1129 = vmor %vm1127, %vm1128
        %v1130 = vsel %vm1129, %v1122, %v1126
        %v1131 = vand.u32 2147483647, %v1076
        %vm1132 = vcmp.eq.f32.partialorder %v1131, 8.507059e+37
        %v1133 = vand.u32 %v1076, 2147483648
        %v1134 = vor.u32 1.1754944e-38, %v1133
        %v1135 = vsel %vm1132, %v1134, %v1130
        %v1136 = vmul.f32 %v1064, %v1135
        %v1137 = vld [vmem:[#allocation11] sm:$0xff]
        %v1139 = vsel %vm954, %v1091, 0
        %v1142 = vsel %vm954, %v1106, 0
        %v1145 = vsel %vm954, %v1121, 0
        %v1148 = vsel %vm954, %v1136, 0
        %1150 = vmatpush.msra.mxu0 0.0
        %1151 = vmatpush.msra.mxu0 0.0
        %1152 = vmatpush.msra.mxu0 0.0
        %1153 = vmatpush.msra.mxu0 0.0
        %1154 = vmatpush.msra.mxu0 0.0
        %1155 = vmatpush.msra.mxu0 0.0
        %1156 = vmatpush.msra.mxu0 0.0
        %1157 = vmatpush.msra.mxu0 0.0
        %1158 = vmatpush.msra.mxu0 0.0
        %1159 = vmatpush.msra.mxu0 0.0
        %1160 = vmatpush.msra.mxu0 0.0
        %1161 = vmatpush.msra.mxu0 0.0
        %1162 = vmatpush.msra.mxu0 0.0
        %1163 = vmatpush.msra.mxu0 0.0
        %1164 = vmatpush.msra.mxu0 0.0
        %1165 = vmatpush.msra.mxu0 %v1137
        %1166 = vmatmul.f32.gmra.mxu0 %v1139
        %v1167 = vpop.f32.mrf.mxu0
        %v1168 = vadd.f32 0.0, %v1167
        %1169 = vmatmul.f32.gmra.mxu0 %v1142
        %v1170 = vpop.f32.mrf.mxu0
        %v1171 = vadd.f32 0.0, %v1170
        %1172 = vmatmul.f32.gmra.mxu0 %v1145
        %v1173 = vpop.f32.mrf.mxu0
        %v1174 = vadd.f32 0.0, %v1173
        %1175 = vmatmul.f32.gmra.mxu0 %v1148
        %v1176 = vpop.f32.mrf.mxu0
        %v1177 = vadd.f32 0.0, %v1176
        %1178 = vdwg.mxu0
        %v1179 = vmul.f32 %v1168, %v953
        %v1180 = vmul.f32 %v1171, %v953
        %v1181 = vmul.f32 %v1174, %v953
        %v1182 = vmul.f32 %v1177, %v953
        %v1183 = vmax.f32 %v1179, 0.0
        %v1184 = vmax.f32 %v1180, 0.0
        %v1185 = vmax.f32 %v1181, 0.0
        %v1186 = vmax.f32 %v1182, 0.0
        %v1187 = vrsqrt.pop %v1183
        %v1188 = vmul.f32 %v1187, %v1183
        %v1189 = vmul.f32 %v1188, %v1187
        %v1190 = vmul.f32 0.5, %v1189
        %v1191 = vsub.f32 1.5, %v1190
        %v1192 = vmul.f32 %v1187, %v1191
        %v1193 = vmul.f32 %v1183, %v1192
        %vm1194 = vcmp.eq.f32.partialorder %v1183, inf
        %v1195 = vsel %vm1194, %v1183, %v1193
        %vm1196 = vcmp.eq.f32.partialorder %v1183, 0.0
        %v1197 = vand.u32 %v1183, 2147483648
        %v1198 = vsel %vm1196, %v1197, %v1195
        %v1199 = vrsqrt.pop %v1184
        %v1200 = vmul.f32 %v1199, %v1184
        %v1201 = vmul.f32 %v1200, %v1199
        %v1202 = vmul.f32 0.5, %v1201
        %v1203 = vsub.f32 1.5, %v1202
        %v1204 = vmul.f32 %v1199, %v1203
        %v1205 = vmul.f32 %v1184, %v1204
        %vm1206 = vcmp.eq.f32.partialorder %v1184, inf
        %v1207 = vsel %vm1206, %v1184, %v1205
        %vm1208 = vcmp.eq.f32.partialorder %v1184, 0.0
        %v1209 = vand.u32 %v1184, 2147483648
        %v1210 = vsel %vm1208, %v1209, %v1207
        %v1211 = vrsqrt.pop %v1185
        %v1212 = vmul.f32 %v1211, %v1185
        %v1213 = vmul.f32 %v1212, %v1211
        %v1214 = vmul.f32 0.5, %v1213
        %v1215 = vsub.f32 1.5, %v1214
        %v1216 = vmul.f32 %v1211, %v1215
        %v1217 = vmul.f32 %v1185, %v1216
        %vm1218 = vcmp.eq.f32.partialorder %v1185, inf
        %v1219 = vsel %vm1218, %v1185, %v1217
        %vm1220 = vcmp.eq.f32.partialorder %v1185, 0.0
        %v1221 = vand.u32 %v1185, 2147483648
        %v1222 = vsel %vm1220, %v1221, %v1219
        %v1223 = vrsqrt.pop %v1186
        %v1224 = vmul.f32 %v1223, %v1186
        %v1225 = vmul.f32 %v1224, %v1223
        %v1226 = vmul.f32 0.5, %v1225
        %v1227 = vsub.f32 1.5, %v1226
        %v1228 = vmul.f32 %v1223, %v1227
        %v1229 = vmul.f32 %v1186, %v1228
        %vm1230 = vcmp.eq.f32.partialorder %v1186, inf
        %v1231 = vsel %vm1230, %v1186, %v1229
        %vm1232 = vcmp.eq.f32.partialorder %v1186, 0.0
        %v1233 = vand.u32 %v1186, 2147483648
        %v1234 = vsel %vm1232, %v1233, %v1231
        %v1235 = vld [vmem:[%s12] sm:$0x1]
        %v1236 = vld [vmem:[%s12 + $0x1] sm:$0x1]
        %v1237 = vld [vmem:[%s12 + $0x2] sm:$0x1]
        %v1238 = vld [vmem:[%s12 + $0x3] sm:$0x1]
        %v1239 = vmax.f32 %v1235, 0.0
        %v1240 = vmax.f32 %v1236, 0.0
        %v1241 = vmax.f32 %v1237, 0.0
        %v1242 = vmax.f32 %v1238, 0.0
        %v1243 = vand.u32 2147483647, %v1235
        %v1244 = vand.u32 2147483647, %v1236
        %v1245 = vand.u32 2147483647, %v1237
        %v1246 = vand.u32 2147483647, %v1238
        %v1247 = vsub.f32 0.0, %v1243
        %v1248 = vsub.f32 0.0, %v1244
        %v1249 = vsub.f32 0.0, %v1245
        %v1250 = vsub.f32 0.0, %v1246
        %v1251 = vmul.f32 %v1247, 1.442695
        %v1252 = vpow.pop %v1251
        %v1253 = vmul.f32 %v1248, 1.442695
        %v1254 = vpow.pop %v1253
        %v1255 = vmul.f32 %v1249, 1.442695
        %v1256 = vpow.pop %v1255
        %v1257 = vmul.f32 %v1250, 1.442695
        %v1258 = vpow.pop %v1257
        %v1259 = vadd.f32 %v1252, 1.0
        %v1260 = vlog2.pop %v1259
        %v1261 = vmul.f32 %v1260, 0.6931472
        %v1262 = vmul.f32 -0.5, %v1252
        %v1263 = vadd.f32 %v1262, 1.0
        %v1264 = vmul.f32 %v1263, %v1252
        %v1265 = vand.u32 2147483647, %v1252
        %vm1266 = vcmp.lt.f32.partialorder %v1265, 0.0004427343
        %v1267 = vsel %vm1266, %v1264, %v1261
        %v1268 = vadd.f32 %v1254, 1.0
        %v1269 = vlog2.pop %v1268
        %v1270 = vmul.f32 %v1269, 0.6931472
        %v1271 = vmul.f32 -0.5, %v1254
        %v1272 = vadd.f32 %v1271, 1.0
        %v1273 = vmul.f32 %v1272, %v1254
        %v1274 = vand.u32 2147483647, %v1254
        %vm1275 = vcmp.lt.f32.partialorder %v1274, 0.0004427343
        %v1276 = vsel %vm1275, %v1273, %v1270
        %v1277 = vadd.f32 %v1256, 1.0
        %v1278 = vlog2.pop %v1277
        %v1279 = vmul.f32 %v1278, 0.6931472
        %v1280 = vmul.f32 -0.5, %v1256
        %v1281 = vadd.f32 %v1280, 1.0
        %v1282 = vmul.f32 %v1281, %v1256
        %v1283 = vand.u32 2147483647, %v1256
        %vm1284 = vcmp.lt.f32.partialorder %v1283, 0.0004427343
        %v1285 = vsel %vm1284, %v1282, %v1279
        %v1286 = vadd.f32 %v1258, 1.0
        %v1287 = vlog2.pop %v1286
        %v1288 = vmul.f32 %v1287, 0.6931472
        %v1289 = vmul.f32 -0.5, %v1258
        %v1290 = vadd.f32 %v1289, 1.0
        %v1291 = vmul.f32 %v1290, %v1258
        %v1292 = vand.u32 2147483647, %v1258
        %vm1293 = vcmp.lt.f32.partialorder %v1292, 0.0004427343
        %v1294 = vsel %vm1293, %v1291, %v1288
        %v1295 = vadd.f32 %v1239, %v1267
        %v1296 = vadd.f32 %v1240, %v1276
        %v1297 = vadd.f32 %v1241, %v1285
        %v1298 = vadd.f32 %v1242, %v1294
        %v1299 = vsub.f32 0.0, %v1295
        %v1300 = vsub.f32 0.0, %v1296
        %v1301 = vsub.f32 0.0, %v1297
        %v1302 = vsub.f32 0.0, %v1298
        %v1307 = vperm.slane %v1299, 0
        %v1308 = vperm.slane %v1300, 0
        %v1309 = vperm.slane %v1301, 0
        %v1310 = vperm.slane %v1302, 0
        %1311 = vset.pattern.permute.xlu0 0
        %1312 = vperm.xlu0 %1311, %v1307
        %v1313 = vpop.permute.xlu0 %1312
        %1315 = vset.pattern.permute.xlu0 0
        %1316 = vperm.xlu0 %1315, %v1308
        %v1317 = vpop.permute.xlu0 %1316
        %1319 = vset.pattern.permute.xlu0 0
        %1320 = vperm.xlu0 %1319, %v1309
        %v1321 = vpop.permute.xlu0 %1320
        %1323 = vset.pattern.permute.xlu0 0
        %1324 = vperm.xlu0 %1323, %v1310
        %v1325 = vpop.permute.xlu0 %1324
        %v1327 = vmul.f32 %v1198, %v1313
        %v1328 = vmul.f32 %v1210, %v1317
        %v1329 = vmul.f32 %v1222, %v1321
        %v1330 = vmul.f32 %v1234, %v1325
        %v1331 = vmul.f32 %v1327, 1.442695
        %v1332 = vpow.pop %v1331
        %v1333 = vmul.f32 %v1328, 1.442695
        %v1334 = vpow.pop %v1333
        %v1335 = vmul.f32 %v1329, 1.442695
        %v1336 = vpow.pop %v1335
        %v1337 = vmul.f32 %v1330, 1.442695
        %v1338 = vpow.pop %v1337
        %v1339 = vmax.f32 %v1332, 1e-05
        %v1340 = vmax.f32 %v1334, 1e-05
        %v1341 = vmax.f32 %v1336, 1e-05
        %v1342 = vmax.f32 %v1338, 1e-05
        %v1343 = vmin.f32 %v1339, 100000.0
        %v1344 = vmin.f32 %v1340, 100000.0
        %v1345 = vmin.f32 %v1341, 100000.0
        %v1346 = vmin.f32 %v1342, 100000.0
        %v1347 = vmul.f32 %v1031, %v1343
        %v1348 = vmul.f32 %v1032, %v1344
        %v1349 = vmul.f32 %v1033, %v1345
        %v1350 = vmul.f32 %v1034, %v1346
        %v1351 = vsel %vm1036, %v1347, -1e+32
        %v1352 = vsel %vm1036, %v1348, -1e+32
        %v1353 = vsel %vm1036, %v1349, -1e+32
        %v1354 = vsel %vm1036, %v1350, -1e+32
        %v1355 = vsel %vm954, %v1351, -inf
        %1356 = vmax.xlane.f32.xlu0 %v1355
        %v1357 = vpop.xlane.xlu0 %1356
        %v1358 = vsel %vm954, %v1352, -inf
        %1359 = vmax.xlane.f32.xlu0 %v1358
        %v1360 = vpop.xlane.xlu0 %1359
        %v1361 = vsel %vm954, %v1353, -inf
        %1362 = vmax.xlane.f32.xlu0 %v1361
        %v1363 = vpop.xlane.xlu0 %1362
        %v1364 = vsel %vm954, %v1354, -inf
        %1365 = vmax.xlane.f32.xlu0 %v1364
        %v1366 = vpop.xlane.xlu0 %1365
        %v1367 = vsub.f32 %v1351, %v1357
        %v1368 = vsub.f32 %v1352, %v1360
        %v1369 = vsub.f32 %v1353, %v1363
        %v1370 = vsub.f32 %v1354, %v1366
        %v1371 = vmul.f32 %v1367, 1.442695
        %v1372 = vpow.pop %v1371
        %v1373 = vmul.f32 %v1368, 1.442695
        %v1374 = vpow.pop %v1373
        %v1375 = vmul.f32 %v1369, 1.442695
        %v1376 = vpow.pop %v1375
        %v1377 = vmul.f32 %v1370, 1.442695
        %v1378 = vpow.pop %v1377
        %v1379 = vsel %vm954, %v1372, 0.0
        %1380 = vadd.xlane.f32.xlu0 %v1379
        %v1381 = vpop.xlane.xlu0 %1380
        %v1382 = vsel %vm954, %v1374, 0.0
        %1383 = vadd.xlane.f32.xlu0 %v1382
        %v1384 = vpop.xlane.xlu0 %1383
        %v1385 = vsel %vm954, %v1376, 0.0
        %1386 = vadd.xlane.f32.xlu0 %v1385
        %v1387 = vpop.xlane.xlu0 %1386
        %v1388 = vsel %vm954, %v1378, 0.0
        %1389 = vadd.xlane.f32.xlu0 %v1388
        %v1390 = vpop.xlane.xlu0 %1389
        %v1391 = vrcp.pop %v1381
        %v1392 = vrcp.pop %v1384
        %v1393 = vrcp.pop %v1387
        %v1394 = vrcp.pop %v1390
        %v1395 = vmul.f32 %v1372, %v1391
        %v1396 = vmul.f32 %v1374, %v1392
        %v1397 = vmul.f32 %v1376, %v1393
        %v1398 = vmul.f32 %v1378, %v1394
        %v1399 = vpack.c.bf16 %v1395, %v1395
        %v1400 = vpack.c.bf16 %v1396, %v1396
        %v1401 = vpack.c.bf16 %v1397, %v1397
        %v1402 = vpack.c.bf16 %v1398, %v1398
        %v1404 = vsel %vm954, %v1399, 0
        %v1407 = vsel %vm832, %v947, 0
        %1409 = vmatpush.bf16.msra.mxu0 0
        %1410 = vmatpush.bf16.msra.mxu0 0
        %1411 = vmatpush.bf16.msra.mxu0 0
        %1412 = vmatpush.bf16.msra.mxu0 0
        %1413 = vmatpush.bf16.msra.mxu0 0
        %1414 = vmatpush.bf16.msra.mxu0 0
        %1415 = vmatpush.bf16.msra.mxu0 0
        %1416 = vmatpush.bf16.msra.mxu0 %v1407
        %1417 = vmatmul.bf16.gmra.mxu0 %v1404
        %v1418 = vpop.f32.mrf.mxu0
        %v1419 = vadd.f32 0.0, %v1418
        %v1420 = vpop.f32.mrf.mxu0
        %1421 = vdwg.mxu0
        %v1423 = vsel %vm954, %v1400, 0
        %v1426 = vsel %vm832, %v948, 0
        %1428 = vmatpush.bf16.msra.mxu0 0
        %1429 = vmatpush.bf16.msra.mxu0 0
        %1430 = vmatpush.bf16.msra.mxu0 0
        %1431 = vmatpush.bf16.msra.mxu0 0
        %1432 = vmatpush.bf16.msra.mxu0 0
        %1433 = vmatpush.bf16.msra.mxu0 0
        %1434 = vmatpush.bf16.msra.mxu0 0
        %1435 = vmatpush.bf16.msra.mxu0 %v1426
        %1436 = vmatmul.bf16.gmra.mxu0 %v1423
        %v1437 = vpop.f32.mrf.mxu0
        %v1438 = vadd.f32 0.0, %v1437
        %v1439 = vpop.f32.mrf.mxu0
        %1440 = vdwg.mxu0
        %v1442 = vsel %vm954, %v1401, 0
        %v1445 = vsel %vm832, %v949, 0
        %1447 = vmatpush.bf16.msra.mxu0 0
        %1448 = vmatpush.bf16.msra.mxu0 0
        %1449 = vmatpush.bf16.msra.mxu0 0
        %1450 = vmatpush.bf16.msra.mxu0 0
        %1451 = vmatpush.bf16.msra.mxu0 0
        %1452 = vmatpush.bf16.msra.mxu0 0
        %1453 = vmatpush.bf16.msra.mxu0 0
        %1454 = vmatpush.bf16.msra.mxu0 %v1445
        %1455 = vmatmul.bf16.gmra.mxu0 %v1442
        %v1456 = vpop.f32.mrf.mxu0
        %v1457 = vadd.f32 0.0, %v1456
        %v1458 = vpop.f32.mrf.mxu0
        %1459 = vdwg.mxu0
        %v1461 = vsel %vm954, %v1402, 0
        %v1464 = vsel %vm832, %v950, 0
        %1466 = vmatpush.bf16.msra.mxu0 0
        %1467 = vmatpush.bf16.msra.mxu0 0
        %1468 = vmatpush.bf16.msra.mxu0 0
        %1469 = vmatpush.bf16.msra.mxu0 0
        %1470 = vmatpush.bf16.msra.mxu0 0
        %1471 = vmatpush.bf16.msra.mxu0 0
        %1472 = vmatpush.bf16.msra.mxu0 0
        %1473 = vmatpush.bf16.msra.mxu0 %v1464
        %1474 = vmatmul.bf16.gmra.mxu0 %v1461
        %v1475 = vpop.f32.mrf.mxu0
        %v1476 = vadd.f32 0.0, %v1475
        %v1477 = vpop.f32.mrf.mxu0
        %1478 = vdwg.mxu0
        %v1479 = vpack.c.bf16 %v1419, %v1419
        %v1480 = vpack.c.bf16 %v1438, %v1438
        %v1481 = vpack.c.bf16 %v1457, %v1457
        %v1482 = vpack.c.bf16 %v1476, %v1476
        %v1484 = vunpack.c.l.b16 %v1480
        %v1485 = vpack.c.b16 %v1484, %v1484
        %1486 = vrot.lane.b32.xlu0 %v1485, 8
        %v1487 = vpop.permute.xlu0 %1486
        %v1489 = vunpack.c.l.b16 %v1481
        %v1490 = vpack.c.b16 %v1489, %v1489
        %1491 = vrot.lane.b32.xlu0 %v1490, 16
        %v1492 = vpop.permute.xlu0 %1491
        %v1494 = vunpack.c.l.b16 %v1482
        %v1495 = vpack.c.b16 %v1494, %v1494
        %1496 = vrot.lane.b32.xlu0 %v1495, 24
        %v1497 = vpop.permute.xlu0 %1496
        %v1500 = vsel %vm954, %v1479, %v1487
        %vm1501 = vcmask 130048
        %v1503 = vsel %vm1501, %v1500, %v1492
        %vm1504 = vcmask 195584
        %v1506 = vsel %vm1504, %v1503, %v1497
        %v1507 = vld [vmem:[%s10] sm:$0xf]
        %v1508 = vld [vmem:[%s10 + $0x4] sm:$0xf]
        %v1509 = vld [vmem:[%s10 + $0x8] sm:$0xf]
        %v1510 = vld [vmem:[%s10 + $0xc] sm:$0xf]
        %v1511 = vld [vmem:[%s11] sm:$0x1]
        %v1513 = vperm.slane %v1511, 0
        %v1519 = vunpack.c.l.b16 %v1507
        %v1520 = vunpack.c.l.b16 %v1508
        %v1521 = vunpack.c.l.b16 %v1509
        %v1522 = vunpack.c.l.b16 %v1510
        %v1523 = vpack.c.b16 %v1520, %v1519
        %v1524 = vpack.c.b16 %v1522, %v1521
        %v1527 = vsel %vm856, %v1506, 0
        %1529 = vmatpush.bf16.msra.mxu0 0
        %1530 = vmatpush.bf16.msra.mxu0 0
        %1531 = vmatpush.bf16.msra.mxu0 0
        %1532 = vmatpush.bf16.msra.mxu0 0
        %1533 = vmatpush.bf16.msra.mxu0 0
        %1534 = vmatpush.bf16.msra.mxu0 0
        %1535 = vmatpush.bf16.msra.mxu0 %v1524
        %1536 = vmatpush.bf16.msra.mxu0 %v1523
        %1537 = vmatmul.bf16.gmra.mxu0 %v1527
        %v1538 = vpop.f32.mrf.mxu0
        %v1539 = vadd.f32 %v1513, %v1538
        %v1540 = vpop.f32.mrf.mxu0
        %1541 = vdwg.mxu0
        %v1542 = vadd.f32 %v828, %v1539
        %v1543 = vsel %vm856, %v1542, 0.0
        %1544 = vadd.xlane.f32.xlu0 %v1543
        %v1545 = vpop.xlane.xlu0 %1544
        %v1546 = vrcp.pop 32.0
        %v1547 = vmul.f32 32.0, %v1546
        %v1548 = vsub.f32 1.0, %v1547
        %v1549 = vmul.f32 %v1546, %v1548
        %v1550 = vadd.f32 %v1546, %v1549
        %vm1551 = vweird.f32 %v1546
        %v1552 = vsel %vm1551, %v1546, %v1550
        %v1553 = vmul.f32 %v1545, %v1552
        %v1554 = vsub.f32 %v1542, %v1553
        %v1555 = vmul.f32 %v1554, %v1554
        %v1556 = vsel %vm856, %v1555, 0.0
        %1557 = vadd.xlane.f32.xlu0 %v1556
        %v1558 = vpop.xlane.xlu0 %1557
        %v1559 = vmul.f32 %v1558, %v1552
        %v1560 = vadd.f32 %v1559, 1e-05
        %v1561 = vrsqrt.pop %v1560
        %v1562 = vmul.f32 %v1561, %v1560
        %v1563 = vmul.f32 %v1562, %v1561
        %v1564 = vmul.f32 0.5, %v1563
        %v1565 = vsub.f32 1.5, %v1564
        %v1566 = vmul.f32 %v1561, %v1565
        %vm1567 = vweird.f32 %v1560
        %vm1568 = vweird.f32 %v1561
        %vm1569 = vmor %vm1567, %vm1568
        %v1570 = vsel %vm1569, %v1561, %v1566
        %v1571 = vmul.f32 %v1554, %v1570
        %v1572 = vld [vmem:[%s17] sm:$0x1]
        %v1574 = vperm.slane %v1572, 0
        %v1576 = vmul.f32 %v1571, %v1574
        %v1577 = vld [vmem:[%s18] sm:$0x1]
        %v1579 = vperm.slane %v1577, 0
        %v1581 = vadd.f32 %v1576, %v1579
        %v1582 = vpack.c.bf16 %v1581, %v1581
        %v1583 = vld [vmem:[#allocation13] sm:$0xf]
        %v1584 = vld [vmem:[#allocation13 + $0x4] sm:$0xf]
        %v1585 = vld [vmem:[#allocation13 + $0x8] sm:$0xf]
        %v1586 = vld [vmem:[#allocation13 + $0xc] sm:$0xf]
        %v1587 = vld [vmem:[#allocation14] sm:$0x1]
        %v1589 = vperm.slane %v1587, 0
        %v1595 = vunpack.c.l.b16 %v1583
        %v1596 = vunpack.c.l.b16 %v1584
        %v1597 = vunpack.c.l.b16 %v1585
        %v1598 = vunpack.c.l.b16 %v1586
        %v1599 = vpack.c.b16 %v1596, %v1595
        %v1600 = vpack.c.b16 %v1598, %v1597
        %v1604 = vsel %vm856, %v1582, 0
        %1606 = vmatpush.bf16.msra.mxu0 0
        %1607 = vmatpush.bf16.msra.mxu0 0
        %1608 = vmatpush.bf16.msra.mxu0 0
        %1609 = vmatpush.bf16.msra.mxu0 0
        %1610 = vmatpush.bf16.msra.mxu0 0
        %1611 = vmatpush.bf16.msra.mxu0 0
        %1612 = vmatpush.bf16.msra.mxu0 %v1600
        %1613 = vmatpush.bf16.msra.mxu0 %v1599
        %1614 = vmatmul.bf16.gmra.mxu0 %v1604
        %v1615 = vpop.f32.mrf.mxu0
        %v1616 = vadd.f32 %v1589, %v1615
        %v1617 = vpop.f32.mrf.mxu0
        %1618 = vdwg.mxu0
        %v1619 = vmax.f32 %v1616, 0.0
        %v1620 = vpack.c.bf16 %v1619, %v1619
        %v1621 = vld [vmem:[%s15] sm:$0xf]
        %v1622 = vld [vmem:[%s15 + $0x4] sm:$0xf]
        %v1623 = vld [vmem:[%s15 + $0x8] sm:$0xf]
        %v1624 = vld [vmem:[%s15 + $0xc] sm:$0xf]
        %v1625 = vld [vmem:[%s15 + $0x10] sm:$0xf]
        %v1626 = vld [vmem:[%s15 + $0x14] sm:$0xf]
        %v1627 = vld [vmem:[%s15 + $0x18] sm:$0xf]
        %v1628 = vld [vmem:[%s15 + $0x1c] sm:$0xf]
        %v1629 = vld [vmem:[%s16] sm:$0x1]
        %v1631 = vperm.slane %v1629, 0
        %v1641 = vunpack.c.l.b16 %v1621
        %v1642 = vunpack.c.l.b16 %v1622
        %v1643 = vunpack.c.l.b16 %v1623
        %v1644 = vunpack.c.l.b16 %v1624
        %v1645 = vunpack.c.l.b16 %v1625
        %v1646 = vunpack.c.l.b16 %v1626
        %v1647 = vunpack.c.l.b16 %v1627
        %v1648 = vunpack.c.l.b16 %v1628
        %v1649 = vpack.c.b16 %v1642, %v1641
        %v1650 = vpack.c.b16 %v1644, %v1643
        %v1651 = vpack.c.b16 %v1646, %v1645
        %v1652 = vpack.c.b16 %v1648, %v1647
        %vm1657 = vcmask 523264
        %v1659 = vsel %vm1657, %v1620, 0
        %1661 = vmatpush.bf16.msra.mxu0 0
        %1662 = vmatpush.bf16.msra.mxu0 0
        %1663 = vmatpush.bf16.msra.mxu0 0
        %1664 = vmatpush.bf16.msra.mxu0 0
        %1665 = vmatpush.bf16.msra.mxu0 %v1652
        %1666 = vmatpush.bf16.msra.mxu0 %v1651
        %1667 = vmatpush.bf16.msra.mxu0 %v1650
        %1668 = vmatpush.bf16.msra.mxu0 %v1649
        %1669 = vmatmul.bf16.gmra.mxu0 %v1659
        %v1670 = vpop.f32.mrf.mxu0
        %v1671 = vadd.f32 %v1631, %v1670
        %v1672 = vpop.f32.mrf.mxu0
        %1673 = vdwg.mxu0
        %v1674 = vadd.f32 %v1581, %v1671
        %v1675 = vsel %vm856, %v1674, 0.0
        %1676 = vadd.xlane.f32.xlu0 %v1675
        %v1677 = vpop.xlane.xlu0 %1676
        %v1678 = vmul.f32 %v1677, %v1552
        %v1679 = vsub.f32 %v1674, %v1678
        %v1680 = vmul.f32 %v1679, %v1679
        %v1681 = vsel %vm856, %v1680, 0.0
        %1682 = vadd.xlane.f32.xlu0 %v1681
        %v1683 = vpop.xlane.xlu0 %1682
        %v1684 = vmul.f32 %v1683, %v1552
        %v1685 = vadd.f32 %v1684, 1e-05
        %v1686 = vrsqrt.pop %v1685
        %v1687 = vmul.f32 %v1686, %v1685
        %v1688 = vmul.f32 %v1687, %v1686
        %v1689 = vmul.f32 0.5, %v1688
        %v1690 = vsub.f32 1.5, %v1689
        %v1691 = vmul.f32 %v1686, %v1690
        %vm1692 = vweird.f32 %v1685
        %vm1693 = vweird.f32 %v1686
        %vm1694 = vmor %vm1692, %vm1693
        %v1695 = vsel %vm1694, %v1686, %v1691
        %v1696 = vmul.f32 %v1679, %v1695
        %v1697 = vld [vmem:[%s19] sm:$0x1]
        %v1699 = vperm.slane %v1697, 0
        %v1701 = vmul.f32 %v1696, %v1699
        %v1702 = vld [vmem:[%s20] sm:$0x1]
        %v1704 = vperm.slane %v1702, 0
        %v1706 = vadd.f32 %v1701, %v1704
        %1707 = vst.msk [vmem:[%s823] sm:$0xff] %vm856, %v1706
        %s1708 = sand.u32 %s508, 1
        %s1709 = scalar_lea.sflag [#allocation4], %s1708
        %s1710 = sand.u32 %s508, 1
        %s1711 = smul.addr %s1710, 8
        %s1712 = scalar_lea.vmem [#allocation16], %s1711
        // Predicated region
        $region137: #{tpu_custom_call.1} parent=103 // pred_check
          %p1713 = pneg %p518
        $region138: #{tpu_custom_call.1} parent=103 // pred_check_branch
          %1715 = sbr.rel (%p1713) target = $region140
        $region139: #{tpu_custom_call.1} parent=103 // pred_region
          %1717 = vsyncadd %s1709, 0
          %s1718 = smul.addr %s44, 8
          %s1719 = scalar_lea.hbm %s21, %s1718
          %s1721 = sshll.u32 %s1712, 4
          %s1722 = int_to_ptr.vmem [resolvable:$true] %s1721
          %s1723 = sshll.u32 %s1719, 4
          %s1724 = int_to_ptr.hbm [resolvable:$true] %s1723
          %1726 = dma.vmem_to_hbm [thread:$0]  %s1722, 128, %s1724, %s1709
        $region140: #{tpu_custom_call.1} parent=103 // pred_fallthru
          _
      $region104: #{tpu_custom_call.1} parent=5 // pred_fallthru
        _
      %p1727 = scmp.le.s32.totalorder 2, %s39
      // Predicated region
      $region141: #{tpu_custom_call.1} parent=5 // pred_check
        %p1728 = pneg %p1727
      $region142: #{tpu_custom_call.1} parent=5 // pred_check_branch
        %1730 = sbr.rel (%p1728) target = $region144
      $region143: #{tpu_custom_call.1} parent=5 // pred_region
        %s1731 = ssub.s32 %s39, 2
        // Predicated region
        $region145: #{tpu_custom_call.1} parent=143 // pred_check
          %p1732 = pneg %p524
        $region146: #{tpu_custom_call.1} parent=143 // pred_check_branch
          %1734 = sbr.rel (%p1732) target = $region148
        $region147: #{tpu_custom_call.1} parent=143 // pred_region
          %s1735 = sand.u32 %s509, 1
          %s1736 = scalar_lea.sflag [#allocation4], %s1735
          %s1737 = sand.u32 %s509, 1
          %s1738 = smul.addr %s1737, 8
          %s1739 = scalar_lea.vmem [#allocation16], %s1738
          %1741 = dma.done %s1736, 128
        $region148: #{tpu_custom_call.1} parent=143 // pred_fallthru
          _
      $region144: #{tpu_custom_call.1} parent=5 // pred_fallthru
        _
    $region6: #{tpu_custom_call.1} parent=1 // loop_footer
      %s43 = sadd.s32 1, %s39
    $region7: #{tpu_custom_call.1} parent=1 // loop_footer_branch
      %38 = sbr.rel target = $region3
    $region8: #{tpu_custom_call.1} parent=1 // loop_exit
      _
    %1742 = vsyncpa [#allocation3], 1
    %s1743 = scalar_lea.sflag [#allocation3], 1
    %1744 = vsyncpa %s1743, 1
    %1745 = vsyncpa [#allocation6], 1
    %s1746 = scalar_lea.sflag [#allocation6], 1
    %1747 = vsyncpa %s1746, 1
    %1748 = vsyncpa [#allocation9], 1
    %1749 = vsyncpa [#allocation12], 1
    %1750 = vsyncpa [#allocation15], 1
    %1751 = vsyncpa [#allocation4], 1
    %s1752 = scalar_lea.sflag [#allocation4], 1
    %1753 = vsyncpa %s1752, 1

</llo_original>
